<compile_context>
chip_gen: v7x
topology: tpu7x:2x2x1
jax: 0.10.0
libtpu: 0.0.40
codegen_flags: <defaults>
</compile_context>

<pallas_src>
import jax
import jax.numpy as jnp
from jax.experimental import pallas as pl
from jax.experimental.pallas import tpu as pltpu


def _pick_tile(n, target, align):
    """Largest multiple of `align` <= target that divides n; else n (full extent)."""
    t = (min(target, n) // align) * align
    while t >= align:
        if n % t == 0:
            return t
        t -= align
    return n  # full-extent block is always a legal block dim


def _make_decoder_kernel(tn, resident_rhs, precision):
    def kernel(zr_ref, zc_ref, adj_ref):
        if resident_rhs:
            # zc_ref holds ALL of z (constant block index => DMA'd once).
            # Slice this j-tile's rows; start is a multiple of tn (sublane axis).
            col0 = pl.multiple_of(pl.program_id(1) * tn, tn)
            zc = zc_ref[pl.ds(col0, tn), :]          # (tn, D)
        else:
            zc = zc_ref[...]                         # (tn, D)
        logits = jax.lax.dot_general(
            zr_ref[...],                             # (tm, D)
            zc,                                      # (tn, D)
            dimension_numbers=(((1,), (1,)), ((), ())),   # contract both last dims
            preferred_element_type=jnp.float32,
            precision=precision,
        )
        # f32 sigmoid (EUP). If the bundle dump ever shows the EUP binding on
        # v7x after the DMA fixes, cast logits to bf16 here (bf16 EUP on v6e+).
        adj_ref[...] = jax.nn.sigmoid(logits).astype(adj_ref.dtype)
    return kernel


def inner_product_decoder(z, *, tm=None, tn=None,
                          matmul_dtype=jnp.float32, out_dtype=jnp.float32):
    """adj = sigmoid(z @ z.T)   (eval-mode InnerProductDecoder forward).

    z: (N, D).  Tiles are auto-picked to divide N (falling back to full-extent
    blocks for ragged N).  matmul_dtype=bf16 / out_dtype=bf16 are available
    when reduced precision is acceptable.
    """
    N, D = z.shape
    z_in = z.astype(matmul_dtype)
    in_b = jnp.dtype(matmul_dtype).itemsize
    out_b = jnp.dtype(out_dtype).itemsize

    # --- tile selection -----------------------------------------------------
    # Big tiles amortize per-step overhead; keep the i axis >= 2 blocks when
    # possible so both v7x TensorCores get work.
    if tm is None:
        tm = _pick_tile(N, min(1024, max(8, N // 2)), 8)
    if tn is None:
        tn = _pick_tile(N, min(2048, N), 128)
    assert N % tm == 0 and N % tn == 0

    # --- RHS strategy: resident z (DMA'd once) vs blocked --------------------
    resident = (2 * N * D * in_b) <= (16 << 20)

    out_tile_bytes = tm * tn * out_b
    lhs_tile_bytes = tm * D * in_b
    rhs_bytes = (N * D * in_b) if resident else (tn * D * in_b)
    vmem_needed = 2 * (out_tile_bytes + lhs_tile_bytes + rhs_bytes)  # double-buffered
    assert vmem_needed <= (48 << 20), (
        "tile config exceeds safe VMEM budget (v7x has 64 MiB physical); "
        "reduce tm/tn")
    vmem_limit = min(max(int(vmem_needed * 1.5) + (4 << 20), 32 << 20), 60 << 20)

    # --- traffic estimate (advisory) ------------------------------------------
    lhs_read = N * D * in_b                                   # one pass (revisit-skip over j)
    rhs_read = (N * D * in_b) if resident else (N // tm) * N * D * in_b
    out_write = N * N * out_b

    precision = jax.lax.Precision.HIGHEST if jnp.dtype(matmul_dtype) == jnp.float32 else None
    kernel = _make_decoder_kernel(tn, resident, precision)

    if resident:
        rhs_spec = pl.BlockSpec((N, D), lambda i, j: (0, 0))   # whole z, DMA'd once
    else:
        rhs_spec = pl.BlockSpec((tn, D), lambda i, j: (j, 0))

    grid = (N // tm, N // tn)

    return pl.pallas_call(
        kernel,
        out_shape=jax.ShapeDtypeStruct((N, N), out_dtype),
        grid=grid,
        in_specs=[
            pl.BlockSpec((tm, D), lambda i, j: (i, 0)),        # row block of z
            rhs_spec,                                          # resident (or blocked) z
        ],
        out_specs=pl.BlockSpec((tm, tn), lambda i, j: (i, j)),
        compiler_params=pltpu.CompilerParams(
            dimension_semantics=("parallel", "parallel"),
            vmem_limit_bytes=vmem_limit,
        ),
        cost_estimate=pl.CostEstimate(
            flops=2 * N * N * D,
            transcendentals=N * N,                              # sigmoid: one exp / elem
            bytes_accessed=lhs_read + rhs_read + out_write,
        ),
    )(z_in, z_in)


if __name__ == "__main__":
    key = jax.random.PRNGKey(0)

    # --- primary test: f32 path, N=512 nodes, D=128 latent dims --------------
    N, D = 512, 128
    z = jax.random.normal(key, (N, D), dtype=jnp.float32)

    adj = jax.block_until_ready(inner_product_decoder(z))
    assert adj.shape == (N, N) and adj.dtype == jnp.float32

    ref = jax.nn.sigmoid(jnp.dot(z, z.T, precision=jax.lax.Precision.HIGHEST))
    # Loose bound kept for run-robustness; f32/HIGHEST path is ~1e-6 accurate.
    assert jnp.allclose(adj, ref, atol=2e-2, rtol=2e-2), "mismatch vs f32 reference"
    assert jnp.allclose(adj, adj.T, atol=2e-2), "adjacency not symmetric"

    # --- secondary test: bf16 matmul inputs + bf16 output (halved writeback) --
    N2, D2 = 256, 64
    z2 = jax.random.normal(jax.random.PRNGKey(1), (N2, D2), dtype=jnp.float32)
    adj2 = jax.block_until_ready(
        inner_product_decoder(z2, matmul_dtype=jnp.bfloat16, out_dtype=jnp.bfloat16))
    z2_bf = z2.astype(jnp.bfloat16).astype(jnp.float32)
    ref2 = jax.nn.sigmoid(z2_bf @ z2_bf.T)
    assert jnp.allclose(adj2.astype(jnp.float32), ref2, atol=2e-2, rtol=2e-2), \
        "mismatch vs bf16 reference"

    print("KERNEL_OK")
</pallas_src>

<mosaic_0001>
module attributes {stable_mosaic.version = 11 : i64} {
  func.func @kernel(%arg0: i32, %arg1: i32, %arg2: memref<256x128xf32, #tpu.memory_space<vmem>>, %arg3: memref<512x128xf32, #tpu.memory_space<vmem>>, %arg4: memref<256x512xf32, #tpu.memory_space<vmem>>) attributes {dimension_semantics = [#tpu.dimension_semantics<parallel>, #tpu.dimension_semantics<parallel>], iteration_bounds = array<i64: 2, 1>, scalar_prefetch = 0 : i64, scratch_operands = 0 : i64, tpu.core_type = #tpu.core_type<tc>, window_params = [{transform_indices = @transform_0, window_bounds = array<i64: 256, 128>}, {pipeline_mode = #tpu.pipeline_mode<synchronous>, transform_indices = @transform_1, window_bounds = array<i64: 512, 128>}, {transform_indices = @transform_2, window_bounds = array<i64: 256, 512>}]} {
    %c512_i32 = arith.constant 512 : i32
    %0 = arith.muli %arg1, %c512_i32 : i32
    %1 = tpu.assume_multiple %0, 512 : i32
    %2 = arith.index_cast %1 : i32 to index
    %c0 = arith.constant 0 : index
    %3 = vector.load %arg3[%2, %c0] : memref<512x128xf32, #tpu.memory_space<vmem>>, vector<512x128xf32>
    %c0_0 = arith.constant 0 : index
    %c0_1 = arith.constant 0 : index
    %4 = vector.load %arg2[%c0_0, %c0_1] : memref<256x128xf32, #tpu.memory_space<vmem>>, vector<256x128xf32>
    %cst = arith.constant dense<0.000000e+00> : vector<256x512xf32>
    %5 = tpu.matmul %4, %3, %cst {dimension_numbers = #tpu.dot_dimension_numbers<[1], [1], [0], [0], [0, 0, 1, 0], [], []>, precision = #tpu.contract_precision<fp32>} : vector<256x128xf32>, vector<512x128xf32>, vector<256x512xf32> -> vector<256x512xf32>
    %6 = arith.negf %5 : vector<256x512xf32>
    %7 = math.exp %6 : vector<256x512xf32>
    %cst_2 = arith.constant 1.000000e+00 : f32
    %8 = vector.broadcast %cst_2 : f32 to vector<256x512xf32>
    %9 = arith.addf %8, %7 : vector<256x512xf32>
    %10 = arith.divf %8, %9 : vector<256x512xf32>
    %c0_3 = arith.constant 0 : index
    %c0_4 = arith.constant 0 : index
    %11 = vector.load %arg4[%c0_3, %c0_4] : memref<256x512xf32, #tpu.memory_space<vmem>>, vector<256x512xf32>
    tpu.vector_store %arg4[%c0_3, %c0_4], %10 {strides = array<i32>} : memref<256x512xf32, #tpu.memory_space<vmem>>, vector<256x512xf32>,
    return
  }
  func.func @transform_0(%arg0: i32, %arg1: i32) -> (i32, i32) {
    %c0_i32 = arith.constant 0 : i32
    %c0_i32_0 = arith.constant 0 : i32
    return %arg0, %c0_i32 : i32, i32
  }
  func.func @transform_1(%arg0: i32, %arg1: i32) -> (i32, i32) {
    %c0_i32 = arith.constant 0 : i32
    %c0_i32_0 = arith.constant 0 : i32
    %c0_i32_1 = arith.constant 0 : i32
    return %c0_i32, %c0_i32_0 : i32, i32
  }
  func.func @transform_2(%arg0: i32, %arg1: i32) -> (i32, i32) {
    %c0_i32 = arith.constant 0 : i32
    return %arg0, %arg1 : i32, i32
  }
}

</mosaic_0001>

<llo_original>
// kernel: tpu_custom_call.1
$region0: #{tpu_custom_call.1}
  #allocation0 [shape = 'u32[]', space=smem, size = 0x4, offset = 0x4, fixed_abs, tag = 'smem constant byte address 0x4 - core index']
  #allocation1 [shape = 'u32[144,128]{1,0:T(1,128)}', space=vmem, size = 0x12000, scoped, tag = 'internal scratch']
  %s0 = inlined_call_operand.hbm [shape: f32[512,128], index: 0, kind: input, shape index: {}]
  %s1 = inlined_call_operand.hbm [shape: f32[512,128], index: 1, kind: input, shape index: {}]
  %s2 = inlined_call_operand.hbm [shape: f32[512,512], index: 2, kind: output, shape index: {}]
  %s3 = sld [smem:[#allocation0]]
  $region49: #{tpu_custom_call.1} parent=0
    _
  %s5 = ssub.s32 1, %s3
  %s6 = scalar_select 0, %s5, %s3
  $region1: #{tpu_custom_call.1} parent=0
    #allocation2 [shape = 'u8[262144]{0}', space=vmem, size = 0x40000, scoped, tag = 'input window, operand 0']
    #allocation3 [shape = 's32[2]{0}', space=sflag, size = 0x8, scoped, tag = 'scoped memory for tpu_custom_call.1']
    #allocation4 [shape = 's32[2]{0}', space=sflag, size = 0x8, scoped, tag = 'scoped memory for tpu_custom_call.1']
    #allocation5 [shape = 'u8[262144]{0}', space=vmem, size = 0x40000, scoped, tag = 'input window, operand 1, single buffered']
    #allocation6 [shape = 's32[1]{0}', space=sflag, size = 0x4, scoped, tag = 'scoped memory for tpu_custom_call.1']
    #allocation7 [shape = 'u8[1048576]{0}', space=vmem, size = 0x100000, scoped, tag = 'output window, operand 0']
    %7 = vsyncpa [#allocation3], 0
    %s8 = scalar_lea.sflag [#allocation3], 1
    %9 = vsyncpa %s8, 0
    %10 = vsyncpa [#allocation6], 0
    %11 = vsyncpa [#allocation4], 0
    %s12 = scalar_lea.sflag [#allocation4], 1
    %13 = vsyncpa %s12, 0
    loop: start=0, step=1, limit=4
    $region2: #{tpu_custom_call.1} parent=1 // loop_pre_header
      _
    $region3: #{tpu_custom_call.1} parent=1 // loop_header
      %s15 = sphi 0, %s19
      %p16 = scmp.ge.s32.totalorder %s15, 4
      %s22 = sphi 0, %s34
      %s23 = sphi 0, %s30
      %s24 = sphi 0, %s22
      %s25 = sphi 0, %s23
      %s26 = sphi 0, %s24
      %s27 = sphi 0, %s25
      %s37 = sphi 0, %s39
      %s40 = sphi 0, %s37
      %s41 = sphi 0, %s40
      %s57 = sphi 0, %s41
      %s61 = sphi 0, %s61
      %s63 = sphi 0, %s61
      %s64 = sphi 0, %s63
      %s78 = sphi 0, %s64
      %s86 = sphi 0, %s88
      %s89 = sphi 0, %s86
      %s90 = sphi 0, %s89
      %s106 = sphi 0, %s90
    $region4: #{tpu_custom_call.1} parent=1 // loop_header_branch
      %18 = sbr.rel (%p16) target = $region8
    $region5: #{tpu_custom_call.1} parent=1 // loop_body
      %s20 = ssub.s32 %s15, 1
      %s21 = ssub.s32 %s15, 2
      %s28 = sadd.s32 1, %s23
      %p29 = scmp.ge.s32.totalorder %s28, 1
      %s30 = scalar_select %p29, 0, %s28
      %s31 = sadd.s32 1, %s22
      %s32 = scalar_select %p29, %s31, %s22
      %p33 = scmp.ge.s32.totalorder %s32, 2
      %s34 = scalar_select %p33, 0, %s32
      %s35 = ssub.s32 %s22, %s34
      %p36 = scmp.eq.s32.totalorder %s35, 0
      %s38 = sadd.s32 %s37, 1
      %s39 = scalar_select %p36, %s37, %s38
      %p42 = pneg %p36
      %p43 = scmp.eq.s32.totalorder %s15, 1
      %p44 = por %p42, %p43
      %p45 = scmp.ne.s32.totalorder %s37, %s40
      %p46 = scmp.eq.s32.totalorder %s15, 0
      %p47 = por %p45, %p46
      %p48 = scmp.ne.s32.totalorder %s37, %s40
      %p49 = scmp.eq.s32.totalorder %s20, 1
      %p50 = por %p48, %p49
      %p51 = scmp.ne.s32.totalorder %s40, %s41
      %p52 = scmp.eq.s32.totalorder %s20, 0
      %p53 = por %p51, %p52
      %p54 = scmp.ne.s32.totalorder %s40, %s41
      %p55 = scmp.eq.s32.totalorder %s21, 1
      %p56 = por %p54, %p55
      %p58 = scmp.ne.s32.totalorder %s41, %s57
      %p59 = scmp.eq.s32.totalorder %s21, 0
      %p60 = por %p58, %p59
      %s62 = sadd.s32 %s61, 1
      %p65 = scmp.eq.s32.totalorder %s15, 1
      %p66 = scmp.ne.s32.totalorder %s61, %s63
      %p67 = scmp.eq.s32.totalorder %s15, 0
      %p68 = por %p66, %p67
      %p69 = scmp.ne.s32.totalorder %s61, %s63
      %p70 = scmp.eq.s32.totalorder %s20, 1
      %p71 = por %p69, %p70
      %p72 = scmp.ne.s32.totalorder %s63, %s64
      %p73 = scmp.eq.s32.totalorder %s20, 0
      %p74 = por %p72, %p73
      %p75 = scmp.ne.s32.totalorder %s63, %s64
      %p76 = scmp.eq.s32.totalorder %s21, 1
      %p77 = por %p75, %p76
      %p79 = scmp.ne.s32.totalorder %s64, %s78
      %p80 = scmp.eq.s32.totalorder %s21, 0
      %p81 = por %p79, %p80
      %s82 = ssub.s32 %s22, %s34
      %s83 = ssub.s32 %s23, %s30
      %s84 = sor.u32 %s82, %s83
      %p85 = scmp.eq.s32.totalorder %s84, 0
      %s87 = sadd.s32 %s86, 1
      %s88 = scalar_select %p85, %s86, %s87
      %p91 = pneg %p85
      %p92 = scmp.eq.s32.totalorder %s15, 1
      %p93 = por %p91, %p92
      %p94 = scmp.ne.s32.totalorder %s86, %s89
      %p95 = scmp.eq.s32.totalorder %s15, 0
      %p96 = por %p94, %p95
      %p97 = scmp.ne.s32.totalorder %s86, %s89
      %p98 = scmp.eq.s32.totalorder %s20, 1
      %p99 = por %p97, %p98
      %p100 = scmp.ne.s32.totalorder %s89, %s90
      %p101 = scmp.eq.s32.totalorder %s20, 0
      %p102 = por %p100, %p101
      %p103 = scmp.ne.s32.totalorder %s89, %s90
      %p104 = scmp.eq.s32.totalorder %s21, 1
      %p105 = por %p103, %p104
      %p107 = scmp.ne.s32.totalorder %s90, %s106
      %p108 = scmp.eq.s32.totalorder %s21, 0
      %p109 = por %p107, %p108
      %p110 = scmp.le.s32.totalorder 1, %s15
      %p111 = scmp.lt.s32.totalorder %s15, 3
      %p112 = pnand %p110, %p111
      %p113 = pneg %p112
      // Predicated region
      $region9: #{tpu_custom_call.1} parent=5 // pred_check
        _
      $region10: #{tpu_custom_call.1} parent=5 // pred_check_branch
        %115 = sbr.rel (%p112) target = $region12
      $region11: #{tpu_custom_call.1} parent=5 // pred_region
        %s116 = ssub.s32 %s15, 1
        // Predicated region
        $region13: #{tpu_custom_call.1} parent=11 // pred_check
          %p117 = pneg %p74
        $region14: #{tpu_custom_call.1} parent=11 // pred_check_branch
          %119 = sbr.rel (%p117) target = $region16
        $region15: #{tpu_custom_call.1} parent=11 // pred_region
          %s121 = ssub.s32 8192, 8192
          %122 = vsyncadd [#allocation6], %s121
          %s123 = sshll.u32 [#allocation5], 4
          %s124 = int_to_ptr.vmem [resolvable:$true] %s123
          %129 = dma.hbm_to_vmem [thread:$0]  %s1, 8192, %s124, [#allocation6], 128, 128, 8
        $region16: #{tpu_custom_call.1} parent=11 // pred_fallthru
          _
      $region12: #{tpu_custom_call.1} parent=5 // pred_fallthru
        _
      %p130 = scmp.lt.s32.totalorder %s15, 2
      // Predicated region
      $region17: #{tpu_custom_call.1} parent=5 // pred_check
        %p131 = pneg %p130
      $region18: #{tpu_custom_call.1} parent=5 // pred_check_branch
        %133 = sbr.rel (%p131) target = $region20
      $region19: #{tpu_custom_call.1} parent=5 // pred_region
        // Predicated region
        $region21: #{tpu_custom_call.1} parent=19 // pred_check
          %p134 = pneg %p47
        $region22: #{tpu_custom_call.1} parent=19 // pred_check_branch
          %136 = sbr.rel (%p134) target = $region24
        $region23: #{tpu_custom_call.1} parent=19 // pred_region
          %s137 = sand.u32 %s37, 1
          %s138 = scalar_lea.sflag [#allocation3], %s137
          %s139 = sand.u32 %s37, 1
          %s140 = smul.addr %s139, 256
          %s141 = scalar_lea.vmem [#allocation2], %s140
          %s142 = smul.u32 32, %s22
          %s144 = ssub.s32 4096, 4096
          %145 = vsyncadd %s138, %s144
          %s146 = smul.addr %s142, 128
          %s147 = scalar_lea.hbm %s0, %s146
          %s148 = sshll.u32 %s141, 4
          %s149 = int_to_ptr.vmem [resolvable:$true] %s148
          %154 = dma.hbm_to_vmem [thread:$0]  %s147, 4096, %s149, %s138, 128, 128, 8
        $region24: #{tpu_custom_call.1} parent=19 // pred_fallthru
          _
      $region20: #{tpu_custom_call.1} parent=5 // pred_fallthru
        _
      %p155 = scmp.le.s32.totalorder 1, %s15
      %p156 = scmp.lt.s32.totalorder %s15, 3
      %p157 = pnand %p155, %p156
      %p158 = pneg %p157
      // Predicated region
      $region25: #{tpu_custom_call.1} parent=5 // pred_check
        _
      $region26: #{tpu_custom_call.1} parent=5 // pred_check_branch
        %160 = sbr.rel (%p157) target = $region28
      $region27: #{tpu_custom_call.1} parent=5 // pred_region
        %s161 = ssub.s32 %s15, 1
        %s162 = sand.u32 %s40, 1
        %s163 = scalar_lea.sflag [#allocation3], %s162
        %s164 = sand.u32 %s40, 1
        %s165 = smul.addr %s164, 256
        %s166 = scalar_lea.vmem [#allocation2], %s165
        // Predicated region
        $region29: #{tpu_custom_call.1} parent=27 // pred_check
          %p167 = pneg %p53
        $region30: #{tpu_custom_call.1} parent=27 // pred_check_branch
          %169 = sbr.rel (%p167) target = $region32
        $region31: #{tpu_custom_call.1} parent=27 // pred_region
          %170 = dma.done %s163, 4096
        $region32: #{tpu_custom_call.1} parent=27 // pred_fallthru
          _
        // Predicated region
        $region33: #{tpu_custom_call.1} parent=27 // pred_check
          %p171 = pneg %p74
        $region34: #{tpu_custom_call.1} parent=27 // pred_check_branch
          %173 = sbr.rel (%p171) target = $region36
        $region35: #{tpu_custom_call.1} parent=27 // pred_region
          %174 = dma.done [#allocation6], 8192
        $region36: #{tpu_custom_call.1} parent=27 // pred_fallthru
          _
        %s175 = sand.u32 %s40, 1
        %s176 = scalar_lea.sflag [#allocation3], %s175
        %s177 = sand.u32 %s40, 1
        %s178 = smul.addr %s177, 256
        %s179 = scalar_lea.vmem [#allocation2], %s178
        %p180 = pneg %p53
        %p181 = pneg %p50
        %p182 = pneg %p74
        %p183 = pneg %p71
        %p184 = pneg %p102
        %p185 = pneg %p99
        %s186 = sand.u32 %s89, 1
        %s187 = scalar_lea.sflag [#allocation4], %s186
        %s188 = sand.u32 %s89, 1
        %s189 = smul.addr %s188, 1024
        %s190 = scalar_lea.vmem [#allocation7], %s189
        %s191 = smul.u32 32, %s24
        %s192 = smul.u32 32, %s24
        %s193 = smul.u32 4, %s25
        %s194 = smul.u32 %s25, 512
        %s195 = scalar_lea.vmem [#allocation5], %s194
        %v196 = vld [vmem:[%s195] sm:$0xff]
        %v197 = vld [vmem:[%s195 + $0x8] sm:$0xff]
        %v198 = vld [vmem:[%s195 + $0x10] sm:$0xff]
        %v199 = vld [vmem:[%s195 + $0x18] sm:$0xff]
        %v200 = vld [vmem:[%s195 + $0x20] sm:$0xff]
        %v201 = vld [vmem:[%s195 + $0x28] sm:$0xff]
        %v202 = vld [vmem:[%s195 + $0x30] sm:$0xff]
        %v203 = vld [vmem:[%s195 + $0x38] sm:$0xff]
        %v204 = vld [vmem:[%s195 + $0x40] sm:$0xff]
        %v205 = vld [vmem:[%s195 + $0x48] sm:$0xff]
        %v206 = vld [vmem:[%s195 + $0x50] sm:$0xff]
        %v207 = vld [vmem:[%s195 + $0x58] sm:$0xff]
        %v208 = vld [vmem:[%s195 + $0x60] sm:$0xff]
        %v209 = vld [vmem:[%s195 + $0x68] sm:$0xff]
        %v210 = vld [vmem:[%s195 + $0x70] sm:$0xff]
        %v211 = vld [vmem:[%s195 + $0x78] sm:$0xff]
        %v212 = vld [vmem:[%s195 + $0x80] sm:$0xff]
        %v213 = vld [vmem:[%s195 + $0x88] sm:$0xff]
        %v214 = vld [vmem:[%s195 + $0x90] sm:$0xff]
        %v215 = vld [vmem:[%s195 + $0x98] sm:$0xff]
        %v216 = vld [vmem:[%s195 + $0xa0] sm:$0xff]
        %v217 = vld [vmem:[%s195 + $0xa8] sm:$0xff]
        %v218 = vld [vmem:[%s195 + $0xb0] sm:$0xff]
        %v219 = vld [vmem:[%s195 + $0xb8] sm:$0xff]
        %v220 = vld [vmem:[%s195 + $0xc0] sm:$0xff]
        %v221 = vld [vmem:[%s195 + $0xc8] sm:$0xff]
        %v222 = vld [vmem:[%s195 + $0xd0] sm:$0xff]
        %v223 = vld [vmem:[%s195 + $0xd8] sm:$0xff]
        %v224 = vld [vmem:[%s195 + $0xe0] sm:$0xff]
        %v225 = vld [vmem:[%s195 + $0xe8] sm:$0xff]
        %v226 = vld [vmem:[%s195 + $0xf0] sm:$0xff]
        %v227 = vld [vmem:[%s195 + $0xf8] sm:$0xff]
        %v228 = vld [vmem:[%s195 + $0x100] sm:$0xff]
        %v229 = vld [vmem:[%s195 + $0x108] sm:$0xff]
        %v230 = vld [vmem:[%s195 + $0x110] sm:$0xff]
        %v231 = vld [vmem:[%s195 + $0x118] sm:$0xff]
        %v232 = vld [vmem:[%s195 + $0x120] sm:$0xff]
        %v233 = vld [vmem:[%s195 + $0x128] sm:$0xff]
        %v234 = vld [vmem:[%s195 + $0x130] sm:$0xff]
        %v235 = vld [vmem:[%s195 + $0x138] sm:$0xff]
        %v236 = vld [vmem:[%s195 + $0x140] sm:$0xff]
        %v237 = vld [vmem:[%s195 + $0x148] sm:$0xff]
        %v238 = vld [vmem:[%s195 + $0x150] sm:$0xff]
        %v239 = vld [vmem:[%s195 + $0x158] sm:$0xff]
        %v240 = vld [vmem:[%s195 + $0x160] sm:$0xff]
        %v241 = vld [vmem:[%s195 + $0x168] sm:$0xff]
        %v242 = vld [vmem:[%s195 + $0x170] sm:$0xff]
        %v243 = vld [vmem:[%s195 + $0x178] sm:$0xff]
        %v244 = vld [vmem:[%s195 + $0x180] sm:$0xff]
        %v245 = vld [vmem:[%s195 + $0x188] sm:$0xff]
        %v246 = vld [vmem:[%s195 + $0x190] sm:$0xff]
        %v247 = vld [vmem:[%s195 + $0x198] sm:$0xff]
        %v248 = vld [vmem:[%s195 + $0x1a0] sm:$0xff]
        %v249 = vld [vmem:[%s195 + $0x1a8] sm:$0xff]
        %v250 = vld [vmem:[%s195 + $0x1b0] sm:$0xff]
        %v251 = vld [vmem:[%s195 + $0x1b8] sm:$0xff]
        %v252 = vld [vmem:[%s195 + $0x1c0] sm:$0xff]
        %v253 = vld [vmem:[%s195 + $0x1c8] sm:$0xff]
        %v254 = vld [vmem:[%s195 + $0x1d0] sm:$0xff]
        %v255 = vld [vmem:[%s195 + $0x1d8] sm:$0xff]
        %v256 = vld [vmem:[%s195 + $0x1e0] sm:$0xff]
        %v257 = vld [vmem:[%s195 + $0x1e8] sm:$0xff]
        %v258 = vld [vmem:[%s195 + $0x1f0] sm:$0xff]
        %v259 = vld [vmem:[%s195 + $0x1f8] sm:$0xff]
        %v260 = vld [vmem:[%s166] sm:$0xff]
        %v261 = vld [vmem:[%s166 + $0x8] sm:$0xff]
        %v262 = vld [vmem:[%s166 + $0x10] sm:$0xff]
        %v263 = vld [vmem:[%s166 + $0x18] sm:$0xff]
        %v264 = vld [vmem:[%s166 + $0x20] sm:$0xff]
        %v265 = vld [vmem:[%s166 + $0x28] sm:$0xff]
        %v266 = vld [vmem:[%s166 + $0x30] sm:$0xff]
        %v267 = vld [vmem:[%s166 + $0x38] sm:$0xff]
        %v268 = vld [vmem:[%s166 + $0x40] sm:$0xff]
        %v269 = vld [vmem:[%s166 + $0x48] sm:$0xff]
        %v270 = vld [vmem:[%s166 + $0x50] sm:$0xff]
        %v271 = vld [vmem:[%s166 + $0x58] sm:$0xff]
        %v272 = vld [vmem:[%s166 + $0x60] sm:$0xff]
        %v273 = vld [vmem:[%s166 + $0x68] sm:$0xff]
        %v274 = vld [vmem:[%s166 + $0x70] sm:$0xff]
        %v275 = vld [vmem:[%s166 + $0x78] sm:$0xff]
        %v276 = vld [vmem:[%s166 + $0x80] sm:$0xff]
        %v277 = vld [vmem:[%s166 + $0x88] sm:$0xff]
        %v278 = vld [vmem:[%s166 + $0x90] sm:$0xff]
        %v279 = vld [vmem:[%s166 + $0x98] sm:$0xff]
        %v280 = vld [vmem:[%s166 + $0xa0] sm:$0xff]
        %v281 = vld [vmem:[%s166 + $0xa8] sm:$0xff]
        %v282 = vld [vmem:[%s166 + $0xb0] sm:$0xff]
        %v283 = vld [vmem:[%s166 + $0xb8] sm:$0xff]
        %v284 = vld [vmem:[%s166 + $0xc0] sm:$0xff]
        %v285 = vld [vmem:[%s166 + $0xc8] sm:$0xff]
        %v286 = vld [vmem:[%s166 + $0xd0] sm:$0xff]
        %v287 = vld [vmem:[%s166 + $0xd8] sm:$0xff]
        %v288 = vld [vmem:[%s166 + $0xe0] sm:$0xff]
        %v289 = vld [vmem:[%s166 + $0xe8] sm:$0xff]
        %v290 = vld [vmem:[%s166 + $0xf0] sm:$0xff]
        %v291 = vld [vmem:[%s166 + $0xf8] sm:$0xff]
        %292 = vmatprep.subr.mxu0 0.0
        %v293 = vand.u32 %v196, 4294901760
        %294 = vmatpush1.xpose.msra.mxu0 %v293
        %295 = vmatprep.subr.mxu0 0.0
        %v296 = vand.u32 %v197, 4294901760
        %297 = vmatpush1.xpose.msra.mxu0 %v296
        %298 = vmatprep.subr.mxu0 0.0
        %v299 = vand.u32 %v198, 4294901760
        %300 = vmatpush1.xpose.msra.mxu0 %v299
        %301 = vmatprep.subr.mxu0 0.0
        %v302 = vand.u32 %v199, 4294901760
        %303 = vmatpush1.xpose.msra.mxu0 %v302
        %304 = vmatprep.subr.mxu0 0.0
        %v305 = vand.u32 %v200, 4294901760
        %306 = vmatpush1.xpose.msra.mxu0 %v305
        %307 = vmatprep.subr.mxu0 0.0
        %v308 = vand.u32 %v201, 4294901760
        %309 = vmatpush1.xpose.msra.mxu0 %v308
        %310 = vmatprep.subr.mxu0 0.0
        %v311 = vand.u32 %v202, 4294901760
        %312 = vmatpush1.xpose.msra.mxu0 %v311
        %313 = vmatprep.subr.mxu0 0.0
        %v314 = vand.u32 %v203, 4294901760
        %315 = vmatpush1.xpose.msra.mxu0 %v314
        %316 = vmatprep.subr.mxu0 0.0
        %v317 = vand.u32 %v204, 4294901760
        %318 = vmatpush1.xpose.msra.mxu0 %v317
        %319 = vmatprep.subr.mxu0 0.0
        %v320 = vand.u32 %v205, 4294901760
        %321 = vmatpush1.xpose.msra.mxu0 %v320
        %322 = vmatprep.subr.mxu0 0.0
        %v323 = vand.u32 %v206, 4294901760
        %324 = vmatpush1.xpose.msra.mxu0 %v323
        %325 = vmatprep.subr.mxu0 0.0
        %v326 = vand.u32 %v207, 4294901760
        %327 = vmatpush1.xpose.msra.mxu0 %v326
        %328 = vmatprep.subr.mxu0 0.0
        %v329 = vand.u32 %v208, 4294901760
        %330 = vmatpush1.xpose.msra.mxu0 %v329
        %331 = vmatprep.subr.mxu0 0.0
        %v332 = vand.u32 %v209, 4294901760
        %333 = vmatpush1.xpose.msra.mxu0 %v332
        %334 = vmatprep.subr.mxu0 0.0
        %v335 = vand.u32 %v210, 4294901760
        %336 = vmatpush1.xpose.msra.mxu0 %v335
        %337 = vmatprep.subr.mxu0 0.0
        %v338 = vand.u32 %v211, 4294901760
        %339 = vmatpush1.xpose.msra.mxu0 %v338
        %340 = vmatprep.subr.mxu0 0.0
        %v341 = vand.u32 %v212, 4294901760
        %342 = vmatpush1.xpose.msra.mxu0 %v341
        %343 = vmatprep.subr.mxu0 0.0
        %v344 = vand.u32 %v213, 4294901760
        %345 = vmatpush1.xpose.msra.mxu0 %v344
        %346 = vmatprep.subr.mxu0 0.0
        %v347 = vand.u32 %v214, 4294901760
        %348 = vmatpush1.xpose.msra.mxu0 %v347
        %349 = vmatprep.subr.mxu0 0.0
        %v350 = vand.u32 %v215, 4294901760
        %351 = vmatpush1.xpose.msra.mxu0 %v350
        %352 = vmatprep.subr.mxu0 0.0
        %v353 = vand.u32 %v216, 4294901760
        %354 = vmatpush1.xpose.msra.mxu0 %v353
        %355 = vmatprep.subr.mxu0 0.0
        %v356 = vand.u32 %v217, 4294901760
        %357 = vmatpush1.xpose.msra.mxu0 %v356
        %358 = vmatprep.subr.mxu0 0.0
        %v359 = vand.u32 %v218, 4294901760
        %360 = vmatpush1.xpose.msra.mxu0 %v359
        %361 = vmatprep.subr.mxu0 0.0
        %v362 = vand.u32 %v219, 4294901760
        %363 = vmatpush1.xpose.msra.mxu0 %v362
        %364 = vmatprep.subr.mxu0 0.0
        %v365 = vand.u32 %v220, 4294901760
        %366 = vmatpush1.xpose.msra.mxu0 %v365
        %367 = vmatprep.subr.mxu0 0.0
        %v368 = vand.u32 %v221, 4294901760
        %369 = vmatpush1.xpose.msra.mxu0 %v368
        %370 = vmatprep.subr.mxu0 0.0
        %v371 = vand.u32 %v222, 4294901760
        %372 = vmatpush1.xpose.msra.mxu0 %v371
        %373 = vmatprep.subr.mxu0 0.0
        %v374 = vand.u32 %v223, 4294901760
        %375 = vmatpush1.xpose.msra.mxu0 %v374
        %376 = vmatprep.subr.mxu0 0.0
        %v377 = vand.u32 %v224, 4294901760
        %378 = vmatpush1.xpose.msra.mxu0 %v377
        %379 = vmatprep.subr.mxu0 0.0
        %v380 = vand.u32 %v225, 4294901760
        %381 = vmatpush1.xpose.msra.mxu0 %v380
        %382 = vmatprep.subr.mxu0 0.0
        %v383 = vand.u32 %v226, 4294901760
        %384 = vmatpush1.xpose.msra.mxu0 %v383
        %385 = vmatprep.subr.mxu0 0.0
        %v386 = vand.u32 %v227, 4294901760
        %387 = vmatpush1.xpose.msra.mxu0 %v386
        %388 = vmatprep.mubr.f32.mxu0 0.0
        %v389 = vand.u32 %v260, 4294901760
        %v390 = vsub.f32 %v260, %v389
        %v391 = vand.u32 %v390, 4294901760
        %v392 = vsub.f32 %v390, %v391
        %v393 = vand.u32 %v392, 4294901760
        %394 = vmatmul.mubr.f32.gmra.mrb[0].mxu0 %v393
        %v395 = vpop.f32.mrb[0].mxu0
        %v396 = vadd.f32 0.0, %v395
        %v397 = vpop.f32.mrb[0].mxu0
        %v398 = vadd.f32 0.0, %v397
        %399 = vmatprep.mubr.f32.mxu0 0.0
        %v400 = vand.u32 %v261, 4294901760
        %v401 = vsub.f32 %v261, %v400
        %v402 = vand.u32 %v401, 4294901760
        %v403 = vsub.f32 %v401, %v402
        %v404 = vand.u32 %v403, 4294901760
        %405 = vmatmul.mubr.f32.gmra.mrb[0].mxu0 %v404
        %v406 = vpop.f32.mrb[0].mxu0
        %v407 = vadd.f32 0.0, %v406
        %v408 = vpop.f32.mrb[0].mxu0
        %v409 = vadd.f32 0.0, %v408
        %410 = vmatprep.mubr.f32.mxu0 0.0
        %v411 = vand.u32 %v262, 4294901760
        %v412 = vsub.f32 %v262, %v411
        %v413 = vand.u32 %v412, 4294901760
        %v414 = vsub.f32 %v412, %v413
        %v415 = vand.u32 %v414, 4294901760
        %416 = vmatmul.mubr.f32.gmra.mrb[0].mxu0 %v415
        %v417 = vpop.f32.mrb[0].mxu0
        %v418 = vadd.f32 0.0, %v417
        %v419 = vpop.f32.mrb[0].mxu0
        %v420 = vadd.f32 0.0, %v419
        %421 = vmatprep.mubr.f32.mxu0 0.0
        %v422 = vand.u32 %v263, 4294901760
        %v423 = vsub.f32 %v263, %v422
        %v424 = vand.u32 %v423, 4294901760
        %v425 = vsub.f32 %v423, %v424
        %v426 = vand.u32 %v425, 4294901760
        %427 = vmatmul.mubr.f32.gmra.mrb[0].mxu0 %v426
        %v428 = vpop.f32.mrb[0].mxu0
        %v429 = vadd.f32 0.0, %v428
        %v430 = vpop.f32.mrb[0].mxu0
        %v431 = vadd.f32 0.0, %v430
        %432 = vmatprep.mubr.f32.mxu0 0.0
        %v433 = vand.u32 %v264, 4294901760
        %v434 = vsub.f32 %v264, %v433
        %v435 = vand.u32 %v434, 4294901760
        %v436 = vsub.f32 %v434, %v435
        %v437 = vand.u32 %v436, 4294901760
        %438 = vmatmul.mubr.f32.gmra.mrb[0].mxu0 %v437
        %v439 = vpop.f32.mrb[0].mxu0
        %v440 = vadd.f32 0.0, %v439
        %v441 = vpop.f32.mrb[0].mxu0
        %v442 = vadd.f32 0.0, %v441
        %443 = vmatprep.mubr.f32.mxu0 0.0
        %v444 = vand.u32 %v265, 4294901760
        %v445 = vsub.f32 %v265, %v444
        %v446 = vand.u32 %v445, 4294901760
        %v447 = vsub.f32 %v445, %v446
        %v448 = vand.u32 %v447, 4294901760
        %449 = vmatmul.mubr.f32.gmra.mrb[0].mxu0 %v448
        %v450 = vpop.f32.mrb[0].mxu0
        %v451 = vadd.f32 0.0, %v450
        %v452 = vpop.f32.mrb[0].mxu0
        %v453 = vadd.f32 0.0, %v452
        %454 = vmatprep.mubr.f32.mxu0 0.0
        %v455 = vand.u32 %v266, 4294901760
        %v456 = vsub.f32 %v266, %v455
        %v457 = vand.u32 %v456, 4294901760
        %v458 = vsub.f32 %v456, %v457
        %v459 = vand.u32 %v458, 4294901760
        %460 = vmatmul.mubr.f32.gmra.mrb[0].mxu0 %v459
        %v461 = vpop.f32.mrb[0].mxu0
        %v462 = vadd.f32 0.0, %v461
        %v463 = vpop.f32.mrb[0].mxu0
        %v464 = vadd.f32 0.0, %v463
        %465 = vmatprep.mubr.f32.mxu0 0.0
        %v466 = vand.u32 %v267, 4294901760
        %v467 = vsub.f32 %v267, %v466
        %v468 = vand.u32 %v467, 4294901760
        %v469 = vsub.f32 %v467, %v468
        %v470 = vand.u32 %v469, 4294901760
        %471 = vmatmul.mubr.f32.gmra.mrb[0].mxu0 %v470
        %v472 = vpop.f32.mrb[0].mxu0
        %v473 = vadd.f32 0.0, %v472
        %v474 = vpop.f32.mrb[0].mxu0
        %v475 = vadd.f32 0.0, %v474
        %476 = vmatprep.mubr.f32.mxu0 0.0
        %v477 = vand.u32 %v268, 4294901760
        %v478 = vsub.f32 %v268, %v477
        %v479 = vand.u32 %v478, 4294901760
        %v480 = vsub.f32 %v478, %v479
        %v481 = vand.u32 %v480, 4294901760
        %482 = vmatmul.mubr.f32.gmra.mrb[0].mxu0 %v481
        %v483 = vpop.f32.mrb[0].mxu0
        %v484 = vadd.f32 0.0, %v483
        %v485 = vpop.f32.mrb[0].mxu0
        %v486 = vadd.f32 0.0, %v485
        %487 = vmatprep.mubr.f32.mxu0 0.0
        %v488 = vand.u32 %v269, 4294901760
        %v489 = vsub.f32 %v269, %v488
        %v490 = vand.u32 %v489, 4294901760
        %v491 = vsub.f32 %v489, %v490
        %v492 = vand.u32 %v491, 4294901760
        %493 = vmatmul.mubr.f32.gmra.mrb[0].mxu0 %v492
        %v494 = vpop.f32.mrb[0].mxu0
        %v495 = vadd.f32 0.0, %v494
        %v496 = vpop.f32.mrb[0].mxu0
        %v497 = vadd.f32 0.0, %v496
        %498 = vmatprep.mubr.f32.mxu0 0.0
        %v499 = vand.u32 %v270, 4294901760
        %v500 = vsub.f32 %v270, %v499
        %v501 = vand.u32 %v500, 4294901760
        %v502 = vsub.f32 %v500, %v501
        %v503 = vand.u32 %v502, 4294901760
        %504 = vmatmul.mubr.f32.gmra.mrb[0].mxu0 %v503
        %v505 = vpop.f32.mrb[0].mxu0
        %v506 = vadd.f32 0.0, %v505
        %v507 = vpop.f32.mrb[0].mxu0
        %v508 = vadd.f32 0.0, %v507
        %509 = vmatprep.mubr.f32.mxu0 0.0
        %v510 = vand.u32 %v271, 4294901760
        %v511 = vsub.f32 %v271, %v510
        %v512 = vand.u32 %v511, 4294901760
        %v513 = vsub.f32 %v511, %v512
        %v514 = vand.u32 %v513, 4294901760
        %515 = vmatmul.mubr.f32.gmra.mrb[0].mxu0 %v514
        %v516 = vpop.f32.mrb[0].mxu0
        %v517 = vadd.f32 0.0, %v516
        %v518 = vpop.f32.mrb[0].mxu0
        %v519 = vadd.f32 0.0, %v518
        %520 = vmatprep.mubr.f32.mxu0 0.0
        %v521 = vand.u32 %v272, 4294901760
        %v522 = vsub.f32 %v272, %v521
        %v523 = vand.u32 %v522, 4294901760
        %v524 = vsub.f32 %v522, %v523
        %v525 = vand.u32 %v524, 4294901760
        %526 = vmatmul.mubr.f32.gmra.mrb[0].mxu0 %v525
        %v527 = vpop.f32.mrb[0].mxu0
        %v528 = vadd.f32 0.0, %v527
        %v529 = vpop.f32.mrb[0].mxu0
        %v530 = vadd.f32 0.0, %v529
        %531 = vmatprep.mubr.f32.mxu0 0.0
        %v532 = vand.u32 %v273, 4294901760
        %v533 = vsub.f32 %v273, %v532
        %v534 = vand.u32 %v533, 4294901760
        %v535 = vsub.f32 %v533, %v534
        %v536 = vand.u32 %v535, 4294901760
        %537 = vmatmul.mubr.f32.gmra.mrb[0].mxu0 %v536
        %v538 = vpop.f32.mrb[0].mxu0
        %v539 = vadd.f32 0.0, %v538
        %v540 = vpop.f32.mrb[0].mxu0
        %v541 = vadd.f32 0.0, %v540
        %542 = vmatprep.mubr.f32.mxu0 0.0
        %v543 = vand.u32 %v274, 4294901760
        %v544 = vsub.f32 %v274, %v543
        %v545 = vand.u32 %v544, 4294901760
        %v546 = vsub.f32 %v544, %v545
        %v547 = vand.u32 %v546, 4294901760
        %548 = vmatmul.mubr.f32.gmra.mrb[0].mxu0 %v547
        %v549 = vpop.f32.mrb[0].mxu0
        %v550 = vadd.f32 0.0, %v549
        %v551 = vpop.f32.mrb[0].mxu0
        %v552 = vadd.f32 0.0, %v551
        %553 = vmatprep.mubr.f32.mxu0 0.0
        %v554 = vand.u32 %v275, 4294901760
        %v555 = vsub.f32 %v275, %v554
        %v556 = vand.u32 %v555, 4294901760
        %v557 = vsub.f32 %v555, %v556
        %v558 = vand.u32 %v557, 4294901760
        %559 = vmatmul.mubr.f32.gmra.mrb[0].mxu0 %v558
        %v560 = vpop.f32.mrb[0].mxu0
        %v561 = vadd.f32 0.0, %v560
        %v562 = vpop.f32.mrb[0].mxu0
        %v563 = vadd.f32 0.0, %v562
        %564 = vmatprep.mubr.f32.mxu0 0.0
        %v565 = vand.u32 %v276, 4294901760
        %v566 = vsub.f32 %v276, %v565
        %v567 = vand.u32 %v566, 4294901760
        %v568 = vsub.f32 %v566, %v567
        %v569 = vand.u32 %v568, 4294901760
        %570 = vmatmul.mubr.f32.gmra.mrb[0].mxu0 %v569
        %v571 = vpop.f32.mrb[0].mxu0
        %v572 = vadd.f32 0.0, %v571
        %v573 = vpop.f32.mrb[0].mxu0
        %v574 = vadd.f32 0.0, %v573
        %575 = vmatprep.mubr.f32.mxu0 0.0
        %v576 = vand.u32 %v277, 4294901760
        %v577 = vsub.f32 %v277, %v576
        %v578 = vand.u32 %v577, 4294901760
        %v579 = vsub.f32 %v577, %v578
        %v580 = vand.u32 %v579, 4294901760
        %581 = vmatmul.mubr.f32.gmra.mrb[0].mxu0 %v580
        %v582 = vpop.f32.mrb[0].mxu0
        %v583 = vadd.f32 0.0, %v582
        %v584 = vpop.f32.mrb[0].mxu0
        %v585 = vadd.f32 0.0, %v584
        %586 = vmatprep.mubr.f32.mxu0 0.0
        %v587 = vand.u32 %v278, 4294901760
        %v588 = vsub.f32 %v278, %v587
        %v589 = vand.u32 %v588, 4294901760
        %v590 = vsub.f32 %v588, %v589
        %v591 = vand.u32 %v590, 4294901760
        %592 = vmatmul.mubr.f32.gmra.mrb[0].mxu0 %v591
        %v593 = vpop.f32.mrb[0].mxu0
        %v594 = vadd.f32 0.0, %v593
        %v595 = vpop.f32.mrb[0].mxu0
        %v596 = vadd.f32 0.0, %v595
        %597 = vmatprep.mubr.f32.mxu0 0.0
        %v598 = vand.u32 %v279, 4294901760
        %v599 = vsub.f32 %v279, %v598
        %v600 = vand.u32 %v599, 4294901760
        %v601 = vsub.f32 %v599, %v600
        %v602 = vand.u32 %v601, 4294901760
        %603 = vmatmul.mubr.f32.gmra.mrb[0].mxu0 %v602
        %v604 = vpop.f32.mrb[0].mxu0
        %v605 = vadd.f32 0.0, %v604
        %v606 = vpop.f32.mrb[0].mxu0
        %v607 = vadd.f32 0.0, %v606
        %608 = vmatprep.mubr.f32.mxu0 0.0
        %v609 = vand.u32 %v280, 4294901760
        %v610 = vsub.f32 %v280, %v609
        %v611 = vand.u32 %v610, 4294901760
        %v612 = vsub.f32 %v610, %v611
        %v613 = vand.u32 %v612, 4294901760
        %614 = vmatmul.mubr.f32.gmra.mrb[0].mxu0 %v613
        %v615 = vpop.f32.mrb[0].mxu0
        %v616 = vadd.f32 0.0, %v615
        %v617 = vpop.f32.mrb[0].mxu0
        %v618 = vadd.f32 0.0, %v617
        %619 = vmatprep.mubr.f32.mxu0 0.0
        %v620 = vand.u32 %v281, 4294901760
        %v621 = vsub.f32 %v281, %v620
        %v622 = vand.u32 %v621, 4294901760
        %v623 = vsub.f32 %v621, %v622
        %v624 = vand.u32 %v623, 4294901760
        %625 = vmatmul.mubr.f32.gmra.mrb[0].mxu0 %v624
        %v626 = vpop.f32.mrb[0].mxu0
        %v627 = vadd.f32 0.0, %v626
        %v628 = vpop.f32.mrb[0].mxu0
        %v629 = vadd.f32 0.0, %v628
        %630 = vmatprep.mubr.f32.mxu0 0.0
        %v631 = vand.u32 %v282, 4294901760
        %v632 = vsub.f32 %v282, %v631
        %v633 = vand.u32 %v632, 4294901760
        %v634 = vsub.f32 %v632, %v633
        %v635 = vand.u32 %v634, 4294901760
        %636 = vmatmul.mubr.f32.gmra.mrb[0].mxu0 %v635
        %v637 = vpop.f32.mrb[0].mxu0
        %v638 = vadd.f32 0.0, %v637
        %v639 = vpop.f32.mrb[0].mxu0
        %v640 = vadd.f32 0.0, %v639
        %641 = vmatprep.mubr.f32.mxu0 0.0
        %v642 = vand.u32 %v283, 4294901760
        %v643 = vsub.f32 %v283, %v642
        %v644 = vand.u32 %v643, 4294901760
        %v645 = vsub.f32 %v643, %v644
        %v646 = vand.u32 %v645, 4294901760
        %647 = vmatmul.mubr.f32.gmra.mrb[0].mxu0 %v646
        %v648 = vpop.f32.mrb[0].mxu0
        %v649 = vadd.f32 0.0, %v648
        %v650 = vpop.f32.mrb[0].mxu0
        %v651 = vadd.f32 0.0, %v650
        %652 = vmatprep.mubr.f32.mxu0 0.0
        %v653 = vand.u32 %v284, 4294901760
        %v654 = vsub.f32 %v284, %v653
        %v655 = vand.u32 %v654, 4294901760
        %v656 = vsub.f32 %v654, %v655
        %v657 = vand.u32 %v656, 4294901760
        %658 = vmatmul.mubr.f32.gmra.mrb[0].mxu0 %v657
        %v659 = vpop.f32.mrb[0].mxu0
        %v660 = vadd.f32 0.0, %v659
        %v661 = vpop.f32.mrb[0].mxu0
        %v662 = vadd.f32 0.0, %v661
        %663 = vmatprep.mubr.f32.mxu0 0.0
        %v664 = vand.u32 %v285, 4294901760
        %v665 = vsub.f32 %v285, %v664
        %v666 = vand.u32 %v665, 4294901760
        %v667 = vsub.f32 %v665, %v666
        %v668 = vand.u32 %v667, 4294901760
        %669 = vmatmul.mubr.f32.gmra.mrb[0].mxu0 %v668
        %v670 = vpop.f32.mrb[0].mxu0
        %v671 = vadd.f32 0.0, %v670
        %v672 = vpop.f32.mrb[0].mxu0
        %v673 = vadd.f32 0.0, %v672
        %674 = vmatprep.mubr.f32.mxu0 0.0
        %v675 = vand.u32 %v286, 4294901760
        %v676 = vsub.f32 %v286, %v675
        %v677 = vand.u32 %v676, 4294901760
        %v678 = vsub.f32 %v676, %v677
        %v679 = vand.u32 %v678, 4294901760
        %680 = vmatmul.mubr.f32.gmra.mrb[0].mxu0 %v679
        %v681 = vpop.f32.mrb[0].mxu0
        %v682 = vadd.f32 0.0, %v681
        %v683 = vpop.f32.mrb[0].mxu0
        %v684 = vadd.f32 0.0, %v683
        %685 = vmatprep.mubr.f32.mxu0 0.0
        %v686 = vand.u32 %v287, 4294901760
        %v687 = vsub.f32 %v287, %v686
        %v688 = vand.u32 %v687, 4294901760
        %v689 = vsub.f32 %v687, %v688
        %v690 = vand.u32 %v689, 4294901760
        %691 = vmatmul.mubr.f32.gmra.mrb[0].mxu0 %v690
        %v692 = vpop.f32.mrb[0].mxu0
        %v693 = vadd.f32 0.0, %v692
        %v694 = vpop.f32.mrb[0].mxu0
        %v695 = vadd.f32 0.0, %v694
        %696 = vmatprep.mubr.f32.mxu0 0.0
        %v697 = vand.u32 %v288, 4294901760
        %v698 = vsub.f32 %v288, %v697
        %v699 = vand.u32 %v698, 4294901760
        %v700 = vsub.f32 %v698, %v699
        %v701 = vand.u32 %v700, 4294901760
        %702 = vmatmul.mubr.f32.gmra.mrb[0].mxu0 %v701
        %v703 = vpop.f32.mrb[0].mxu0
        %v704 = vadd.f32 0.0, %v703
        %v705 = vpop.f32.mrb[0].mxu0
        %v706 = vadd.f32 0.0, %v705
        %707 = vmatprep.mubr.f32.mxu0 0.0
        %v708 = vand.u32 %v289, 4294901760
        %v709 = vsub.f32 %v289, %v708
        %v710 = vand.u32 %v709, 4294901760
        %v711 = vsub.f32 %v709, %v710
        %v712 = vand.u32 %v711, 4294901760
        %713 = vmatmul.mubr.f32.gmra.mrb[0].mxu0 %v712
        %v714 = vpop.f32.mrb[0].mxu0
        %v715 = vadd.f32 0.0, %v714
        %v716 = vpop.f32.mrb[0].mxu0
        %v717 = vadd.f32 0.0, %v716
        %718 = vmatprep.mubr.f32.mxu0 0.0
        %v719 = vand.u32 %v290, 4294901760
        %v720 = vsub.f32 %v290, %v719
        %v721 = vand.u32 %v720, 4294901760
        %v722 = vsub.f32 %v720, %v721
        %v723 = vand.u32 %v722, 4294901760
        %724 = vmatmul.mubr.f32.gmra.mrb[0].mxu0 %v723
        %v725 = vpop.f32.mrb[0].mxu0
        %v726 = vadd.f32 0.0, %v725
        %v727 = vpop.f32.mrb[0].mxu0
        %v728 = vadd.f32 0.0, %v727
        %729 = vmatprep.mubr.f32.mxu0 0.0
        %v730 = vand.u32 %v291, 4294901760
        %v731 = vsub.f32 %v291, %v730
        %v732 = vand.u32 %v731, 4294901760
        %v733 = vsub.f32 %v731, %v732
        %v734 = vand.u32 %v733, 4294901760
        %735 = vmatmul.mubr.f32.gmra.mrb[0].mxu0 %v734
        %v736 = vpop.f32.mrb[0].mxu0
        %v737 = vadd.f32 0.0, %v736
        %v738 = vpop.f32.mrb[0].mxu0
        %v739 = vadd.f32 0.0, %v738
        %740 = vdwg.mxu0
        %741 = vmatprep.subr.mxu0 0.0
        %v742 = vand.u32 %v196, 4294901760
        %v743 = vsub.f32 %v196, %v742
        %v744 = vand.u32 %v743, 4294901760
        %v745 = vsub.f32 %v743, %v744
        %v746 = vand.u32 %v745, 4294901760
        %747 = vmatpush1.xpose.msra.mxu0 %v746
        %748 = vmatprep.subr.mxu0 0.0
        %v749 = vand.u32 %v197, 4294901760
        %v750 = vsub.f32 %v197, %v749
        %v751 = vand.u32 %v750, 4294901760
        %v752 = vsub.f32 %v750, %v751
        %v753 = vand.u32 %v752, 4294901760
        %754 = vmatpush1.xpose.msra.mxu0 %v753
        %755 = vmatprep.subr.mxu0 0.0
        %v756 = vand.u32 %v198, 4294901760
        %v757 = vsub.f32 %v198, %v756
        %v758 = vand.u32 %v757, 4294901760
        %v759 = vsub.f32 %v757, %v758
        %v760 = vand.u32 %v759, 4294901760
        %761 = vmatpush1.xpose.msra.mxu0 %v760
        %762 = vmatprep.subr.mxu0 0.0
        %v763 = vand.u32 %v199, 4294901760
        %v764 = vsub.f32 %v199, %v763
        %v765 = vand.u32 %v764, 4294901760
        %v766 = vsub.f32 %v764, %v765
        %v767 = vand.u32 %v766, 4294901760
        %768 = vmatpush1.xpose.msra.mxu0 %v767
        %769 = vmatprep.subr.mxu0 0.0
        %v770 = vand.u32 %v200, 4294901760
        %v771 = vsub.f32 %v200, %v770
        %v772 = vand.u32 %v771, 4294901760
        %v773 = vsub.f32 %v771, %v772
        %v774 = vand.u32 %v773, 4294901760
        %775 = vmatpush1.xpose.msra.mxu0 %v774
        %776 = vmatprep.subr.mxu0 0.0
        %v777 = vand.u32 %v201, 4294901760
        %v778 = vsub.f32 %v201, %v777
        %v779 = vand.u32 %v778, 4294901760
        %v780 = vsub.f32 %v778, %v779
        %v781 = vand.u32 %v780, 4294901760
        %782 = vmatpush1.xpose.msra.mxu0 %v781
        %783 = vmatprep.subr.mxu0 0.0
        %v784 = vand.u32 %v202, 4294901760
        %v785 = vsub.f32 %v202, %v784
        %v786 = vand.u32 %v785, 4294901760
        %v787 = vsub.f32 %v785, %v786
        %v788 = vand.u32 %v787, 4294901760
        %789 = vmatpush1.xpose.msra.mxu0 %v788
        %790 = vmatprep.subr.mxu0 0.0
        %v791 = vand.u32 %v203, 4294901760
        %v792 = vsub.f32 %v203, %v791
        %v793 = vand.u32 %v792, 4294901760
        %v794 = vsub.f32 %v792, %v793
        %v795 = vand.u32 %v794, 4294901760
        %796 = vmatpush1.xpose.msra.mxu0 %v795
        %797 = vmatprep.subr.mxu0 0.0
        %v798 = vand.u32 %v204, 4294901760
        %v799 = vsub.f32 %v204, %v798
        %v800 = vand.u32 %v799, 4294901760
        %v801 = vsub.f32 %v799, %v800
        %v802 = vand.u32 %v801, 4294901760
        %803 = vmatpush1.xpose.msra.mxu0 %v802
        %804 = vmatprep.subr.mxu0 0.0
        %v805 = vand.u32 %v205, 4294901760
        %v806 = vsub.f32 %v205, %v805
        %v807 = vand.u32 %v806, 4294901760
        %v808 = vsub.f32 %v806, %v807
        %v809 = vand.u32 %v808, 4294901760
        %810 = vmatpush1.xpose.msra.mxu0 %v809
        %811 = vmatprep.subr.mxu0 0.0
        %v812 = vand.u32 %v206, 4294901760
        %v813 = vsub.f32 %v206, %v812
        %v814 = vand.u32 %v813, 4294901760
        %v815 = vsub.f32 %v813, %v814
        %v816 = vand.u32 %v815, 4294901760
        %817 = vmatpush1.xpose.msra.mxu0 %v816
        %818 = vmatprep.subr.mxu0 0.0
        %v819 = vand.u32 %v207, 4294901760
        %v820 = vsub.f32 %v207, %v819
        %v821 = vand.u32 %v820, 4294901760
        %v822 = vsub.f32 %v820, %v821
        %v823 = vand.u32 %v822, 4294901760
        %824 = vmatpush1.xpose.msra.mxu0 %v823
        %825 = vmatprep.subr.mxu0 0.0
        %v826 = vand.u32 %v208, 4294901760
        %v827 = vsub.f32 %v208, %v826
        %v828 = vand.u32 %v827, 4294901760
        %v829 = vsub.f32 %v827, %v828
        %v830 = vand.u32 %v829, 4294901760
        %831 = vmatpush1.xpose.msra.mxu0 %v830
        %832 = vmatprep.subr.mxu0 0.0
        %v833 = vand.u32 %v209, 4294901760
        %v834 = vsub.f32 %v209, %v833
        %v835 = vand.u32 %v834, 4294901760
        %v836 = vsub.f32 %v834, %v835
        %v837 = vand.u32 %v836, 4294901760
        %838 = vmatpush1.xpose.msra.mxu0 %v837
        %839 = vmatprep.subr.mxu0 0.0
        %v840 = vand.u32 %v210, 4294901760
        %v841 = vsub.f32 %v210, %v840
        %v842 = vand.u32 %v841, 4294901760
        %v843 = vsub.f32 %v841, %v842
        %v844 = vand.u32 %v843, 4294901760
        %845 = vmatpush1.xpose.msra.mxu0 %v844
        %846 = vmatprep.subr.mxu0 0.0
        %v847 = vand.u32 %v211, 4294901760
        %v848 = vsub.f32 %v211, %v847
        %v849 = vand.u32 %v848, 4294901760
        %v850 = vsub.f32 %v848, %v849
        %v851 = vand.u32 %v850, 4294901760
        %852 = vmatpush1.xpose.msra.mxu0 %v851
        %853 = vmatprep.subr.mxu0 0.0
        %v854 = vand.u32 %v212, 4294901760
        %v855 = vsub.f32 %v212, %v854
        %v856 = vand.u32 %v855, 4294901760
        %v857 = vsub.f32 %v855, %v856
        %v858 = vand.u32 %v857, 4294901760
        %859 = vmatpush1.xpose.msra.mxu0 %v858
        %860 = vmatprep.subr.mxu0 0.0
        %v861 = vand.u32 %v213, 4294901760
        %v862 = vsub.f32 %v213, %v861
        %v863 = vand.u32 %v862, 4294901760
        %v864 = vsub.f32 %v862, %v863
        %v865 = vand.u32 %v864, 4294901760
        %866 = vmatpush1.xpose.msra.mxu0 %v865
        %867 = vmatprep.subr.mxu0 0.0
        %v868 = vand.u32 %v214, 4294901760
        %v869 = vsub.f32 %v214, %v868
        %v870 = vand.u32 %v869, 4294901760
        %v871 = vsub.f32 %v869, %v870
        %v872 = vand.u32 %v871, 4294901760
        %873 = vmatpush1.xpose.msra.mxu0 %v872
        %874 = vmatprep.subr.mxu0 0.0
        %v875 = vand.u32 %v215, 4294901760
        %v876 = vsub.f32 %v215, %v875
        %v877 = vand.u32 %v876, 4294901760
        %v878 = vsub.f32 %v876, %v877
        %v879 = vand.u32 %v878, 4294901760
        %880 = vmatpush1.xpose.msra.mxu0 %v879
        %881 = vmatprep.subr.mxu0 0.0
        %v882 = vand.u32 %v216, 4294901760
        %v883 = vsub.f32 %v216, %v882
        %v884 = vand.u32 %v883, 4294901760
        %v885 = vsub.f32 %v883, %v884
        %v886 = vand.u32 %v885, 4294901760
        %887 = vmatpush1.xpose.msra.mxu0 %v886
        %888 = vmatprep.subr.mxu0 0.0
        %v889 = vand.u32 %v217, 4294901760
        %v890 = vsub.f32 %v217, %v889
        %v891 = vand.u32 %v890, 4294901760
        %v892 = vsub.f32 %v890, %v891
        %v893 = vand.u32 %v892, 4294901760
        %894 = vmatpush1.xpose.msra.mxu0 %v893
        %895 = vmatprep.subr.mxu0 0.0
        %v896 = vand.u32 %v218, 4294901760
        %v897 = vsub.f32 %v218, %v896
        %v898 = vand.u32 %v897, 4294901760
        %v899 = vsub.f32 %v897, %v898
        %v900 = vand.u32 %v899, 4294901760
        %901 = vmatpush1.xpose.msra.mxu0 %v900
        %902 = vmatprep.subr.mxu0 0.0
        %v903 = vand.u32 %v219, 4294901760
        %v904 = vsub.f32 %v219, %v903
        %v905 = vand.u32 %v904, 4294901760
        %v906 = vsub.f32 %v904, %v905
        %v907 = vand.u32 %v906, 4294901760
        %908 = vmatpush1.xpose.msra.mxu0 %v907
        %909 = vmatprep.subr.mxu0 0.0
        %v910 = vand.u32 %v220, 4294901760
        %v911 = vsub.f32 %v220, %v910
        %v912 = vand.u32 %v911, 4294901760
        %v913 = vsub.f32 %v911, %v912
        %v914 = vand.u32 %v913, 4294901760
        %915 = vmatpush1.xpose.msra.mxu0 %v914
        %916 = vmatprep.subr.mxu0 0.0
        %v917 = vand.u32 %v221, 4294901760
        %v918 = vsub.f32 %v221, %v917
        %v919 = vand.u32 %v918, 4294901760
        %v920 = vsub.f32 %v918, %v919
        %v921 = vand.u32 %v920, 4294901760
        %922 = vmatpush1.xpose.msra.mxu0 %v921
        %923 = vmatprep.subr.mxu0 0.0
        %v924 = vand.u32 %v222, 4294901760
        %v925 = vsub.f32 %v222, %v924
        %v926 = vand.u32 %v925, 4294901760
        %v927 = vsub.f32 %v925, %v926
        %v928 = vand.u32 %v927, 4294901760
        %929 = vmatpush1.xpose.msra.mxu0 %v928
        %930 = vmatprep.subr.mxu0 0.0
        %v931 = vand.u32 %v223, 4294901760
        %v932 = vsub.f32 %v223, %v931
        %v933 = vand.u32 %v932, 4294901760
        %v934 = vsub.f32 %v932, %v933
        %v935 = vand.u32 %v934, 4294901760
        %936 = vmatpush1.xpose.msra.mxu0 %v935
        %937 = vmatprep.subr.mxu0 0.0
        %v938 = vand.u32 %v224, 4294901760
        %v939 = vsub.f32 %v224, %v938
        %v940 = vand.u32 %v939, 4294901760
        %v941 = vsub.f32 %v939, %v940
        %v942 = vand.u32 %v941, 4294901760
        %943 = vmatpush1.xpose.msra.mxu0 %v942
        %944 = vmatprep.subr.mxu0 0.0
        %v945 = vand.u32 %v225, 4294901760
        %v946 = vsub.f32 %v225, %v945
        %v947 = vand.u32 %v946, 4294901760
        %v948 = vsub.f32 %v946, %v947
        %v949 = vand.u32 %v948, 4294901760
        %950 = vmatpush1.xpose.msra.mxu0 %v949
        %951 = vmatprep.subr.mxu0 0.0
        %v952 = vand.u32 %v226, 4294901760
        %v953 = vsub.f32 %v226, %v952
        %v954 = vand.u32 %v953, 4294901760
        %v955 = vsub.f32 %v953, %v954
        %v956 = vand.u32 %v955, 4294901760
        %957 = vmatpush1.xpose.msra.mxu0 %v956
        %958 = vmatprep.subr.mxu0 0.0
        %v959 = vand.u32 %v227, 4294901760
        %v960 = vsub.f32 %v227, %v959
        %v961 = vand.u32 %v960, 4294901760
        %v962 = vsub.f32 %v960, %v961
        %v963 = vand.u32 %v962, 4294901760
        %964 = vmatpush1.xpose.msra.mxu0 %v963
        %965 = vmatprep.mubr.f32.mxu0 0.0
        %v966 = vand.u32 %v260, 4294901760
        %967 = vmatmul.mubr.f32.gmra.mrb[0].mxu0 %v966
        %v968 = vpop.f32.mrb[0].mxu0
        %v969 = vadd.f32 %v396, %v968
        %v970 = vpop.f32.mrb[0].mxu0
        %v971 = vadd.f32 %v398, %v970
        %972 = vmatprep.mubr.f32.mxu0 0.0
        %v973 = vand.u32 %v261, 4294901760
        %974 = vmatmul.mubr.f32.gmra.mrb[0].mxu0 %v973
        %v975 = vpop.f32.mrb[0].mxu0
        %v976 = vadd.f32 %v407, %v975
        %v977 = vpop.f32.mrb[0].mxu0
        %v978 = vadd.f32 %v409, %v977
        %979 = vmatprep.mubr.f32.mxu0 0.0
        %v980 = vand.u32 %v262, 4294901760
        %981 = vmatmul.mubr.f32.gmra.mrb[0].mxu0 %v980
        %v982 = vpop.f32.mrb[0].mxu0
        %v983 = vadd.f32 %v418, %v982
        %v984 = vpop.f32.mrb[0].mxu0
        %v985 = vadd.f32 %v420, %v984
        %986 = vmatprep.mubr.f32.mxu0 0.0
        %v987 = vand.u32 %v263, 4294901760
        %988 = vmatmul.mubr.f32.gmra.mrb[0].mxu0 %v987
        %v989 = vpop.f32.mrb[0].mxu0
        %v990 = vadd.f32 %v429, %v989
        %v991 = vpop.f32.mrb[0].mxu0
        %v992 = vadd.f32 %v431, %v991
        %993 = vmatprep.mubr.f32.mxu0 0.0
        %v994 = vand.u32 %v264, 4294901760
        %995 = vmatmul.mubr.f32.gmra.mrb[0].mxu0 %v994
        %v996 = vpop.f32.mrb[0].mxu0
        %v997 = vadd.f32 %v440, %v996
        %v998 = vpop.f32.mrb[0].mxu0
        %v999 = vadd.f32 %v442, %v998
        %1000 = vmatprep.mubr.f32.mxu0 0.0
        %v1001 = vand.u32 %v265, 4294901760
        %1002 = vmatmul.mubr.f32.gmra.mrb[0].mxu0 %v1001
        %v1003 = vpop.f32.mrb[0].mxu0
        %v1004 = vadd.f32 %v451, %v1003
        %v1005 = vpop.f32.mrb[0].mxu0
        %v1006 = vadd.f32 %v453, %v1005
        %1007 = vmatprep.mubr.f32.mxu0 0.0
        %v1008 = vand.u32 %v266, 4294901760
        %1009 = vmatmul.mubr.f32.gmra.mrb[0].mxu0 %v1008
        %v1010 = vpop.f32.mrb[0].mxu0
        %v1011 = vadd.f32 %v462, %v1010
        %v1012 = vpop.f32.mrb[0].mxu0
        %v1013 = vadd.f32 %v464, %v1012
        %1014 = vmatprep.mubr.f32.mxu0 0.0
        %v1015 = vand.u32 %v267, 4294901760
        %1016 = vmatmul.mubr.f32.gmra.mrb[0].mxu0 %v1015
        %v1017 = vpop.f32.mrb[0].mxu0
        %v1018 = vadd.f32 %v473, %v1017
        %v1019 = vpop.f32.mrb[0].mxu0
        %v1020 = vadd.f32 %v475, %v1019
        %1021 = vmatprep.mubr.f32.mxu0 0.0
        %v1022 = vand.u32 %v268, 4294901760
        %1023 = vmatmul.mubr.f32.gmra.mrb[0].mxu0 %v1022
        %v1024 = vpop.f32.mrb[0].mxu0
        %v1025 = vadd.f32 %v484, %v1024
        %v1026 = vpop.f32.mrb[0].mxu0
        %v1027 = vadd.f32 %v486, %v1026
        %1028 = vmatprep.mubr.f32.mxu0 0.0
        %v1029 = vand.u32 %v269, 4294901760
        %1030 = vmatmul.mubr.f32.gmra.mrb[0].mxu0 %v1029
        %v1031 = vpop.f32.mrb[0].mxu0
        %v1032 = vadd.f32 %v495, %v1031
        %v1033 = vpop.f32.mrb[0].mxu0
        %v1034 = vadd.f32 %v497, %v1033
        %1035 = vmatprep.mubr.f32.mxu0 0.0
        %v1036 = vand.u32 %v270, 4294901760
        %1037 = vmatmul.mubr.f32.gmra.mrb[0].mxu0 %v1036
        %v1038 = vpop.f32.mrb[0].mxu0
        %v1039 = vadd.f32 %v506, %v1038
        %v1040 = vpop.f32.mrb[0].mxu0
        %v1041 = vadd.f32 %v508, %v1040
        %1042 = vmatprep.mubr.f32.mxu0 0.0
        %v1043 = vand.u32 %v271, 4294901760
        %1044 = vmatmul.mubr.f32.gmra.mrb[0].mxu0 %v1043
        %v1045 = vpop.f32.mrb[0].mxu0
        %v1046 = vadd.f32 %v517, %v1045
        %v1047 = vpop.f32.mrb[0].mxu0
        %v1048 = vadd.f32 %v519, %v1047
        %1049 = vmatprep.mubr.f32.mxu0 0.0
        %v1050 = vand.u32 %v272, 4294901760
        %1051 = vmatmul.mubr.f32.gmra.mrb[0].mxu0 %v1050
        %v1052 = vpop.f32.mrb[0].mxu0
        %v1053 = vadd.f32 %v528, %v1052
        %v1054 = vpop.f32.mrb[0].mxu0
        %v1055 = vadd.f32 %v530, %v1054
        %1056 = vmatprep.mubr.f32.mxu0 0.0
        %v1057 = vand.u32 %v273, 4294901760
        %1058 = vmatmul.mubr.f32.gmra.mrb[0].mxu0 %v1057
        %v1059 = vpop.f32.mrb[0].mxu0
        %v1060 = vadd.f32 %v539, %v1059
        %v1061 = vpop.f32.mrb[0].mxu0
        %v1062 = vadd.f32 %v541, %v1061
        %1063 = vmatprep.mubr.f32.mxu0 0.0
        %v1064 = vand.u32 %v274, 4294901760
        %1065 = vmatmul.mubr.f32.gmra.mrb[0].mxu0 %v1064
        %v1066 = vpop.f32.mrb[0].mxu0
        %v1067 = vadd.f32 %v550, %v1066
        %v1068 = vpop.f32.mrb[0].mxu0
        %v1069 = vadd.f32 %v552, %v1068
        %1070 = vmatprep.mubr.f32.mxu0 0.0
        %v1071 = vand.u32 %v275, 4294901760
        %1072 = vmatmul.mubr.f32.gmra.mrb[0].mxu0 %v1071
        %v1073 = vpop.f32.mrb[0].mxu0
        %v1074 = vadd.f32 %v561, %v1073
        %v1075 = vpop.f32.mrb[0].mxu0
        %v1076 = vadd.f32 %v563, %v1075
        %1077 = vmatprep.mubr.f32.mxu0 0.0
        %v1078 = vand.u32 %v276, 4294901760
        %1079 = vmatmul.mubr.f32.gmra.mrb[0].mxu0 %v1078
        %v1080 = vpop.f32.mrb[0].mxu0
        %v1081 = vadd.f32 %v572, %v1080
        %v1082 = vpop.f32.mrb[0].mxu0
        %v1083 = vadd.f32 %v574, %v1082
        %1084 = vmatprep.mubr.f32.mxu0 0.0
        %v1085 = vand.u32 %v277, 4294901760
        %1086 = vmatmul.mubr.f32.gmra.mrb[0].mxu0 %v1085
        %v1087 = vpop.f32.mrb[0].mxu0
        %v1088 = vadd.f32 %v583, %v1087
        %v1089 = vpop.f32.mrb[0].mxu0
        %v1090 = vadd.f32 %v585, %v1089
        %1091 = vmatprep.mubr.f32.mxu0 0.0
        %v1092 = vand.u32 %v278, 4294901760
        %1093 = vmatmul.mubr.f32.gmra.mrb[0].mxu0 %v1092
        %v1094 = vpop.f32.mrb[0].mxu0
        %v1095 = vadd.f32 %v594, %v1094
        %v1096 = vpop.f32.mrb[0].mxu0
        %v1097 = vadd.f32 %v596, %v1096
        %1098 = vmatprep.mubr.f32.mxu0 0.0
        %v1099 = vand.u32 %v279, 4294901760
        %1100 = vmatmul.mubr.f32.gmra.mrb[0].mxu0 %v1099
        %v1101 = vpop.f32.mrb[0].mxu0
        %v1102 = vadd.f32 %v605, %v1101
        %v1103 = vpop.f32.mrb[0].mxu0
        %v1104 = vadd.f32 %v607, %v1103
        %1105 = vmatprep.mubr.f32.mxu0 0.0
        %v1106 = vand.u32 %v280, 4294901760
        %1107 = vmatmul.mubr.f32.gmra.mrb[0].mxu0 %v1106
        %v1108 = vpop.f32.mrb[0].mxu0
        %v1109 = vadd.f32 %v616, %v1108
        %v1110 = vpop.f32.mrb[0].mxu0
        %v1111 = vadd.f32 %v618, %v1110
        %1112 = vmatprep.mubr.f32.mxu0 0.0
        %v1113 = vand.u32 %v281, 4294901760
        %1114 = vmatmul.mubr.f32.gmra.mrb[0].mxu0 %v1113
        %v1115 = vpop.f32.mrb[0].mxu0
        %v1116 = vadd.f32 %v627, %v1115
        %v1117 = vpop.f32.mrb[0].mxu0
        %v1118 = vadd.f32 %v629, %v1117
        %1119 = vmatprep.mubr.f32.mxu0 0.0
        %v1120 = vand.u32 %v282, 4294901760
        %1121 = vmatmul.mubr.f32.gmra.mrb[0].mxu0 %v1120
        %v1122 = vpop.f32.mrb[0].mxu0
        %v1123 = vadd.f32 %v638, %v1122
        %v1124 = vpop.f32.mrb[0].mxu0
        %v1125 = vadd.f32 %v640, %v1124
        %1126 = vmatprep.mubr.f32.mxu0 0.0
        %v1127 = vand.u32 %v283, 4294901760
        %1128 = vmatmul.mubr.f32.gmra.mrb[0].mxu0 %v1127
        %v1129 = vpop.f32.mrb[0].mxu0
        %v1130 = vadd.f32 %v649, %v1129
        %v1131 = vpop.f32.mrb[0].mxu0
        %v1132 = vadd.f32 %v651, %v1131
        %1133 = vmatprep.mubr.f32.mxu0 0.0
        %v1134 = vand.u32 %v284, 4294901760
        %1135 = vmatmul.mubr.f32.gmra.mrb[0].mxu0 %v1134
        %v1136 = vpop.f32.mrb[0].mxu0
        %v1137 = vadd.f32 %v660, %v1136
        %v1138 = vpop.f32.mrb[0].mxu0
        %v1139 = vadd.f32 %v662, %v1138
        %1140 = vmatprep.mubr.f32.mxu0 0.0
        %v1141 = vand.u32 %v285, 4294901760
        %1142 = vmatmul.mubr.f32.gmra.mrb[0].mxu0 %v1141
        %v1143 = vpop.f32.mrb[0].mxu0
        %v1144 = vadd.f32 %v671, %v1143
        %v1145 = vpop.f32.mrb[0].mxu0
        %v1146 = vadd.f32 %v673, %v1145
        %1147 = vmatprep.mubr.f32.mxu0 0.0
        %v1148 = vand.u32 %v286, 4294901760
        %1149 = vmatmul.mubr.f32.gmra.mrb[0].mxu0 %v1148
        %v1150 = vpop.f32.mrb[0].mxu0
        %v1151 = vadd.f32 %v682, %v1150
        %v1152 = vpop.f32.mrb[0].mxu0
        %v1153 = vadd.f32 %v684, %v1152
        %1154 = vmatprep.mubr.f32.mxu0 0.0
        %v1155 = vand.u32 %v287, 4294901760
        %1156 = vmatmul.mubr.f32.gmra.mrb[0].mxu0 %v1155
        %v1157 = vpop.f32.mrb[0].mxu0
        %v1158 = vadd.f32 %v693, %v1157
        %v1159 = vpop.f32.mrb[0].mxu0
        %v1160 = vadd.f32 %v695, %v1159
        %1161 = vmatprep.mubr.f32.mxu0 0.0
        %v1162 = vand.u32 %v288, 4294901760
        %1163 = vmatmul.mubr.f32.gmra.mrb[0].mxu0 %v1162
        %v1164 = vpop.f32.mrb[0].mxu0
        %v1165 = vadd.f32 %v704, %v1164
        %v1166 = vpop.f32.mrb[0].mxu0
        %v1167 = vadd.f32 %v706, %v1166
        %1168 = vmatprep.mubr.f32.mxu0 0.0
        %v1169 = vand.u32 %v289, 4294901760
        %1170 = vmatmul.mubr.f32.gmra.mrb[0].mxu0 %v1169
        %v1171 = vpop.f32.mrb[0].mxu0
        %v1172 = vadd.f32 %v715, %v1171
        %v1173 = vpop.f32.mrb[0].mxu0
        %v1174 = vadd.f32 %v717, %v1173
        %1175 = vmatprep.mubr.f32.mxu0 0.0
        %v1176 = vand.u32 %v290, 4294901760
        %1177 = vmatmul.mubr.f32.gmra.mrb[0].mxu0 %v1176
        %v1178 = vpop.f32.mrb[0].mxu0
        %v1179 = vadd.f32 %v726, %v1178
        %v1180 = vpop.f32.mrb[0].mxu0
        %v1181 = vadd.f32 %v728, %v1180
        %1182 = vmatprep.mubr.f32.mxu0 0.0
        %v1183 = vand.u32 %v291, 4294901760
        %1184 = vmatmul.mubr.f32.gmra.mrb[0].mxu0 %v1183
        %v1185 = vpop.f32.mrb[0].mxu0
        %v1186 = vadd.f32 %v737, %v1185
        %v1187 = vpop.f32.mrb[0].mxu0
        %v1188 = vadd.f32 %v739, %v1187
        %1189 = vdwg.mxu0
        %1190 = vmatprep.subr.mxu0 0.0
        %v1191 = vand.u32 %v196, 4294901760
        %v1192 = vsub.f32 %v196, %v1191
        %1193 = vmatpush1.xpose.msra.mxu0 %v1192
        %1194 = vmatprep.subr.mxu0 0.0
        %v1195 = vand.u32 %v197, 4294901760
        %v1196 = vsub.f32 %v197, %v1195
        %1197 = vmatpush1.xpose.msra.mxu0 %v1196
        %1198 = vmatprep.subr.mxu0 0.0
        %v1199 = vand.u32 %v198, 4294901760
        %v1200 = vsub.f32 %v198, %v1199
        %1201 = vmatpush1.xpose.msra.mxu0 %v1200
        %1202 = vmatprep.subr.mxu0 0.0
        %v1203 = vand.u32 %v199, 4294901760
        %v1204 = vsub.f32 %v199, %v1203
        %1205 = vmatpush1.xpose.msra.mxu0 %v1204
        %1206 = vmatprep.subr.mxu0 0.0
        %v1207 = vand.u32 %v200, 4294901760
        %v1208 = vsub.f32 %v200, %v1207
        %1209 = vmatpush1.xpose.msra.mxu0 %v1208
        %1210 = vmatprep.subr.mxu0 0.0
        %v1211 = vand.u32 %v201, 4294901760
        %v1212 = vsub.f32 %v201, %v1211
        %1213 = vmatpush1.xpose.msra.mxu0 %v1212
        %1214 = vmatprep.subr.mxu0 0.0
        %v1215 = vand.u32 %v202, 4294901760
        %v1216 = vsub.f32 %v202, %v1215
        %1217 = vmatpush1.xpose.msra.mxu0 %v1216
        %1218 = vmatprep.subr.mxu0 0.0
        %v1219 = vand.u32 %v203, 4294901760
        %v1220 = vsub.f32 %v203, %v1219
        %1221 = vmatpush1.xpose.msra.mxu0 %v1220
        %1222 = vmatprep.subr.mxu0 0.0
        %v1223 = vand.u32 %v204, 4294901760
        %v1224 = vsub.f32 %v204, %v1223
        %1225 = vmatpush1.xpose.msra.mxu0 %v1224
        %1226 = vmatprep.subr.mxu0 0.0
        %v1227 = vand.u32 %v205, 4294901760
        %v1228 = vsub.f32 %v205, %v1227
        %1229 = vmatpush1.xpose.msra.mxu0 %v1228
        %1230 = vmatprep.subr.mxu0 0.0
        %v1231 = vand.u32 %v206, 4294901760
        %v1232 = vsub.f32 %v206, %v1231
        %1233 = vmatpush1.xpose.msra.mxu0 %v1232
        %1234 = vmatprep.subr.mxu0 0.0
        %v1235 = vand.u32 %v207, 4294901760
        %v1236 = vsub.f32 %v207, %v1235
        %1237 = vmatpush1.xpose.msra.mxu0 %v1236
        %1238 = vmatprep.subr.mxu0 0.0
        %v1239 = vand.u32 %v208, 4294901760
        %v1240 = vsub.f32 %v208, %v1239
        %1241 = vmatpush1.xpose.msra.mxu0 %v1240
        %1242 = vmatprep.subr.mxu0 0.0
        %v1243 = vand.u32 %v209, 4294901760
        %v1244 = vsub.f32 %v209, %v1243
        %1245 = vmatpush1.xpose.msra.mxu0 %v1244
        %1246 = vmatprep.subr.mxu0 0.0
        %v1247 = vand.u32 %v210, 4294901760
        %v1248 = vsub.f32 %v210, %v1247
        %1249 = vmatpush1.xpose.msra.mxu0 %v1248
        %1250 = vmatprep.subr.mxu0 0.0
        %v1251 = vand.u32 %v211, 4294901760
        %v1252 = vsub.f32 %v211, %v1251
        %1253 = vmatpush1.xpose.msra.mxu0 %v1252
        %1254 = vmatprep.subr.mxu0 0.0
        %v1255 = vand.u32 %v212, 4294901760
        %v1256 = vsub.f32 %v212, %v1255
        %1257 = vmatpush1.xpose.msra.mxu0 %v1256
        %1258 = vmatprep.subr.mxu0 0.0
        %v1259 = vand.u32 %v213, 4294901760
        %v1260 = vsub.f32 %v213, %v1259
        %1261 = vmatpush1.xpose.msra.mxu0 %v1260
        %1262 = vmatprep.subr.mxu0 0.0
        %v1263 = vand.u32 %v214, 4294901760
        %v1264 = vsub.f32 %v214, %v1263
        %1265 = vmatpush1.xpose.msra.mxu0 %v1264
        %1266 = vmatprep.subr.mxu0 0.0
        %v1267 = vand.u32 %v215, 4294901760
        %v1268 = vsub.f32 %v215, %v1267
        %1269 = vmatpush1.xpose.msra.mxu0 %v1268
        %1270 = vmatprep.subr.mxu0 0.0
        %v1271 = vand.u32 %v216, 4294901760
        %v1272 = vsub.f32 %v216, %v1271
        %1273 = vmatpush1.xpose.msra.mxu0 %v1272
        %1274 = vmatprep.subr.mxu0 0.0
        %v1275 = vand.u32 %v217, 4294901760
        %v1276 = vsub.f32 %v217, %v1275
        %1277 = vmatpush1.xpose.msra.mxu0 %v1276
        %1278 = vmatprep.subr.mxu0 0.0
        %v1279 = vand.u32 %v218, 4294901760
        %v1280 = vsub.f32 %v218, %v1279
        %1281 = vmatpush1.xpose.msra.mxu0 %v1280
        %1282 = vmatprep.subr.mxu0 0.0
        %v1283 = vand.u32 %v219, 4294901760
        %v1284 = vsub.f32 %v219, %v1283
        %1285 = vmatpush1.xpose.msra.mxu0 %v1284
        %1286 = vmatprep.subr.mxu0 0.0
        %v1287 = vand.u32 %v220, 4294901760
        %v1288 = vsub.f32 %v220, %v1287
        %1289 = vmatpush1.xpose.msra.mxu0 %v1288
        %1290 = vmatprep.subr.mxu0 0.0
        %v1291 = vand.u32 %v221, 4294901760
        %v1292 = vsub.f32 %v221, %v1291
        %1293 = vmatpush1.xpose.msra.mxu0 %v1292
        %1294 = vmatprep.subr.mxu0 0.0
        %v1295 = vand.u32 %v222, 4294901760
        %v1296 = vsub.f32 %v222, %v1295
        %1297 = vmatpush1.xpose.msra.mxu0 %v1296
        %1298 = vmatprep.subr.mxu0 0.0
        %v1299 = vand.u32 %v223, 4294901760
        %v1300 = vsub.f32 %v223, %v1299
        %1301 = vmatpush1.xpose.msra.mxu0 %v1300
        %1302 = vmatprep.subr.mxu0 0.0
        %v1303 = vand.u32 %v224, 4294901760
        %v1304 = vsub.f32 %v224, %v1303
        %1305 = vmatpush1.xpose.msra.mxu0 %v1304
        %1306 = vmatprep.subr.mxu0 0.0
        %v1307 = vand.u32 %v225, 4294901760
        %v1308 = vsub.f32 %v225, %v1307
        %1309 = vmatpush1.xpose.msra.mxu0 %v1308
        %1310 = vmatprep.subr.mxu0 0.0
        %v1311 = vand.u32 %v226, 4294901760
        %v1312 = vsub.f32 %v226, %v1311
        %1313 = vmatpush1.xpose.msra.mxu0 %v1312
        %1314 = vmatprep.subr.mxu0 0.0
        %v1315 = vand.u32 %v227, 4294901760
        %v1316 = vsub.f32 %v227, %v1315
        %1317 = vmatpush1.xpose.msra.mxu0 %v1316
        %1318 = vmatprep.mubr.f32.mxu0 0.0
        %v1319 = vand.u32 %v260, 4294901760
        %v1320 = vsub.f32 %v260, %v1319
        %1321 = vmatmul.mubr.f32.gmra.mrb[0].mxu0 %v1320
        %v1322 = vpop.f32.mrb[0].mxu0
        %v1323 = vadd.f32 %v969, %v1322
        %v1324 = vpop.f32.mrb[0].mxu0
        %v1325 = vadd.f32 %v971, %v1324
        %1326 = vmatprep.mubr.f32.mxu0 0.0
        %v1327 = vand.u32 %v261, 4294901760
        %v1328 = vsub.f32 %v261, %v1327
        %1329 = vmatmul.mubr.f32.gmra.mrb[0].mxu0 %v1328
        %v1330 = vpop.f32.mrb[0].mxu0
        %v1331 = vadd.f32 %v976, %v1330
        %v1332 = vpop.f32.mrb[0].mxu0
        %v1333 = vadd.f32 %v978, %v1332
        %1334 = vmatprep.mubr.f32.mxu0 0.0
        %v1335 = vand.u32 %v262, 4294901760
        %v1336 = vsub.f32 %v262, %v1335
        %1337 = vmatmul.mubr.f32.gmra.mrb[0].mxu0 %v1336
        %v1338 = vpop.f32.mrb[0].mxu0
        %v1339 = vadd.f32 %v983, %v1338
        %v1340 = vpop.f32.mrb[0].mxu0
        %v1341 = vadd.f32 %v985, %v1340
        %1342 = vmatprep.mubr.f32.mxu0 0.0
        %v1343 = vand.u32 %v263, 4294901760
        %v1344 = vsub.f32 %v263, %v1343
        %1345 = vmatmul.mubr.f32.gmra.mrb[0].mxu0 %v1344
        %v1346 = vpop.f32.mrb[0].mxu0
        %v1347 = vadd.f32 %v990, %v1346
        %v1348 = vpop.f32.mrb[0].mxu0
        %v1349 = vadd.f32 %v992, %v1348
        %1350 = vmatprep.mubr.f32.mxu0 0.0
        %v1351 = vand.u32 %v264, 4294901760
        %v1352 = vsub.f32 %v264, %v1351
        %1353 = vmatmul.mubr.f32.gmra.mrb[0].mxu0 %v1352
        %v1354 = vpop.f32.mrb[0].mxu0
        %v1355 = vadd.f32 %v997, %v1354
        %v1356 = vpop.f32.mrb[0].mxu0
        %v1357 = vadd.f32 %v999, %v1356
        %1358 = vmatprep.mubr.f32.mxu0 0.0
        %v1359 = vand.u32 %v265, 4294901760
        %v1360 = vsub.f32 %v265, %v1359
        %1361 = vmatmul.mubr.f32.gmra.mrb[0].mxu0 %v1360
        %v1362 = vpop.f32.mrb[0].mxu0
        %v1363 = vadd.f32 %v1004, %v1362
        %v1364 = vpop.f32.mrb[0].mxu0
        %v1365 = vadd.f32 %v1006, %v1364
        %1366 = vmatprep.mubr.f32.mxu0 0.0
        %v1367 = vand.u32 %v266, 4294901760
        %v1368 = vsub.f32 %v266, %v1367
        %1369 = vmatmul.mubr.f32.gmra.mrb[0].mxu0 %v1368
        %v1370 = vpop.f32.mrb[0].mxu0
        %v1371 = vadd.f32 %v1011, %v1370
        %v1372 = vpop.f32.mrb[0].mxu0
        %v1373 = vadd.f32 %v1013, %v1372
        %1374 = vmatprep.mubr.f32.mxu0 0.0
        %v1375 = vand.u32 %v267, 4294901760
        %v1376 = vsub.f32 %v267, %v1375
        %1377 = vmatmul.mubr.f32.gmra.mrb[0].mxu0 %v1376
        %v1378 = vpop.f32.mrb[0].mxu0
        %v1379 = vadd.f32 %v1018, %v1378
        %v1380 = vpop.f32.mrb[0].mxu0
        %v1381 = vadd.f32 %v1020, %v1380
        %1382 = vmatprep.mubr.f32.mxu0 0.0
        %v1383 = vand.u32 %v268, 4294901760
        %v1384 = vsub.f32 %v268, %v1383
        %1385 = vmatmul.mubr.f32.gmra.mrb[0].mxu0 %v1384
        %v1386 = vpop.f32.mrb[0].mxu0
        %v1387 = vadd.f32 %v1025, %v1386
        %v1388 = vpop.f32.mrb[0].mxu0
        %v1389 = vadd.f32 %v1027, %v1388
        %1390 = vmatprep.mubr.f32.mxu0 0.0
        %v1391 = vand.u32 %v269, 4294901760
        %v1392 = vsub.f32 %v269, %v1391
        %1393 = vmatmul.mubr.f32.gmra.mrb[0].mxu0 %v1392
        %v1394 = vpop.f32.mrb[0].mxu0
        %v1395 = vadd.f32 %v1032, %v1394
        %v1396 = vpop.f32.mrb[0].mxu0
        %v1397 = vadd.f32 %v1034, %v1396
        %1398 = vmatprep.mubr.f32.mxu0 0.0
        %v1399 = vand.u32 %v270, 4294901760
        %v1400 = vsub.f32 %v270, %v1399
        %1401 = vmatmul.mubr.f32.gmra.mrb[0].mxu0 %v1400
        %v1402 = vpop.f32.mrb[0].mxu0
        %v1403 = vadd.f32 %v1039, %v1402
        %v1404 = vpop.f32.mrb[0].mxu0
        %v1405 = vadd.f32 %v1041, %v1404
        %1406 = vmatprep.mubr.f32.mxu0 0.0
        %v1407 = vand.u32 %v271, 4294901760
        %v1408 = vsub.f32 %v271, %v1407
        %1409 = vmatmul.mubr.f32.gmra.mrb[0].mxu0 %v1408
        %v1410 = vpop.f32.mrb[0].mxu0
        %v1411 = vadd.f32 %v1046, %v1410
        %v1412 = vpop.f32.mrb[0].mxu0
        %v1413 = vadd.f32 %v1048, %v1412
        %1414 = vmatprep.mubr.f32.mxu0 0.0
        %v1415 = vand.u32 %v272, 4294901760
        %v1416 = vsub.f32 %v272, %v1415
        %1417 = vmatmul.mubr.f32.gmra.mrb[0].mxu0 %v1416
        %v1418 = vpop.f32.mrb[0].mxu0
        %v1419 = vadd.f32 %v1053, %v1418
        %v1420 = vpop.f32.mrb[0].mxu0
        %v1421 = vadd.f32 %v1055, %v1420
        %1422 = vmatprep.mubr.f32.mxu0 0.0
        %v1423 = vand.u32 %v273, 4294901760
        %v1424 = vsub.f32 %v273, %v1423
        %1425 = vmatmul.mubr.f32.gmra.mrb[0].mxu0 %v1424
        %v1426 = vpop.f32.mrb[0].mxu0
        %v1427 = vadd.f32 %v1060, %v1426
        %v1428 = vpop.f32.mrb[0].mxu0
        %v1429 = vadd.f32 %v1062, %v1428
        %1430 = vmatprep.mubr.f32.mxu0 0.0
        %v1431 = vand.u32 %v274, 4294901760
        %v1432 = vsub.f32 %v274, %v1431
        %1433 = vmatmul.mubr.f32.gmra.mrb[0].mxu0 %v1432
        %v1434 = vpop.f32.mrb[0].mxu0
        %v1435 = vadd.f32 %v1067, %v1434
        %v1436 = vpop.f32.mrb[0].mxu0
        %v1437 = vadd.f32 %v1069, %v1436
        %1438 = vmatprep.mubr.f32.mxu0 0.0
        %v1439 = vand.u32 %v275, 4294901760
        %v1440 = vsub.f32 %v275, %v1439
        %1441 = vmatmul.mubr.f32.gmra.mrb[0].mxu0 %v1440
        %v1442 = vpop.f32.mrb[0].mxu0
        %v1443 = vadd.f32 %v1074, %v1442
        %v1444 = vpop.f32.mrb[0].mxu0
        %v1445 = vadd.f32 %v1076, %v1444
        %1446 = vmatprep.mubr.f32.mxu0 0.0
        %v1447 = vand.u32 %v276, 4294901760
        %v1448 = vsub.f32 %v276, %v1447
        %1449 = vmatmul.mubr.f32.gmra.mrb[0].mxu0 %v1448
        %v1450 = vpop.f32.mrb[0].mxu0
        %v1451 = vadd.f32 %v1081, %v1450
        %v1452 = vpop.f32.mrb[0].mxu0
        %v1453 = vadd.f32 %v1083, %v1452
        %1454 = vmatprep.mubr.f32.mxu0 0.0
        %v1455 = vand.u32 %v277, 4294901760
        %v1456 = vsub.f32 %v277, %v1455
        %1457 = vmatmul.mubr.f32.gmra.mrb[0].mxu0 %v1456
        %v1458 = vpop.f32.mrb[0].mxu0
        %v1459 = vadd.f32 %v1088, %v1458
        %v1460 = vpop.f32.mrb[0].mxu0
        %v1461 = vadd.f32 %v1090, %v1460
        %1462 = vmatprep.mubr.f32.mxu0 0.0
        %v1463 = vand.u32 %v278, 4294901760
        %v1464 = vsub.f32 %v278, %v1463
        %1465 = vmatmul.mubr.f32.gmra.mrb[0].mxu0 %v1464
        %v1466 = vpop.f32.mrb[0].mxu0
        %v1467 = vadd.f32 %v1095, %v1466
        %v1468 = vpop.f32.mrb[0].mxu0
        %v1469 = vadd.f32 %v1097, %v1468
        %1470 = vmatprep.mubr.f32.mxu0 0.0
        %v1471 = vand.u32 %v279, 4294901760
        %v1472 = vsub.f32 %v279, %v1471
        %1473 = vmatmul.mubr.f32.gmra.mrb[0].mxu0 %v1472
        %v1474 = vpop.f32.mrb[0].mxu0
        %v1475 = vadd.f32 %v1102, %v1474
        %v1476 = vpop.f32.mrb[0].mxu0
        %v1477 = vadd.f32 %v1104, %v1476
        %1478 = vmatprep.mubr.f32.mxu0 0.0
        %v1479 = vand.u32 %v280, 4294901760
        %v1480 = vsub.f32 %v280, %v1479
        %1481 = vmatmul.mubr.f32.gmra.mrb[0].mxu0 %v1480
        %v1482 = vpop.f32.mrb[0].mxu0
        %v1483 = vadd.f32 %v1109, %v1482
        %v1484 = vpop.f32.mrb[0].mxu0
        %v1485 = vadd.f32 %v1111, %v1484
        %1486 = vmatprep.mubr.f32.mxu0 0.0
        %v1487 = vand.u32 %v281, 4294901760
        %v1488 = vsub.f32 %v281, %v1487
        %1489 = vmatmul.mubr.f32.gmra.mrb[0].mxu0 %v1488
        %v1490 = vpop.f32.mrb[0].mxu0
        %v1491 = vadd.f32 %v1116, %v1490
        %v1492 = vpop.f32.mrb[0].mxu0
        %v1493 = vadd.f32 %v1118, %v1492
        %1494 = vmatprep.mubr.f32.mxu0 0.0
        %v1495 = vand.u32 %v282, 4294901760
        %v1496 = vsub.f32 %v282, %v1495
        %1497 = vmatmul.mubr.f32.gmra.mrb[0].mxu0 %v1496
        %v1498 = vpop.f32.mrb[0].mxu0
        %v1499 = vadd.f32 %v1123, %v1498
        %v1500 = vpop.f32.mrb[0].mxu0
        %v1501 = vadd.f32 %v1125, %v1500
        %1502 = vmatprep.mubr.f32.mxu0 0.0
        %v1503 = vand.u32 %v283, 4294901760
        %v1504 = vsub.f32 %v283, %v1503
        %1505 = vmatmul.mubr.f32.gmra.mrb[0].mxu0 %v1504
        %v1506 = vpop.f32.mrb[0].mxu0
        %v1507 = vadd.f32 %v1130, %v1506
        %v1508 = vpop.f32.mrb[0].mxu0
        %v1509 = vadd.f32 %v1132, %v1508
        %1510 = vmatprep.mubr.f32.mxu0 0.0
        %v1511 = vand.u32 %v284, 4294901760
        %v1512 = vsub.f32 %v284, %v1511
        %1513 = vmatmul.mubr.f32.gmra.mrb[0].mxu0 %v1512
        %v1514 = vpop.f32.mrb[0].mxu0
        %v1515 = vadd.f32 %v1137, %v1514
        %v1516 = vpop.f32.mrb[0].mxu0
        %v1517 = vadd.f32 %v1139, %v1516
        %1518 = vmatprep.mubr.f32.mxu0 0.0
        %v1519 = vand.u32 %v285, 4294901760
        %v1520 = vsub.f32 %v285, %v1519
        %1521 = vmatmul.mubr.f32.gmra.mrb[0].mxu0 %v1520
        %v1522 = vpop.f32.mrb[0].mxu0
        %v1523 = vadd.f32 %v1144, %v1522
        %v1524 = vpop.f32.mrb[0].mxu0
        %v1525 = vadd.f32 %v1146, %v1524
        %1526 = vmatprep.mubr.f32.mxu0 0.0
        %v1527 = vand.u32 %v286, 4294901760
        %v1528 = vsub.f32 %v286, %v1527
        %1529 = vmatmul.mubr.f32.gmra.mrb[0].mxu0 %v1528
        %v1530 = vpop.f32.mrb[0].mxu0
        %v1531 = vadd.f32 %v1151, %v1530
        %v1532 = vpop.f32.mrb[0].mxu0
        %v1533 = vadd.f32 %v1153, %v1532
        %1534 = vmatprep.mubr.f32.mxu0 0.0
        %v1535 = vand.u32 %v287, 4294901760
        %v1536 = vsub.f32 %v287, %v1535
        %1537 = vmatmul.mubr.f32.gmra.mrb[0].mxu0 %v1536
        %v1538 = vpop.f32.mrb[0].mxu0
        %v1539 = vadd.f32 %v1158, %v1538
        %v1540 = vpop.f32.mrb[0].mxu0
        %v1541 = vadd.f32 %v1160, %v1540
        %1542 = vmatprep.mubr.f32.mxu0 0.0
        %v1543 = vand.u32 %v288, 4294901760
        %v1544 = vsub.f32 %v288, %v1543
        %1545 = vmatmul.mubr.f32.gmra.mrb[0].mxu0 %v1544
        %v1546 = vpop.f32.mrb[0].mxu0
        %v1547 = vadd.f32 %v1165, %v1546
        %v1548 = vpop.f32.mrb[0].mxu0
        %v1549 = vadd.f32 %v1167, %v1548
        %1550 = vmatprep.mubr.f32.mxu0 0.0
        %v1551 = vand.u32 %v289, 4294901760
        %v1552 = vsub.f32 %v289, %v1551
        %1553 = vmatmul.mubr.f32.gmra.mrb[0].mxu0 %v1552
        %v1554 = vpop.f32.mrb[0].mxu0
        %v1555 = vadd.f32 %v1172, %v1554
        %v1556 = vpop.f32.mrb[0].mxu0
        %v1557 = vadd.f32 %v1174, %v1556
        %1558 = vmatprep.mubr.f32.mxu0 0.0
        %v1559 = vand.u32 %v290, 4294901760
        %v1560 = vsub.f32 %v290, %v1559
        %1561 = vmatmul.mubr.f32.gmra.mrb[0].mxu0 %v1560
        %v1562 = vpop.f32.mrb[0].mxu0
        %v1563 = vadd.f32 %v1179, %v1562
        %v1564 = vpop.f32.mrb[0].mxu0
        %v1565 = vadd.f32 %v1181, %v1564
        %1566 = vmatprep.mubr.f32.mxu0 0.0
        %v1567 = vand.u32 %v291, 4294901760
        %v1568 = vsub.f32 %v291, %v1567
        %1569 = vmatmul.mubr.f32.gmra.mrb[0].mxu0 %v1568
        %v1570 = vpop.f32.mrb[0].mxu0
        %v1571 = vadd.f32 %v1186, %v1570
        %v1572 = vpop.f32.mrb[0].mxu0
        %v1573 = vadd.f32 %v1188, %v1572
        %1574 = vdwg.mxu0
        %1575 = vmatprep.subr.mxu0 0.0
        %v1576 = vand.u32 %v196, 4294901760
        %1577 = vmatpush1.xpose.msra.mxu0 %v1576
        %1578 = vmatprep.subr.mxu0 0.0
        %v1579 = vand.u32 %v197, 4294901760
        %1580 = vmatpush1.xpose.msra.mxu0 %v1579
        %1581 = vmatprep.subr.mxu0 0.0
        %v1582 = vand.u32 %v198, 4294901760
        %1583 = vmatpush1.xpose.msra.mxu0 %v1582
        %1584 = vmatprep.subr.mxu0 0.0
        %v1585 = vand.u32 %v199, 4294901760
        %1586 = vmatpush1.xpose.msra.mxu0 %v1585
        %1587 = vmatprep.subr.mxu0 0.0
        %v1588 = vand.u32 %v200, 4294901760
        %1589 = vmatpush1.xpose.msra.mxu0 %v1588
        %1590 = vmatprep.subr.mxu0 0.0
        %v1591 = vand.u32 %v201, 4294901760
        %1592 = vmatpush1.xpose.msra.mxu0 %v1591
        %1593 = vmatprep.subr.mxu0 0.0
        %v1594 = vand.u32 %v202, 4294901760
        %1595 = vmatpush1.xpose.msra.mxu0 %v1594
        %1596 = vmatprep.subr.mxu0 0.0
        %v1597 = vand.u32 %v203, 4294901760
        %1598 = vmatpush1.xpose.msra.mxu0 %v1597
        %1599 = vmatprep.subr.mxu0 0.0
        %v1600 = vand.u32 %v204, 4294901760
        %1601 = vmatpush1.xpose.msra.mxu0 %v1600
        %1602 = vmatprep.subr.mxu0 0.0
        %v1603 = vand.u32 %v205, 4294901760
        %1604 = vmatpush1.xpose.msra.mxu0 %v1603
        %1605 = vmatprep.subr.mxu0 0.0
        %v1606 = vand.u32 %v206, 4294901760
        %1607 = vmatpush1.xpose.msra.mxu0 %v1606
        %1608 = vmatprep.subr.mxu0 0.0
        %v1609 = vand.u32 %v207, 4294901760
        %1610 = vmatpush1.xpose.msra.mxu0 %v1609
        %1611 = vmatprep.subr.mxu0 0.0
        %v1612 = vand.u32 %v208, 4294901760
        %1613 = vmatpush1.xpose.msra.mxu0 %v1612
        %1614 = vmatprep.subr.mxu0 0.0
        %v1615 = vand.u32 %v209, 4294901760
        %1616 = vmatpush1.xpose.msra.mxu0 %v1615
        %1617 = vmatprep.subr.mxu0 0.0
        %v1618 = vand.u32 %v210, 4294901760
        %1619 = vmatpush1.xpose.msra.mxu0 %v1618
        %1620 = vmatprep.subr.mxu0 0.0
        %v1621 = vand.u32 %v211, 4294901760
        %1622 = vmatpush1.xpose.msra.mxu0 %v1621
        %1623 = vmatprep.subr.mxu0 0.0
        %v1624 = vand.u32 %v212, 4294901760
        %1625 = vmatpush1.xpose.msra.mxu0 %v1624
        %1626 = vmatprep.subr.mxu0 0.0
        %v1627 = vand.u32 %v213, 4294901760
        %1628 = vmatpush1.xpose.msra.mxu0 %v1627
        %1629 = vmatprep.subr.mxu0 0.0
        %v1630 = vand.u32 %v214, 4294901760
        %1631 = vmatpush1.xpose.msra.mxu0 %v1630
        %1632 = vmatprep.subr.mxu0 0.0
        %v1633 = vand.u32 %v215, 4294901760
        %1634 = vmatpush1.xpose.msra.mxu0 %v1633
        %1635 = vmatprep.subr.mxu0 0.0
        %v1636 = vand.u32 %v216, 4294901760
        %1637 = vmatpush1.xpose.msra.mxu0 %v1636
        %1638 = vmatprep.subr.mxu0 0.0
        %v1639 = vand.u32 %v217, 4294901760
        %1640 = vmatpush1.xpose.msra.mxu0 %v1639
        %1641 = vmatprep.subr.mxu0 0.0
        %v1642 = vand.u32 %v218, 4294901760
        %1643 = vmatpush1.xpose.msra.mxu0 %v1642
        %1644 = vmatprep.subr.mxu0 0.0
        %v1645 = vand.u32 %v219, 4294901760
        %1646 = vmatpush1.xpose.msra.mxu0 %v1645
        %1647 = vmatprep.subr.mxu0 0.0
        %v1648 = vand.u32 %v220, 4294901760
        %1649 = vmatpush1.xpose.msra.mxu0 %v1648
        %1650 = vmatprep.subr.mxu0 0.0
        %v1651 = vand.u32 %v221, 4294901760
        %1652 = vmatpush1.xpose.msra.mxu0 %v1651
        %1653 = vmatprep.subr.mxu0 0.0
        %v1654 = vand.u32 %v222, 4294901760
        %1655 = vmatpush1.xpose.msra.mxu0 %v1654
        %1656 = vmatprep.subr.mxu0 0.0
        %v1657 = vand.u32 %v223, 4294901760
        %1658 = vmatpush1.xpose.msra.mxu0 %v1657
        %1659 = vmatprep.subr.mxu0 0.0
        %v1660 = vand.u32 %v224, 4294901760
        %1661 = vmatpush1.xpose.msra.mxu0 %v1660
        %1662 = vmatprep.subr.mxu0 0.0
        %v1663 = vand.u32 %v225, 4294901760
        %1664 = vmatpush1.xpose.msra.mxu0 %v1663
        %1665 = vmatprep.subr.mxu0 0.0
        %v1666 = vand.u32 %v226, 4294901760
        %1667 = vmatpush1.xpose.msra.mxu0 %v1666
        %1668 = vmatprep.subr.mxu0 0.0
        %v1669 = vand.u32 %v227, 4294901760
        %1670 = vmatpush1.xpose.msra.mxu0 %v1669
        %1671 = vmatprep.mubr.f32.mxu0 0.0
        %v1672 = vand.u32 %v260, 4294901760
        %v1673 = vsub.f32 %v260, %v1672
        %v1674 = vand.u32 %v1673, 4294901760
        %1675 = vmatmul.mubr.f32.gmra.mrb[0].mxu0 %v1674
        %v1676 = vpop.f32.mrb[0].mxu0
        %v1677 = vadd.f32 %v1323, %v1676
        %v1678 = vpop.f32.mrb[0].mxu0
        %v1679 = vadd.f32 %v1325, %v1678
        %1680 = vmatprep.mubr.f32.mxu0 0.0
        %v1681 = vand.u32 %v261, 4294901760
        %v1682 = vsub.f32 %v261, %v1681
        %v1683 = vand.u32 %v1682, 4294901760
        %1684 = vmatmul.mubr.f32.gmra.mrb[0].mxu0 %v1683
        %v1685 = vpop.f32.mrb[0].mxu0
        %v1686 = vadd.f32 %v1331, %v1685
        %v1687 = vpop.f32.mrb[0].mxu0
        %v1688 = vadd.f32 %v1333, %v1687
        %1689 = vmatprep.mubr.f32.mxu0 0.0
        %v1690 = vand.u32 %v262, 4294901760
        %v1691 = vsub.f32 %v262, %v1690
        %v1692 = vand.u32 %v1691, 4294901760
        %1693 = vmatmul.mubr.f32.gmra.mrb[0].mxu0 %v1692
        %v1694 = vpop.f32.mrb[0].mxu0
        %v1695 = vadd.f32 %v1339, %v1694
        %v1696 = vpop.f32.mrb[0].mxu0
        %v1697 = vadd.f32 %v1341, %v1696
        %1698 = vmatprep.mubr.f32.mxu0 0.0
        %v1699 = vand.u32 %v263, 4294901760
        %v1700 = vsub.f32 %v263, %v1699
        %v1701 = vand.u32 %v1700, 4294901760
        %1702 = vmatmul.mubr.f32.gmra.mrb[0].mxu0 %v1701
        %v1703 = vpop.f32.mrb[0].mxu0
        %v1704 = vadd.f32 %v1347, %v1703
        %v1705 = vpop.f32.mrb[0].mxu0
        %v1706 = vadd.f32 %v1349, %v1705
        %1707 = vmatprep.mubr.f32.mxu0 0.0
        %v1708 = vand.u32 %v264, 4294901760
        %v1709 = vsub.f32 %v264, %v1708
        %v1710 = vand.u32 %v1709, 4294901760
        %1711 = vmatmul.mubr.f32.gmra.mrb[0].mxu0 %v1710
        %v1712 = vpop.f32.mrb[0].mxu0
        %v1713 = vadd.f32 %v1355, %v1712
        %v1714 = vpop.f32.mrb[0].mxu0
        %v1715 = vadd.f32 %v1357, %v1714
        %1716 = vmatprep.mubr.f32.mxu0 0.0
        %v1717 = vand.u32 %v265, 4294901760
        %v1718 = vsub.f32 %v265, %v1717
        %v1719 = vand.u32 %v1718, 4294901760
        %1720 = vmatmul.mubr.f32.gmra.mrb[0].mxu0 %v1719
        %v1721 = vpop.f32.mrb[0].mxu0
        %v1722 = vadd.f32 %v1363, %v1721
        %v1723 = vpop.f32.mrb[0].mxu0
        %v1724 = vadd.f32 %v1365, %v1723
        %1725 = vmatprep.mubr.f32.mxu0 0.0
        %v1726 = vand.u32 %v266, 4294901760
        %v1727 = vsub.f32 %v266, %v1726
        %v1728 = vand.u32 %v1727, 4294901760
        %1729 = vmatmul.mubr.f32.gmra.mrb[0].mxu0 %v1728
        %v1730 = vpop.f32.mrb[0].mxu0
        %v1731 = vadd.f32 %v1371, %v1730
        %v1732 = vpop.f32.mrb[0].mxu0
        %v1733 = vadd.f32 %v1373, %v1732
        %1734 = vmatprep.mubr.f32.mxu0 0.0
        %v1735 = vand.u32 %v267, 4294901760
        %v1736 = vsub.f32 %v267, %v1735
        %v1737 = vand.u32 %v1736, 4294901760
        %1738 = vmatmul.mubr.f32.gmra.mrb[0].mxu0 %v1737
        %v1739 = vpop.f32.mrb[0].mxu0
        %v1740 = vadd.f32 %v1379, %v1739
        %v1741 = vpop.f32.mrb[0].mxu0
        %v1742 = vadd.f32 %v1381, %v1741
        %1743 = vmatprep.mubr.f32.mxu0 0.0
        %v1744 = vand.u32 %v268, 4294901760
        %v1745 = vsub.f32 %v268, %v1744
        %v1746 = vand.u32 %v1745, 4294901760
        %1747 = vmatmul.mubr.f32.gmra.mrb[0].mxu0 %v1746
        %v1748 = vpop.f32.mrb[0].mxu0
        %v1749 = vadd.f32 %v1387, %v1748
        %v1750 = vpop.f32.mrb[0].mxu0
        %v1751 = vadd.f32 %v1389, %v1750
        %1752 = vmatprep.mubr.f32.mxu0 0.0
        %v1753 = vand.u32 %v269, 4294901760
        %v1754 = vsub.f32 %v269, %v1753
        %v1755 = vand.u32 %v1754, 4294901760
        %1756 = vmatmul.mubr.f32.gmra.mrb[0].mxu0 %v1755
        %v1757 = vpop.f32.mrb[0].mxu0
        %v1758 = vadd.f32 %v1395, %v1757
        %v1759 = vpop.f32.mrb[0].mxu0
        %v1760 = vadd.f32 %v1397, %v1759
        %1761 = vmatprep.mubr.f32.mxu0 0.0
        %v1762 = vand.u32 %v270, 4294901760
        %v1763 = vsub.f32 %v270, %v1762
        %v1764 = vand.u32 %v1763, 4294901760
        %1765 = vmatmul.mubr.f32.gmra.mrb[0].mxu0 %v1764
        %v1766 = vpop.f32.mrb[0].mxu0
        %v1767 = vadd.f32 %v1403, %v1766
        %v1768 = vpop.f32.mrb[0].mxu0
        %v1769 = vadd.f32 %v1405, %v1768
        %1770 = vmatprep.mubr.f32.mxu0 0.0
        %v1771 = vand.u32 %v271, 4294901760
        %v1772 = vsub.f32 %v271, %v1771
        %v1773 = vand.u32 %v1772, 4294901760
        %1774 = vmatmul.mubr.f32.gmra.mrb[0].mxu0 %v1773
        %v1775 = vpop.f32.mrb[0].mxu0
        %v1776 = vadd.f32 %v1411, %v1775
        %v1777 = vpop.f32.mrb[0].mxu0
        %v1778 = vadd.f32 %v1413, %v1777
        %1779 = vmatprep.mubr.f32.mxu0 0.0
        %v1780 = vand.u32 %v272, 4294901760
        %v1781 = vsub.f32 %v272, %v1780
        %v1782 = vand.u32 %v1781, 4294901760
        %1783 = vmatmul.mubr.f32.gmra.mrb[0].mxu0 %v1782
        %v1784 = vpop.f32.mrb[0].mxu0
        %v1785 = vadd.f32 %v1419, %v1784
        %v1786 = vpop.f32.mrb[0].mxu0
        %v1787 = vadd.f32 %v1421, %v1786
        %1788 = vmatprep.mubr.f32.mxu0 0.0
        %v1789 = vand.u32 %v273, 4294901760
        %v1790 = vsub.f32 %v273, %v1789
        %v1791 = vand.u32 %v1790, 4294901760
        %1792 = vmatmul.mubr.f32.gmra.mrb[0].mxu0 %v1791
        %v1793 = vpop.f32.mrb[0].mxu0
        %v1794 = vadd.f32 %v1427, %v1793
        %v1795 = vpop.f32.mrb[0].mxu0
        %v1796 = vadd.f32 %v1429, %v1795
        %1797 = vmatprep.mubr.f32.mxu0 0.0
        %v1798 = vand.u32 %v274, 4294901760
        %v1799 = vsub.f32 %v274, %v1798
        %v1800 = vand.u32 %v1799, 4294901760
        %1801 = vmatmul.mubr.f32.gmra.mrb[0].mxu0 %v1800
        %v1802 = vpop.f32.mrb[0].mxu0
        %v1803 = vadd.f32 %v1435, %v1802
        %v1804 = vpop.f32.mrb[0].mxu0
        %v1805 = vadd.f32 %v1437, %v1804
        %1806 = vmatprep.mubr.f32.mxu0 0.0
        %v1807 = vand.u32 %v275, 4294901760
        %v1808 = vsub.f32 %v275, %v1807
        %v1809 = vand.u32 %v1808, 4294901760
        %1810 = vmatmul.mubr.f32.gmra.mrb[0].mxu0 %v1809
        %v1811 = vpop.f32.mrb[0].mxu0
        %v1812 = vadd.f32 %v1443, %v1811
        %v1813 = vpop.f32.mrb[0].mxu0
        %v1814 = vadd.f32 %v1445, %v1813
        %1815 = vmatprep.mubr.f32.mxu0 0.0
        %v1816 = vand.u32 %v276, 4294901760
        %v1817 = vsub.f32 %v276, %v1816
        %v1818 = vand.u32 %v1817, 4294901760
        %1819 = vmatmul.mubr.f32.gmra.mrb[0].mxu0 %v1818
        %v1820 = vpop.f32.mrb[0].mxu0
        %v1821 = vadd.f32 %v1451, %v1820
        %v1822 = vpop.f32.mrb[0].mxu0
        %v1823 = vadd.f32 %v1453, %v1822
        %1824 = vmatprep.mubr.f32.mxu0 0.0
        %v1825 = vand.u32 %v277, 4294901760
        %v1826 = vsub.f32 %v277, %v1825
        %v1827 = vand.u32 %v1826, 4294901760
        %1828 = vmatmul.mubr.f32.gmra.mrb[0].mxu0 %v1827
        %v1829 = vpop.f32.mrb[0].mxu0
        %v1830 = vadd.f32 %v1459, %v1829
        %v1831 = vpop.f32.mrb[0].mxu0
        %v1832 = vadd.f32 %v1461, %v1831
        %1833 = vmatprep.mubr.f32.mxu0 0.0
        %v1834 = vand.u32 %v278, 4294901760
        %v1835 = vsub.f32 %v278, %v1834
        %v1836 = vand.u32 %v1835, 4294901760
        %1837 = vmatmul.mubr.f32.gmra.mrb[0].mxu0 %v1836
        %v1838 = vpop.f32.mrb[0].mxu0
        %v1839 = vadd.f32 %v1467, %v1838
        %v1840 = vpop.f32.mrb[0].mxu0
        %v1841 = vadd.f32 %v1469, %v1840
        %1842 = vmatprep.mubr.f32.mxu0 0.0
        %v1843 = vand.u32 %v279, 4294901760
        %v1844 = vsub.f32 %v279, %v1843
        %v1845 = vand.u32 %v1844, 4294901760
        %1846 = vmatmul.mubr.f32.gmra.mrb[0].mxu0 %v1845
        %v1847 = vpop.f32.mrb[0].mxu0
        %v1848 = vadd.f32 %v1475, %v1847
        %v1849 = vpop.f32.mrb[0].mxu0
        %v1850 = vadd.f32 %v1477, %v1849
        %1851 = vmatprep.mubr.f32.mxu0 0.0
        %v1852 = vand.u32 %v280, 4294901760
        %v1853 = vsub.f32 %v280, %v1852
        %v1854 = vand.u32 %v1853, 4294901760
        %1855 = vmatmul.mubr.f32.gmra.mrb[0].mxu0 %v1854
        %v1856 = vpop.f32.mrb[0].mxu0
        %v1857 = vadd.f32 %v1483, %v1856
        %v1858 = vpop.f32.mrb[0].mxu0
        %v1859 = vadd.f32 %v1485, %v1858
        %1860 = vmatprep.mubr.f32.mxu0 0.0
        %v1861 = vand.u32 %v281, 4294901760
        %v1862 = vsub.f32 %v281, %v1861
        %v1863 = vand.u32 %v1862, 4294901760
        %1864 = vmatmul.mubr.f32.gmra.mrb[0].mxu0 %v1863
        %v1865 = vpop.f32.mrb[0].mxu0
        %v1866 = vadd.f32 %v1491, %v1865
        %v1867 = vpop.f32.mrb[0].mxu0
        %v1868 = vadd.f32 %v1493, %v1867
        %1869 = vmatprep.mubr.f32.mxu0 0.0
        %v1870 = vand.u32 %v282, 4294901760
        %v1871 = vsub.f32 %v282, %v1870
        %v1872 = vand.u32 %v1871, 4294901760
        %1873 = vmatmul.mubr.f32.gmra.mrb[0].mxu0 %v1872
        %v1874 = vpop.f32.mrb[0].mxu0
        %v1875 = vadd.f32 %v1499, %v1874
        %v1876 = vpop.f32.mrb[0].mxu0
        %v1877 = vadd.f32 %v1501, %v1876
        %1878 = vmatprep.mubr.f32.mxu0 0.0
        %v1879 = vand.u32 %v283, 4294901760
        %v1880 = vsub.f32 %v283, %v1879
        %v1881 = vand.u32 %v1880, 4294901760
        %1882 = vmatmul.mubr.f32.gmra.mrb[0].mxu0 %v1881
        %v1883 = vpop.f32.mrb[0].mxu0
        %v1884 = vadd.f32 %v1507, %v1883
        %v1885 = vpop.f32.mrb[0].mxu0
        %v1886 = vadd.f32 %v1509, %v1885
        %1887 = vmatprep.mubr.f32.mxu0 0.0
        %v1888 = vand.u32 %v284, 4294901760
        %v1889 = vsub.f32 %v284, %v1888
        %v1890 = vand.u32 %v1889, 4294901760
        %1891 = vmatmul.mubr.f32.gmra.mrb[0].mxu0 %v1890
        %v1892 = vpop.f32.mrb[0].mxu0
        %v1893 = vadd.f32 %v1515, %v1892
        %v1894 = vpop.f32.mrb[0].mxu0
        %v1895 = vadd.f32 %v1517, %v1894
        %1896 = vmatprep.mubr.f32.mxu0 0.0
        %v1897 = vand.u32 %v285, 4294901760
        %v1898 = vsub.f32 %v285, %v1897
        %v1899 = vand.u32 %v1898, 4294901760
        %1900 = vmatmul.mubr.f32.gmra.mrb[0].mxu0 %v1899
        %v1901 = vpop.f32.mrb[0].mxu0
        %v1902 = vadd.f32 %v1523, %v1901
        %v1903 = vpop.f32.mrb[0].mxu0
        %v1904 = vadd.f32 %v1525, %v1903
        %1905 = vmatprep.mubr.f32.mxu0 0.0
        %v1906 = vand.u32 %v286, 4294901760
        %v1907 = vsub.f32 %v286, %v1906
        %v1908 = vand.u32 %v1907, 4294901760
        %1909 = vmatmul.mubr.f32.gmra.mrb[0].mxu0 %v1908
        %v1910 = vpop.f32.mrb[0].mxu0
        %v1911 = vadd.f32 %v1531, %v1910
        %v1912 = vpop.f32.mrb[0].mxu0
        %v1913 = vadd.f32 %v1533, %v1912
        %1914 = vmatprep.mubr.f32.mxu0 0.0
        %v1915 = vand.u32 %v287, 4294901760
        %v1916 = vsub.f32 %v287, %v1915
        %v1917 = vand.u32 %v1916, 4294901760
        %1918 = vmatmul.mubr.f32.gmra.mrb[0].mxu0 %v1917
        %v1919 = vpop.f32.mrb[0].mxu0
        %v1920 = vadd.f32 %v1539, %v1919
        %v1921 = vpop.f32.mrb[0].mxu0
        %v1922 = vadd.f32 %v1541, %v1921
        %1923 = vmatprep.mubr.f32.mxu0 0.0
        %v1924 = vand.u32 %v288, 4294901760
        %v1925 = vsub.f32 %v288, %v1924
        %v1926 = vand.u32 %v1925, 4294901760
        %1927 = vmatmul.mubr.f32.gmra.mrb[0].mxu0 %v1926
        %v1928 = vpop.f32.mrb[0].mxu0
        %v1929 = vadd.f32 %v1547, %v1928
        %v1930 = vpop.f32.mrb[0].mxu0
        %v1931 = vadd.f32 %v1549, %v1930
        %1932 = vmatprep.mubr.f32.mxu0 0.0
        %v1933 = vand.u32 %v289, 4294901760
        %v1934 = vsub.f32 %v289, %v1933
        %v1935 = vand.u32 %v1934, 4294901760
        %1936 = vmatmul.mubr.f32.gmra.mrb[0].mxu0 %v1935
        %v1937 = vpop.f32.mrb[0].mxu0
        %v1938 = vadd.f32 %v1555, %v1937
        %v1939 = vpop.f32.mrb[0].mxu0
        %v1940 = vadd.f32 %v1557, %v1939
        %1941 = vmatprep.mubr.f32.mxu0 0.0
        %v1942 = vand.u32 %v290, 4294901760
        %v1943 = vsub.f32 %v290, %v1942
        %v1944 = vand.u32 %v1943, 4294901760
        %1945 = vmatmul.mubr.f32.gmra.mrb[0].mxu0 %v1944
        %v1946 = vpop.f32.mrb[0].mxu0
        %v1947 = vadd.f32 %v1563, %v1946
        %v1948 = vpop.f32.mrb[0].mxu0
        %v1949 = vadd.f32 %v1565, %v1948
        %1950 = vmatprep.mubr.f32.mxu0 0.0
        %v1951 = vand.u32 %v291, 4294901760
        %v1952 = vsub.f32 %v291, %v1951
        %v1953 = vand.u32 %v1952, 4294901760
        %1954 = vmatmul.mubr.f32.gmra.mrb[0].mxu0 %v1953
        %v1955 = vpop.f32.mrb[0].mxu0
        %v1956 = vadd.f32 %v1571, %v1955
        %v1957 = vpop.f32.mrb[0].mxu0
        %v1958 = vadd.f32 %v1573, %v1957
        %1959 = vdwg.mxu0
        %1960 = vmatprep.subr.mxu0 0.0
        %v1961 = vand.u32 %v196, 4294901760
        %v1962 = vsub.f32 %v196, %v1961
        %v1963 = vand.u32 %v1962, 4294901760
        %1964 = vmatpush1.xpose.msra.mxu0 %v1963
        %1965 = vmatprep.subr.mxu0 0.0
        %v1966 = vand.u32 %v197, 4294901760
        %v1967 = vsub.f32 %v197, %v1966
        %v1968 = vand.u32 %v1967, 4294901760
        %1969 = vmatpush1.xpose.msra.mxu0 %v1968
        %1970 = vmatprep.subr.mxu0 0.0
        %v1971 = vand.u32 %v198, 4294901760
        %v1972 = vsub.f32 %v198, %v1971
        %v1973 = vand.u32 %v1972, 4294901760
        %1974 = vmatpush1.xpose.msra.mxu0 %v1973
        %1975 = vmatprep.subr.mxu0 0.0
        %v1976 = vand.u32 %v199, 4294901760
        %v1977 = vsub.f32 %v199, %v1976
        %v1978 = vand.u32 %v1977, 4294901760
        %1979 = vmatpush1.xpose.msra.mxu0 %v1978
        %1980 = vmatprep.subr.mxu0 0.0
        %v1981 = vand.u32 %v200, 4294901760
        %v1982 = vsub.f32 %v200, %v1981
        %v1983 = vand.u32 %v1982, 4294901760
        %1984 = vmatpush1.xpose.msra.mxu0 %v1983
        %1985 = vmatprep.subr.mxu0 0.0
        %v1986 = vand.u32 %v201, 4294901760
        %v1987 = vsub.f32 %v201, %v1986
        %v1988 = vand.u32 %v1987, 4294901760
        %1989 = vmatpush1.xpose.msra.mxu0 %v1988
        %1990 = vmatprep.subr.mxu0 0.0
        %v1991 = vand.u32 %v202, 4294901760
        %v1992 = vsub.f32 %v202, %v1991
        %v1993 = vand.u32 %v1992, 4294901760
        %1994 = vmatpush1.xpose.msra.mxu0 %v1993
        %1995 = vmatprep.subr.mxu0 0.0
        %v1996 = vand.u32 %v203, 4294901760
        %v1997 = vsub.f32 %v203, %v1996
        %v1998 = vand.u32 %v1997, 4294901760
        %1999 = vmatpush1.xpose.msra.mxu0 %v1998
        %2000 = vmatprep.subr.mxu0 0.0
        %v2001 = vand.u32 %v204, 4294901760
        %v2002 = vsub.f32 %v204, %v2001
        %v2003 = vand.u32 %v2002, 4294901760
        %2004 = vmatpush1.xpose.msra.mxu0 %v2003
        %2005 = vmatprep.subr.mxu0 0.0
        %v2006 = vand.u32 %v205, 4294901760
        %v2007 = vsub.f32 %v205, %v2006
        %v2008 = vand.u32 %v2007, 4294901760
        %2009 = vmatpush1.xpose.msra.mxu0 %v2008
        %2010 = vmatprep.subr.mxu0 0.0
        %v2011 = vand.u32 %v206, 4294901760
        %v2012 = vsub.f32 %v206, %v2011
        %v2013 = vand.u32 %v2012, 4294901760
        %2014 = vmatpush1.xpose.msra.mxu0 %v2013
        %2015 = vmatprep.subr.mxu0 0.0
        %v2016 = vand.u32 %v207, 4294901760
        %v2017 = vsub.f32 %v207, %v2016
        %v2018 = vand.u32 %v2017, 4294901760
        %2019 = vmatpush1.xpose.msra.mxu0 %v2018
        %2020 = vmatprep.subr.mxu0 0.0
        %v2021 = vand.u32 %v208, 4294901760
        %v2022 = vsub.f32 %v208, %v2021
        %v2023 = vand.u32 %v2022, 4294901760
        %2024 = vmatpush1.xpose.msra.mxu0 %v2023
        %2025 = vmatprep.subr.mxu0 0.0
        %v2026 = vand.u32 %v209, 4294901760
        %v2027 = vsub.f32 %v209, %v2026
        %v2028 = vand.u32 %v2027, 4294901760
        %2029 = vmatpush1.xpose.msra.mxu0 %v2028
        %2030 = vmatprep.subr.mxu0 0.0
        %v2031 = vand.u32 %v210, 4294901760
        %v2032 = vsub.f32 %v210, %v2031
        %v2033 = vand.u32 %v2032, 4294901760
        %2034 = vmatpush1.xpose.msra.mxu0 %v2033
        %2035 = vmatprep.subr.mxu0 0.0
        %v2036 = vand.u32 %v211, 4294901760
        %v2037 = vsub.f32 %v211, %v2036
        %v2038 = vand.u32 %v2037, 4294901760
        %2039 = vmatpush1.xpose.msra.mxu0 %v2038
        %2040 = vmatprep.subr.mxu0 0.0
        %v2041 = vand.u32 %v212, 4294901760
        %v2042 = vsub.f32 %v212, %v2041
        %v2043 = vand.u32 %v2042, 4294901760
        %2044 = vmatpush1.xpose.msra.mxu0 %v2043
        %2045 = vmatprep.subr.mxu0 0.0
        %v2046 = vand.u32 %v213, 4294901760
        %v2047 = vsub.f32 %v213, %v2046
        %v2048 = vand.u32 %v2047, 4294901760
        %2049 = vmatpush1.xpose.msra.mxu0 %v2048
        %2050 = vmatprep.subr.mxu0 0.0
        %v2051 = vand.u32 %v214, 4294901760
        %v2052 = vsub.f32 %v214, %v2051
        %v2053 = vand.u32 %v2052, 4294901760
        %2054 = vmatpush1.xpose.msra.mxu0 %v2053
        %2055 = vmatprep.subr.mxu0 0.0
        %v2056 = vand.u32 %v215, 4294901760
        %v2057 = vsub.f32 %v215, %v2056
        %v2058 = vand.u32 %v2057, 4294901760
        %2059 = vmatpush1.xpose.msra.mxu0 %v2058
        %2060 = vmatprep.subr.mxu0 0.0
        %v2061 = vand.u32 %v216, 4294901760
        %v2062 = vsub.f32 %v216, %v2061
        %v2063 = vand.u32 %v2062, 4294901760
        %2064 = vmatpush1.xpose.msra.mxu0 %v2063
        %2065 = vmatprep.subr.mxu0 0.0
        %v2066 = vand.u32 %v217, 4294901760
        %v2067 = vsub.f32 %v217, %v2066
        %v2068 = vand.u32 %v2067, 4294901760
        %2069 = vmatpush1.xpose.msra.mxu0 %v2068
        %2070 = vmatprep.subr.mxu0 0.0
        %v2071 = vand.u32 %v218, 4294901760
        %v2072 = vsub.f32 %v218, %v2071
        %v2073 = vand.u32 %v2072, 4294901760
        %2074 = vmatpush1.xpose.msra.mxu0 %v2073
        %2075 = vmatprep.subr.mxu0 0.0
        %v2076 = vand.u32 %v219, 4294901760
        %v2077 = vsub.f32 %v219, %v2076
        %v2078 = vand.u32 %v2077, 4294901760
        %2079 = vmatpush1.xpose.msra.mxu0 %v2078
        %2080 = vmatprep.subr.mxu0 0.0
        %v2081 = vand.u32 %v220, 4294901760
        %v2082 = vsub.f32 %v220, %v2081
        %v2083 = vand.u32 %v2082, 4294901760
        %2084 = vmatpush1.xpose.msra.mxu0 %v2083
        %2085 = vmatprep.subr.mxu0 0.0
        %v2086 = vand.u32 %v221, 4294901760
        %v2087 = vsub.f32 %v221, %v2086
        %v2088 = vand.u32 %v2087, 4294901760
        %2089 = vmatpush1.xpose.msra.mxu0 %v2088
        %2090 = vmatprep.subr.mxu0 0.0
        %v2091 = vand.u32 %v222, 4294901760
        %v2092 = vsub.f32 %v222, %v2091
        %v2093 = vand.u32 %v2092, 4294901760
        %2094 = vmatpush1.xpose.msra.mxu0 %v2093
        %2095 = vmatprep.subr.mxu0 0.0
        %v2096 = vand.u32 %v223, 4294901760
        %v2097 = vsub.f32 %v223, %v2096
        %v2098 = vand.u32 %v2097, 4294901760
        %2099 = vmatpush1.xpose.msra.mxu0 %v2098
        %2100 = vmatprep.subr.mxu0 0.0
        %v2101 = vand.u32 %v224, 4294901760
        %v2102 = vsub.f32 %v224, %v2101
        %v2103 = vand.u32 %v2102, 4294901760
        %2104 = vmatpush1.xpose.msra.mxu0 %v2103
        %2105 = vmatprep.subr.mxu0 0.0
        %v2106 = vand.u32 %v225, 4294901760
        %v2107 = vsub.f32 %v225, %v2106
        %v2108 = vand.u32 %v2107, 4294901760
        %2109 = vmatpush1.xpose.msra.mxu0 %v2108
        %2110 = vmatprep.subr.mxu0 0.0
        %v2111 = vand.u32 %v226, 4294901760
        %v2112 = vsub.f32 %v226, %v2111
        %v2113 = vand.u32 %v2112, 4294901760
        %2114 = vmatpush1.xpose.msra.mxu0 %v2113
        %2115 = vmatprep.subr.mxu0 0.0
        %v2116 = vand.u32 %v227, 4294901760
        %v2117 = vsub.f32 %v227, %v2116
        %v2118 = vand.u32 %v2117, 4294901760
        %2119 = vmatpush1.xpose.msra.mxu0 %v2118
        %2120 = vmatprep.mubr.f32.mxu0 0.0
        %v2121 = vand.u32 %v260, 4294901760
        %2122 = vmatmul.mubr.f32.gmra.mrb[0].mxu0 %v2121
        %v2123 = vpop.f32.mrb[0].mxu0
        %v2124 = vadd.f32 %v1677, %v2123
        %v2125 = vpop.f32.mrb[0].mxu0
        %v2126 = vadd.f32 %v1679, %v2125
        %2127 = vmatprep.mubr.f32.mxu0 0.0
        %v2128 = vand.u32 %v261, 4294901760
        %2129 = vmatmul.mubr.f32.gmra.mrb[0].mxu0 %v2128
        %v2130 = vpop.f32.mrb[0].mxu0
        %v2131 = vadd.f32 %v1686, %v2130
        %v2132 = vpop.f32.mrb[0].mxu0
        %v2133 = vadd.f32 %v1688, %v2132
        %2134 = vmatprep.mubr.f32.mxu0 0.0
        %v2135 = vand.u32 %v262, 4294901760
        %2136 = vmatmul.mubr.f32.gmra.mrb[0].mxu0 %v2135
        %v2137 = vpop.f32.mrb[0].mxu0
        %v2138 = vadd.f32 %v1695, %v2137
        %v2139 = vpop.f32.mrb[0].mxu0
        %v2140 = vadd.f32 %v1697, %v2139
        %2141 = vmatprep.mubr.f32.mxu0 0.0
        %v2142 = vand.u32 %v263, 4294901760
        %2143 = vmatmul.mubr.f32.gmra.mrb[0].mxu0 %v2142
        %v2144 = vpop.f32.mrb[0].mxu0
        %v2145 = vadd.f32 %v1704, %v2144
        %v2146 = vpop.f32.mrb[0].mxu0
        %v2147 = vadd.f32 %v1706, %v2146
        %2148 = vmatprep.mubr.f32.mxu0 0.0
        %v2149 = vand.u32 %v264, 4294901760
        %2150 = vmatmul.mubr.f32.gmra.mrb[0].mxu0 %v2149
        %v2151 = vpop.f32.mrb[0].mxu0
        %v2152 = vadd.f32 %v1713, %v2151
        %v2153 = vpop.f32.mrb[0].mxu0
        %v2154 = vadd.f32 %v1715, %v2153
        %2155 = vmatprep.mubr.f32.mxu0 0.0
        %v2156 = vand.u32 %v265, 4294901760
        %2157 = vmatmul.mubr.f32.gmra.mrb[0].mxu0 %v2156
        %v2158 = vpop.f32.mrb[0].mxu0
        %v2159 = vadd.f32 %v1722, %v2158
        %v2160 = vpop.f32.mrb[0].mxu0
        %v2161 = vadd.f32 %v1724, %v2160
        %2162 = vmatprep.mubr.f32.mxu0 0.0
        %v2163 = vand.u32 %v266, 4294901760
        %2164 = vmatmul.mubr.f32.gmra.mrb[0].mxu0 %v2163
        %v2165 = vpop.f32.mrb[0].mxu0
        %v2166 = vadd.f32 %v1731, %v2165
        %v2167 = vpop.f32.mrb[0].mxu0
        %v2168 = vadd.f32 %v1733, %v2167
        %2169 = vmatprep.mubr.f32.mxu0 0.0
        %v2170 = vand.u32 %v267, 4294901760
        %2171 = vmatmul.mubr.f32.gmra.mrb[0].mxu0 %v2170
        %v2172 = vpop.f32.mrb[0].mxu0
        %v2173 = vadd.f32 %v1740, %v2172
        %v2174 = vpop.f32.mrb[0].mxu0
        %v2175 = vadd.f32 %v1742, %v2174
        %2176 = vmatprep.mubr.f32.mxu0 0.0
        %v2177 = vand.u32 %v268, 4294901760
        %2178 = vmatmul.mubr.f32.gmra.mrb[0].mxu0 %v2177
        %v2179 = vpop.f32.mrb[0].mxu0
        %v2180 = vadd.f32 %v1749, %v2179
        %v2181 = vpop.f32.mrb[0].mxu0
        %v2182 = vadd.f32 %v1751, %v2181
        %2183 = vmatprep.mubr.f32.mxu0 0.0
        %v2184 = vand.u32 %v269, 4294901760
        %2185 = vmatmul.mubr.f32.gmra.mrb[0].mxu0 %v2184
        %v2186 = vpop.f32.mrb[0].mxu0
        %v2187 = vadd.f32 %v1758, %v2186
        %v2188 = vpop.f32.mrb[0].mxu0
        %v2189 = vadd.f32 %v1760, %v2188
        %2190 = vmatprep.mubr.f32.mxu0 0.0
        %v2191 = vand.u32 %v270, 4294901760
        %2192 = vmatmul.mubr.f32.gmra.mrb[0].mxu0 %v2191
        %v2193 = vpop.f32.mrb[0].mxu0
        %v2194 = vadd.f32 %v1767, %v2193
        %v2195 = vpop.f32.mrb[0].mxu0
        %v2196 = vadd.f32 %v1769, %v2195
        %2197 = vmatprep.mubr.f32.mxu0 0.0
        %v2198 = vand.u32 %v271, 4294901760
        %2199 = vmatmul.mubr.f32.gmra.mrb[0].mxu0 %v2198
        %v2200 = vpop.f32.mrb[0].mxu0
        %v2201 = vadd.f32 %v1776, %v2200
        %v2202 = vpop.f32.mrb[0].mxu0
        %v2203 = vadd.f32 %v1778, %v2202
        %2204 = vmatprep.mubr.f32.mxu0 0.0
        %v2205 = vand.u32 %v272, 4294901760
        %2206 = vmatmul.mubr.f32.gmra.mrb[0].mxu0 %v2205
        %v2207 = vpop.f32.mrb[0].mxu0
        %v2208 = vadd.f32 %v1785, %v2207
        %v2209 = vpop.f32.mrb[0].mxu0
        %v2210 = vadd.f32 %v1787, %v2209
        %2211 = vmatprep.mubr.f32.mxu0 0.0
        %v2212 = vand.u32 %v273, 4294901760
        %2213 = vmatmul.mubr.f32.gmra.mrb[0].mxu0 %v2212
        %v2214 = vpop.f32.mrb[0].mxu0
        %v2215 = vadd.f32 %v1794, %v2214
        %v2216 = vpop.f32.mrb[0].mxu0
        %v2217 = vadd.f32 %v1796, %v2216
        %2218 = vmatprep.mubr.f32.mxu0 0.0
        %v2219 = vand.u32 %v274, 4294901760
        %2220 = vmatmul.mubr.f32.gmra.mrb[0].mxu0 %v2219
        %v2221 = vpop.f32.mrb[0].mxu0
        %v2222 = vadd.f32 %v1803, %v2221
        %v2223 = vpop.f32.mrb[0].mxu0
        %v2224 = vadd.f32 %v1805, %v2223
        %2225 = vmatprep.mubr.f32.mxu0 0.0
        %v2226 = vand.u32 %v275, 4294901760
        %2227 = vmatmul.mubr.f32.gmra.mrb[0].mxu0 %v2226
        %v2228 = vpop.f32.mrb[0].mxu0
        %v2229 = vadd.f32 %v1812, %v2228
        %v2230 = vpop.f32.mrb[0].mxu0
        %v2231 = vadd.f32 %v1814, %v2230
        %2232 = vmatprep.mubr.f32.mxu0 0.0
        %v2233 = vand.u32 %v276, 4294901760
        %2234 = vmatmul.mubr.f32.gmra.mrb[0].mxu0 %v2233
        %v2235 = vpop.f32.mrb[0].mxu0
        %v2236 = vadd.f32 %v1821, %v2235
        %v2237 = vpop.f32.mrb[0].mxu0
        %v2238 = vadd.f32 %v1823, %v2237
        %2239 = vmatprep.mubr.f32.mxu0 0.0
        %v2240 = vand.u32 %v277, 4294901760
        %2241 = vmatmul.mubr.f32.gmra.mrb[0].mxu0 %v2240
        %v2242 = vpop.f32.mrb[0].mxu0
        %v2243 = vadd.f32 %v1830, %v2242
        %v2244 = vpop.f32.mrb[0].mxu0
        %v2245 = vadd.f32 %v1832, %v2244
        %2246 = vmatprep.mubr.f32.mxu0 0.0
        %v2247 = vand.u32 %v278, 4294901760
        %2248 = vmatmul.mubr.f32.gmra.mrb[0].mxu0 %v2247
        %v2249 = vpop.f32.mrb[0].mxu0
        %v2250 = vadd.f32 %v1839, %v2249
        %v2251 = vpop.f32.mrb[0].mxu0
        %v2252 = vadd.f32 %v1841, %v2251
        %2253 = vmatprep.mubr.f32.mxu0 0.0
        %v2254 = vand.u32 %v279, 4294901760
        %2255 = vmatmul.mubr.f32.gmra.mrb[0].mxu0 %v2254
        %v2256 = vpop.f32.mrb[0].mxu0
        %v2257 = vadd.f32 %v1848, %v2256
        %v2258 = vpop.f32.mrb[0].mxu0
        %v2259 = vadd.f32 %v1850, %v2258
        %2260 = vmatprep.mubr.f32.mxu0 0.0
        %v2261 = vand.u32 %v280, 4294901760
        %2262 = vmatmul.mubr.f32.gmra.mrb[0].mxu0 %v2261
        %v2263 = vpop.f32.mrb[0].mxu0
        %v2264 = vadd.f32 %v1857, %v2263
        %v2265 = vpop.f32.mrb[0].mxu0
        %v2266 = vadd.f32 %v1859, %v2265
        %2267 = vmatprep.mubr.f32.mxu0 0.0
        %v2268 = vand.u32 %v281, 4294901760
        %2269 = vmatmul.mubr.f32.gmra.mrb[0].mxu0 %v2268
        %v2270 = vpop.f32.mrb[0].mxu0
        %v2271 = vadd.f32 %v1866, %v2270
        %v2272 = vpop.f32.mrb[0].mxu0
        %v2273 = vadd.f32 %v1868, %v2272
        %2274 = vmatprep.mubr.f32.mxu0 0.0
        %v2275 = vand.u32 %v282, 4294901760
        %2276 = vmatmul.mubr.f32.gmra.mrb[0].mxu0 %v2275
        %v2277 = vpop.f32.mrb[0].mxu0
        %v2278 = vadd.f32 %v1875, %v2277
        %v2279 = vpop.f32.mrb[0].mxu0
        %v2280 = vadd.f32 %v1877, %v2279
        %2281 = vmatprep.mubr.f32.mxu0 0.0
        %v2282 = vand.u32 %v283, 4294901760
        %2283 = vmatmul.mubr.f32.gmra.mrb[0].mxu0 %v2282
        %v2284 = vpop.f32.mrb[0].mxu0
        %v2285 = vadd.f32 %v1884, %v2284
        %v2286 = vpop.f32.mrb[0].mxu0
        %v2287 = vadd.f32 %v1886, %v2286
        %2288 = vmatprep.mubr.f32.mxu0 0.0
        %v2289 = vand.u32 %v284, 4294901760
        %2290 = vmatmul.mubr.f32.gmra.mrb[0].mxu0 %v2289
        %v2291 = vpop.f32.mrb[0].mxu0
        %v2292 = vadd.f32 %v1893, %v2291
        %v2293 = vpop.f32.mrb[0].mxu0
        %v2294 = vadd.f32 %v1895, %v2293
        %2295 = vmatprep.mubr.f32.mxu0 0.0
        %v2296 = vand.u32 %v285, 4294901760
        %2297 = vmatmul.mubr.f32.gmra.mrb[0].mxu0 %v2296
        %v2298 = vpop.f32.mrb[0].mxu0
        %v2299 = vadd.f32 %v1902, %v2298
        %v2300 = vpop.f32.mrb[0].mxu0
        %v2301 = vadd.f32 %v1904, %v2300
        %2302 = vmatprep.mubr.f32.mxu0 0.0
        %v2303 = vand.u32 %v286, 4294901760
        %2304 = vmatmul.mubr.f32.gmra.mrb[0].mxu0 %v2303
        %v2305 = vpop.f32.mrb[0].mxu0
        %v2306 = vadd.f32 %v1911, %v2305
        %v2307 = vpop.f32.mrb[0].mxu0
        %v2308 = vadd.f32 %v1913, %v2307
        %2309 = vmatprep.mubr.f32.mxu0 0.0
        %v2310 = vand.u32 %v287, 4294901760
        %2311 = vmatmul.mubr.f32.gmra.mrb[0].mxu0 %v2310
        %v2312 = vpop.f32.mrb[0].mxu0
        %v2313 = vadd.f32 %v1920, %v2312
        %v2314 = vpop.f32.mrb[0].mxu0
        %v2315 = vadd.f32 %v1922, %v2314
        %2316 = vmatprep.mubr.f32.mxu0 0.0
        %v2317 = vand.u32 %v288, 4294901760
        %2318 = vmatmul.mubr.f32.gmra.mrb[0].mxu0 %v2317
        %v2319 = vpop.f32.mrb[0].mxu0
        %v2320 = vadd.f32 %v1929, %v2319
        %v2321 = vpop.f32.mrb[0].mxu0
        %v2322 = vadd.f32 %v1931, %v2321
        %2323 = vmatprep.mubr.f32.mxu0 0.0
        %v2324 = vand.u32 %v289, 4294901760
        %2325 = vmatmul.mubr.f32.gmra.mrb[0].mxu0 %v2324
        %v2326 = vpop.f32.mrb[0].mxu0
        %v2327 = vadd.f32 %v1938, %v2326
        %v2328 = vpop.f32.mrb[0].mxu0
        %v2329 = vadd.f32 %v1940, %v2328
        %2330 = vmatprep.mubr.f32.mxu0 0.0
        %v2331 = vand.u32 %v290, 4294901760
        %2332 = vmatmul.mubr.f32.gmra.mrb[0].mxu0 %v2331
        %v2333 = vpop.f32.mrb[0].mxu0
        %v2334 = vadd.f32 %v1947, %v2333
        %v2335 = vpop.f32.mrb[0].mxu0
        %v2336 = vadd.f32 %v1949, %v2335
        %2337 = vmatprep.mubr.f32.mxu0 0.0
        %v2338 = vand.u32 %v291, 4294901760
        %2339 = vmatmul.mubr.f32.gmra.mrb[0].mxu0 %v2338
        %v2340 = vpop.f32.mrb[0].mxu0
        %v2341 = vadd.f32 %v1956, %v2340
        %v2342 = vpop.f32.mrb[0].mxu0
        %v2343 = vadd.f32 %v1958, %v2342
        %2344 = vdwg.mxu0
        %2345 = vmatprep.subr.mxu0 0.0
        %v2346 = vand.u32 %v196, 4294901760
        %2347 = vmatpush1.xpose.msra.mxu0 %v2346
        %2348 = vmatprep.subr.mxu0 0.0
        %v2349 = vand.u32 %v197, 4294901760
        %2350 = vmatpush1.xpose.msra.mxu0 %v2349
        %2351 = vmatprep.subr.mxu0 0.0
        %v2352 = vand.u32 %v198, 4294901760
        %2353 = vmatpush1.xpose.msra.mxu0 %v2352
        %2354 = vmatprep.subr.mxu0 0.0
        %v2355 = vand.u32 %v199, 4294901760
        %2356 = vmatpush1.xpose.msra.mxu0 %v2355
        %2357 = vmatprep.subr.mxu0 0.0
        %v2358 = vand.u32 %v200, 4294901760
        %2359 = vmatpush1.xpose.msra.mxu0 %v2358
        %2360 = vmatprep.subr.mxu0 0.0
        %v2361 = vand.u32 %v201, 4294901760
        %2362 = vmatpush1.xpose.msra.mxu0 %v2361
        %2363 = vmatprep.subr.mxu0 0.0
        %v2364 = vand.u32 %v202, 4294901760
        %2365 = vmatpush1.xpose.msra.mxu0 %v2364
        %2366 = vmatprep.subr.mxu0 0.0
        %v2367 = vand.u32 %v203, 4294901760
        %2368 = vmatpush1.xpose.msra.mxu0 %v2367
        %2369 = vmatprep.subr.mxu0 0.0
        %v2370 = vand.u32 %v204, 4294901760
        %2371 = vmatpush1.xpose.msra.mxu0 %v2370
        %2372 = vmatprep.subr.mxu0 0.0
        %v2373 = vand.u32 %v205, 4294901760
        %2374 = vmatpush1.xpose.msra.mxu0 %v2373
        %2375 = vmatprep.subr.mxu0 0.0
        %v2376 = vand.u32 %v206, 4294901760
        %2377 = vmatpush1.xpose.msra.mxu0 %v2376
        %2378 = vmatprep.subr.mxu0 0.0
        %v2379 = vand.u32 %v207, 4294901760
        %2380 = vmatpush1.xpose.msra.mxu0 %v2379
        %2381 = vmatprep.subr.mxu0 0.0
        %v2382 = vand.u32 %v208, 4294901760
        %2383 = vmatpush1.xpose.msra.mxu0 %v2382
        %2384 = vmatprep.subr.mxu0 0.0
        %v2385 = vand.u32 %v209, 4294901760
        %2386 = vmatpush1.xpose.msra.mxu0 %v2385
        %2387 = vmatprep.subr.mxu0 0.0
        %v2388 = vand.u32 %v210, 4294901760
        %2389 = vmatpush1.xpose.msra.mxu0 %v2388
        %2390 = vmatprep.subr.mxu0 0.0
        %v2391 = vand.u32 %v211, 4294901760
        %2392 = vmatpush1.xpose.msra.mxu0 %v2391
        %2393 = vmatprep.subr.mxu0 0.0
        %v2394 = vand.u32 %v212, 4294901760
        %2395 = vmatpush1.xpose.msra.mxu0 %v2394
        %2396 = vmatprep.subr.mxu0 0.0
        %v2397 = vand.u32 %v213, 4294901760
        %2398 = vmatpush1.xpose.msra.mxu0 %v2397
        %2399 = vmatprep.subr.mxu0 0.0
        %v2400 = vand.u32 %v214, 4294901760
        %2401 = vmatpush1.xpose.msra.mxu0 %v2400
        %2402 = vmatprep.subr.mxu0 0.0
        %v2403 = vand.u32 %v215, 4294901760
        %2404 = vmatpush1.xpose.msra.mxu0 %v2403
        %2405 = vmatprep.subr.mxu0 0.0
        %v2406 = vand.u32 %v216, 4294901760
        %2407 = vmatpush1.xpose.msra.mxu0 %v2406
        %2408 = vmatprep.subr.mxu0 0.0
        %v2409 = vand.u32 %v217, 4294901760
        %2410 = vmatpush1.xpose.msra.mxu0 %v2409
        %2411 = vmatprep.subr.mxu0 0.0
        %v2412 = vand.u32 %v218, 4294901760
        %2413 = vmatpush1.xpose.msra.mxu0 %v2412
        %2414 = vmatprep.subr.mxu0 0.0
        %v2415 = vand.u32 %v219, 4294901760
        %2416 = vmatpush1.xpose.msra.mxu0 %v2415
        %2417 = vmatprep.subr.mxu0 0.0
        %v2418 = vand.u32 %v220, 4294901760
        %2419 = vmatpush1.xpose.msra.mxu0 %v2418
        %2420 = vmatprep.subr.mxu0 0.0
        %v2421 = vand.u32 %v221, 4294901760
        %2422 = vmatpush1.xpose.msra.mxu0 %v2421
        %2423 = vmatprep.subr.mxu0 0.0
        %v2424 = vand.u32 %v222, 4294901760
        %2425 = vmatpush1.xpose.msra.mxu0 %v2424
        %2426 = vmatprep.subr.mxu0 0.0
        %v2427 = vand.u32 %v223, 4294901760
        %2428 = vmatpush1.xpose.msra.mxu0 %v2427
        %2429 = vmatprep.subr.mxu0 0.0
        %v2430 = vand.u32 %v224, 4294901760
        %2431 = vmatpush1.xpose.msra.mxu0 %v2430
        %2432 = vmatprep.subr.mxu0 0.0
        %v2433 = vand.u32 %v225, 4294901760
        %2434 = vmatpush1.xpose.msra.mxu0 %v2433
        %2435 = vmatprep.subr.mxu0 0.0
        %v2436 = vand.u32 %v226, 4294901760
        %2437 = vmatpush1.xpose.msra.mxu0 %v2436
        %2438 = vmatprep.subr.mxu0 0.0
        %v2439 = vand.u32 %v227, 4294901760
        %2440 = vmatpush1.xpose.msra.mxu0 %v2439
        %2441 = vmatprep.mubr.f32.mxu0 0.0
        %v2442 = vand.u32 %v260, 4294901760
        %2443 = vmatmul.mubr.f32.gmra.mrb[0].mxu0 %v2442
        %v2444 = vpop.f32.mrb[0].mxu0
        %v2445 = vadd.f32 %v2124, %v2444
        %v2446 = vpop.f32.mrb[0].mxu0
        %v2447 = vadd.f32 %v2126, %v2446
        %2448 = vmatprep.mubr.f32.mxu0 0.0
        %v2449 = vand.u32 %v261, 4294901760
        %2450 = vmatmul.mubr.f32.gmra.mrb[0].mxu0 %v2449
        %v2451 = vpop.f32.mrb[0].mxu0
        %v2452 = vadd.f32 %v2131, %v2451
        %v2453 = vpop.f32.mrb[0].mxu0
        %v2454 = vadd.f32 %v2133, %v2453
        %2455 = vmatprep.mubr.f32.mxu0 0.0
        %v2456 = vand.u32 %v262, 4294901760
        %2457 = vmatmul.mubr.f32.gmra.mrb[0].mxu0 %v2456
        %v2458 = vpop.f32.mrb[0].mxu0
        %v2459 = vadd.f32 %v2138, %v2458
        %v2460 = vpop.f32.mrb[0].mxu0
        %v2461 = vadd.f32 %v2140, %v2460
        %2462 = vmatprep.mubr.f32.mxu0 0.0
        %v2463 = vand.u32 %v263, 4294901760
        %2464 = vmatmul.mubr.f32.gmra.mrb[0].mxu0 %v2463
        %v2465 = vpop.f32.mrb[0].mxu0
        %v2466 = vadd.f32 %v2145, %v2465
        %v2467 = vpop.f32.mrb[0].mxu0
        %v2468 = vadd.f32 %v2147, %v2467
        %2469 = vmatprep.mubr.f32.mxu0 0.0
        %v2470 = vand.u32 %v264, 4294901760
        %2471 = vmatmul.mubr.f32.gmra.mrb[0].mxu0 %v2470
        %v2472 = vpop.f32.mrb[0].mxu0
        %v2473 = vadd.f32 %v2152, %v2472
        %v2474 = vpop.f32.mrb[0].mxu0
        %v2475 = vadd.f32 %v2154, %v2474
        %2476 = vmatprep.mubr.f32.mxu0 0.0
        %v2477 = vand.u32 %v265, 4294901760
        %2478 = vmatmul.mubr.f32.gmra.mrb[0].mxu0 %v2477
        %v2479 = vpop.f32.mrb[0].mxu0
        %v2480 = vadd.f32 %v2159, %v2479
        %v2481 = vpop.f32.mrb[0].mxu0
        %v2482 = vadd.f32 %v2161, %v2481
        %2483 = vmatprep.mubr.f32.mxu0 0.0
        %v2484 = vand.u32 %v266, 4294901760
        %2485 = vmatmul.mubr.f32.gmra.mrb[0].mxu0 %v2484
        %v2486 = vpop.f32.mrb[0].mxu0
        %v2487 = vadd.f32 %v2166, %v2486
        %v2488 = vpop.f32.mrb[0].mxu0
        %v2489 = vadd.f32 %v2168, %v2488
        %2490 = vmatprep.mubr.f32.mxu0 0.0
        %v2491 = vand.u32 %v267, 4294901760
        %2492 = vmatmul.mubr.f32.gmra.mrb[0].mxu0 %v2491
        %v2493 = vpop.f32.mrb[0].mxu0
        %v2494 = vadd.f32 %v2173, %v2493
        %v2495 = vpop.f32.mrb[0].mxu0
        %v2496 = vadd.f32 %v2175, %v2495
        %2497 = vmatprep.mubr.f32.mxu0 0.0
        %v2498 = vand.u32 %v268, 4294901760
        %2499 = vmatmul.mubr.f32.gmra.mrb[0].mxu0 %v2498
        %v2500 = vpop.f32.mrb[0].mxu0
        %v2501 = vadd.f32 %v2180, %v2500
        %v2502 = vpop.f32.mrb[0].mxu0
        %v2503 = vadd.f32 %v2182, %v2502
        %2504 = vmatprep.mubr.f32.mxu0 0.0
        %v2505 = vand.u32 %v269, 4294901760
        %2506 = vmatmul.mubr.f32.gmra.mrb[0].mxu0 %v2505
        %v2507 = vpop.f32.mrb[0].mxu0
        %v2508 = vadd.f32 %v2187, %v2507
        %v2509 = vpop.f32.mrb[0].mxu0
        %v2510 = vadd.f32 %v2189, %v2509
        %2511 = vmatprep.mubr.f32.mxu0 0.0
        %v2512 = vand.u32 %v270, 4294901760
        %2513 = vmatmul.mubr.f32.gmra.mrb[0].mxu0 %v2512
        %v2514 = vpop.f32.mrb[0].mxu0
        %v2515 = vadd.f32 %v2194, %v2514
        %v2516 = vpop.f32.mrb[0].mxu0
        %v2517 = vadd.f32 %v2196, %v2516
        %2518 = vmatprep.mubr.f32.mxu0 0.0
        %v2519 = vand.u32 %v271, 4294901760
        %2520 = vmatmul.mubr.f32.gmra.mrb[0].mxu0 %v2519
        %v2521 = vpop.f32.mrb[0].mxu0
        %v2522 = vadd.f32 %v2201, %v2521
        %v2523 = vpop.f32.mrb[0].mxu0
        %v2524 = vadd.f32 %v2203, %v2523
        %2525 = vmatprep.mubr.f32.mxu0 0.0
        %v2526 = vand.u32 %v272, 4294901760
        %2527 = vmatmul.mubr.f32.gmra.mrb[0].mxu0 %v2526
        %v2528 = vpop.f32.mrb[0].mxu0
        %v2529 = vadd.f32 %v2208, %v2528
        %v2530 = vpop.f32.mrb[0].mxu0
        %v2531 = vadd.f32 %v2210, %v2530
        %2532 = vmatprep.mubr.f32.mxu0 0.0
        %v2533 = vand.u32 %v273, 4294901760
        %2534 = vmatmul.mubr.f32.gmra.mrb[0].mxu0 %v2533
        %v2535 = vpop.f32.mrb[0].mxu0
        %v2536 = vadd.f32 %v2215, %v2535
        %v2537 = vpop.f32.mrb[0].mxu0
        %v2538 = vadd.f32 %v2217, %v2537
        %2539 = vmatprep.mubr.f32.mxu0 0.0
        %v2540 = vand.u32 %v274, 4294901760
        %2541 = vmatmul.mubr.f32.gmra.mrb[0].mxu0 %v2540
        %v2542 = vpop.f32.mrb[0].mxu0
        %v2543 = vadd.f32 %v2222, %v2542
        %v2544 = vpop.f32.mrb[0].mxu0
        %v2545 = vadd.f32 %v2224, %v2544
        %2546 = vmatprep.mubr.f32.mxu0 0.0
        %v2547 = vand.u32 %v275, 4294901760
        %2548 = vmatmul.mubr.f32.gmra.mrb[0].mxu0 %v2547
        %v2549 = vpop.f32.mrb[0].mxu0
        %v2550 = vadd.f32 %v2229, %v2549
        %v2551 = vpop.f32.mrb[0].mxu0
        %v2552 = vadd.f32 %v2231, %v2551
        %2553 = vmatprep.mubr.f32.mxu0 0.0
        %v2554 = vand.u32 %v276, 4294901760
        %2555 = vmatmul.mubr.f32.gmra.mrb[0].mxu0 %v2554
        %v2556 = vpop.f32.mrb[0].mxu0
        %v2557 = vadd.f32 %v2236, %v2556
        %v2558 = vpop.f32.mrb[0].mxu0
        %v2559 = vadd.f32 %v2238, %v2558
        %2560 = vmatprep.mubr.f32.mxu0 0.0
        %v2561 = vand.u32 %v277, 4294901760
        %2562 = vmatmul.mubr.f32.gmra.mrb[0].mxu0 %v2561
        %v2563 = vpop.f32.mrb[0].mxu0
        %v2564 = vadd.f32 %v2243, %v2563
        %v2565 = vpop.f32.mrb[0].mxu0
        %v2566 = vadd.f32 %v2245, %v2565
        %2567 = vmatprep.mubr.f32.mxu0 0.0
        %v2568 = vand.u32 %v278, 4294901760
        %2569 = vmatmul.mubr.f32.gmra.mrb[0].mxu0 %v2568
        %v2570 = vpop.f32.mrb[0].mxu0
        %v2571 = vadd.f32 %v2250, %v2570
        %v2572 = vpop.f32.mrb[0].mxu0
        %v2573 = vadd.f32 %v2252, %v2572
        %2574 = vmatprep.mubr.f32.mxu0 0.0
        %v2575 = vand.u32 %v279, 4294901760
        %2576 = vmatmul.mubr.f32.gmra.mrb[0].mxu0 %v2575
        %v2577 = vpop.f32.mrb[0].mxu0
        %v2578 = vadd.f32 %v2257, %v2577
        %v2579 = vpop.f32.mrb[0].mxu0
        %v2580 = vadd.f32 %v2259, %v2579
        %2581 = vmatprep.mubr.f32.mxu0 0.0
        %v2582 = vand.u32 %v280, 4294901760
        %2583 = vmatmul.mubr.f32.gmra.mrb[0].mxu0 %v2582
        %v2584 = vpop.f32.mrb[0].mxu0
        %v2585 = vadd.f32 %v2264, %v2584
        %v2586 = vpop.f32.mrb[0].mxu0
        %v2587 = vadd.f32 %v2266, %v2586
        %2588 = vmatprep.mubr.f32.mxu0 0.0
        %v2589 = vand.u32 %v281, 4294901760
        %2590 = vmatmul.mubr.f32.gmra.mrb[0].mxu0 %v2589
        %v2591 = vpop.f32.mrb[0].mxu0
        %v2592 = vadd.f32 %v2271, %v2591
        %v2593 = vpop.f32.mrb[0].mxu0
        %v2594 = vadd.f32 %v2273, %v2593
        %2595 = vmatprep.mubr.f32.mxu0 0.0
        %v2596 = vand.u32 %v282, 4294901760
        %2597 = vmatmul.mubr.f32.gmra.mrb[0].mxu0 %v2596
        %v2598 = vpop.f32.mrb[0].mxu0
        %v2599 = vadd.f32 %v2278, %v2598
        %v2600 = vpop.f32.mrb[0].mxu0
        %v2601 = vadd.f32 %v2280, %v2600
        %2602 = vmatprep.mubr.f32.mxu0 0.0
        %v2603 = vand.u32 %v283, 4294901760
        %2604 = vmatmul.mubr.f32.gmra.mrb[0].mxu0 %v2603
        %v2605 = vpop.f32.mrb[0].mxu0
        %v2606 = vadd.f32 %v2285, %v2605
        %v2607 = vpop.f32.mrb[0].mxu0
        %v2608 = vadd.f32 %v2287, %v2607
        %2609 = vmatprep.mubr.f32.mxu0 0.0
        %v2610 = vand.u32 %v284, 4294901760
        %2611 = vmatmul.mubr.f32.gmra.mrb[0].mxu0 %v2610
        %v2612 = vpop.f32.mrb[0].mxu0
        %v2613 = vadd.f32 %v2292, %v2612
        %v2614 = vpop.f32.mrb[0].mxu0
        %v2615 = vadd.f32 %v2294, %v2614
        %2616 = vmatprep.mubr.f32.mxu0 0.0
        %v2617 = vand.u32 %v285, 4294901760
        %2618 = vmatmul.mubr.f32.gmra.mrb[0].mxu0 %v2617
        %v2619 = vpop.f32.mrb[0].mxu0
        %v2620 = vadd.f32 %v2299, %v2619
        %v2621 = vpop.f32.mrb[0].mxu0
        %v2622 = vadd.f32 %v2301, %v2621
        %2623 = vmatprep.mubr.f32.mxu0 0.0
        %v2624 = vand.u32 %v286, 4294901760
        %2625 = vmatmul.mubr.f32.gmra.mrb[0].mxu0 %v2624
        %v2626 = vpop.f32.mrb[0].mxu0
        %v2627 = vadd.f32 %v2306, %v2626
        %v2628 = vpop.f32.mrb[0].mxu0
        %v2629 = vadd.f32 %v2308, %v2628
        %2630 = vmatprep.mubr.f32.mxu0 0.0
        %v2631 = vand.u32 %v287, 4294901760
        %2632 = vmatmul.mubr.f32.gmra.mrb[0].mxu0 %v2631
        %v2633 = vpop.f32.mrb[0].mxu0
        %v2634 = vadd.f32 %v2313, %v2633
        %v2635 = vpop.f32.mrb[0].mxu0
        %v2636 = vadd.f32 %v2315, %v2635
        %2637 = vmatprep.mubr.f32.mxu0 0.0
        %v2638 = vand.u32 %v288, 4294901760
        %2639 = vmatmul.mubr.f32.gmra.mrb[0].mxu0 %v2638
        %v2640 = vpop.f32.mrb[0].mxu0
        %v2641 = vadd.f32 %v2320, %v2640
        %v2642 = vpop.f32.mrb[0].mxu0
        %v2643 = vadd.f32 %v2322, %v2642
        %2644 = vmatprep.mubr.f32.mxu0 0.0
        %v2645 = vand.u32 %v289, 4294901760
        %2646 = vmatmul.mubr.f32.gmra.mrb[0].mxu0 %v2645
        %v2647 = vpop.f32.mrb[0].mxu0
        %v2648 = vadd.f32 %v2327, %v2647
        %v2649 = vpop.f32.mrb[0].mxu0
        %v2650 = vadd.f32 %v2329, %v2649
        %2651 = vmatprep.mubr.f32.mxu0 0.0
        %v2652 = vand.u32 %v290, 4294901760
        %2653 = vmatmul.mubr.f32.gmra.mrb[0].mxu0 %v2652
        %v2654 = vpop.f32.mrb[0].mxu0
        %v2655 = vadd.f32 %v2334, %v2654
        %v2656 = vpop.f32.mrb[0].mxu0
        %v2657 = vadd.f32 %v2336, %v2656
        %2658 = vmatprep.mubr.f32.mxu0 0.0
        %v2659 = vand.u32 %v291, 4294901760
        %2660 = vmatmul.mubr.f32.gmra.mrb[0].mxu0 %v2659
        %v2661 = vpop.f32.mrb[0].mxu0
        %v2662 = vadd.f32 %v2341, %v2661
        %v2663 = vpop.f32.mrb[0].mxu0
        %v2664 = vadd.f32 %v2343, %v2663
        %2665 = vdwg.mxu0
        %2666 = vmatprep.subr.mxu0 0.0
        %v2667 = vand.u32 %v228, 4294901760
        %2668 = vmatpush1.xpose.msra.mxu0 %v2667
        %2669 = vmatprep.subr.mxu0 0.0
        %v2670 = vand.u32 %v229, 4294901760
        %2671 = vmatpush1.xpose.msra.mxu0 %v2670
        %2672 = vmatprep.subr.mxu0 0.0
        %v2673 = vand.u32 %v230, 4294901760
        %2674 = vmatpush1.xpose.msra.mxu0 %v2673
        %2675 = vmatprep.subr.mxu0 0.0
        %v2676 = vand.u32 %v231, 4294901760
        %2677 = vmatpush1.xpose.msra.mxu0 %v2676
        %2678 = vmatprep.subr.mxu0 0.0
        %v2679 = vand.u32 %v232, 4294901760
        %2680 = vmatpush1.xpose.msra.mxu0 %v2679
        %2681 = vmatprep.subr.mxu0 0.0
        %v2682 = vand.u32 %v233, 4294901760
        %2683 = vmatpush1.xpose.msra.mxu0 %v2682
        %2684 = vmatprep.subr.mxu0 0.0
        %v2685 = vand.u32 %v234, 4294901760
        %2686 = vmatpush1.xpose.msra.mxu0 %v2685
        %2687 = vmatprep.subr.mxu0 0.0
        %v2688 = vand.u32 %v235, 4294901760
        %2689 = vmatpush1.xpose.msra.mxu0 %v2688
        %2690 = vmatprep.subr.mxu0 0.0
        %v2691 = vand.u32 %v236, 4294901760
        %2692 = vmatpush1.xpose.msra.mxu0 %v2691
        %2693 = vmatprep.subr.mxu0 0.0
        %v2694 = vand.u32 %v237, 4294901760
        %2695 = vmatpush1.xpose.msra.mxu0 %v2694
        %2696 = vmatprep.subr.mxu0 0.0
        %v2697 = vand.u32 %v238, 4294901760
        %2698 = vmatpush1.xpose.msra.mxu0 %v2697
        %2699 = vmatprep.subr.mxu0 0.0
        %v2700 = vand.u32 %v239, 4294901760
        %2701 = vmatpush1.xpose.msra.mxu0 %v2700
        %2702 = vmatprep.subr.mxu0 0.0
        %v2703 = vand.u32 %v240, 4294901760
        %2704 = vmatpush1.xpose.msra.mxu0 %v2703
        %2705 = vmatprep.subr.mxu0 0.0
        %v2706 = vand.u32 %v241, 4294901760
        %2707 = vmatpush1.xpose.msra.mxu0 %v2706
        %2708 = vmatprep.subr.mxu0 0.0
        %v2709 = vand.u32 %v242, 4294901760
        %2710 = vmatpush1.xpose.msra.mxu0 %v2709
        %2711 = vmatprep.subr.mxu0 0.0
        %v2712 = vand.u32 %v243, 4294901760
        %2713 = vmatpush1.xpose.msra.mxu0 %v2712
        %2714 = vmatprep.subr.mxu0 0.0
        %v2715 = vand.u32 %v244, 4294901760
        %2716 = vmatpush1.xpose.msra.mxu0 %v2715
        %2717 = vmatprep.subr.mxu0 0.0
        %v2718 = vand.u32 %v245, 4294901760
        %2719 = vmatpush1.xpose.msra.mxu0 %v2718
        %2720 = vmatprep.subr.mxu0 0.0
        %v2721 = vand.u32 %v246, 4294901760
        %2722 = vmatpush1.xpose.msra.mxu0 %v2721
        %2723 = vmatprep.subr.mxu0 0.0
        %v2724 = vand.u32 %v247, 4294901760
        %2725 = vmatpush1.xpose.msra.mxu0 %v2724
        %2726 = vmatprep.subr.mxu0 0.0
        %v2727 = vand.u32 %v248, 4294901760
        %2728 = vmatpush1.xpose.msra.mxu0 %v2727
        %2729 = vmatprep.subr.mxu0 0.0
        %v2730 = vand.u32 %v249, 4294901760
        %2731 = vmatpush1.xpose.msra.mxu0 %v2730
        %2732 = vmatprep.subr.mxu0 0.0
        %v2733 = vand.u32 %v250, 4294901760
        %2734 = vmatpush1.xpose.msra.mxu0 %v2733
        %2735 = vmatprep.subr.mxu0 0.0
        %v2736 = vand.u32 %v251, 4294901760
        %2737 = vmatpush1.xpose.msra.mxu0 %v2736
        %2738 = vmatprep.subr.mxu0 0.0
        %v2739 = vand.u32 %v252, 4294901760
        %2740 = vmatpush1.xpose.msra.mxu0 %v2739
        %2741 = vmatprep.subr.mxu0 0.0
        %v2742 = vand.u32 %v253, 4294901760
        %2743 = vmatpush1.xpose.msra.mxu0 %v2742
        %2744 = vmatprep.subr.mxu0 0.0
        %v2745 = vand.u32 %v254, 4294901760
        %2746 = vmatpush1.xpose.msra.mxu0 %v2745
        %2747 = vmatprep.subr.mxu0 0.0
        %v2748 = vand.u32 %v255, 4294901760
        %2749 = vmatpush1.xpose.msra.mxu0 %v2748
        %2750 = vmatprep.subr.mxu0 0.0
        %v2751 = vand.u32 %v256, 4294901760
        %2752 = vmatpush1.xpose.msra.mxu0 %v2751
        %2753 = vmatprep.subr.mxu0 0.0
        %v2754 = vand.u32 %v257, 4294901760
        %2755 = vmatpush1.xpose.msra.mxu0 %v2754
        %2756 = vmatprep.subr.mxu0 0.0
        %v2757 = vand.u32 %v258, 4294901760
        %2758 = vmatpush1.xpose.msra.mxu0 %v2757
        %2759 = vmatprep.subr.mxu0 0.0
        %v2760 = vand.u32 %v259, 4294901760
        %2761 = vmatpush1.xpose.msra.mxu0 %v2760
        %2762 = vmatprep.mubr.f32.mxu0 0.0
        %v2763 = vand.u32 %v260, 4294901760
        %v2764 = vsub.f32 %v260, %v2763
        %v2765 = vand.u32 %v2764, 4294901760
        %v2766 = vsub.f32 %v2764, %v2765
        %v2767 = vand.u32 %v2766, 4294901760
        %2768 = vmatmul.mubr.f32.gmra.mrb[0].mxu0 %v2767
        %v2769 = vpop.f32.mrb[0].mxu0
        %v2770 = vadd.f32 0.0, %v2769
        %v2771 = vpop.f32.mrb[0].mxu0
        %v2772 = vadd.f32 0.0, %v2771
        %2773 = vmatprep.mubr.f32.mxu0 0.0
        %v2774 = vand.u32 %v261, 4294901760
        %v2775 = vsub.f32 %v261, %v2774
        %v2776 = vand.u32 %v2775, 4294901760
        %v2777 = vsub.f32 %v2775, %v2776
        %v2778 = vand.u32 %v2777, 4294901760
        %2779 = vmatmul.mubr.f32.gmra.mrb[0].mxu0 %v2778
        %v2780 = vpop.f32.mrb[0].mxu0
        %v2781 = vadd.f32 0.0, %v2780
        %v2782 = vpop.f32.mrb[0].mxu0
        %v2783 = vadd.f32 0.0, %v2782
        %2784 = vmatprep.mubr.f32.mxu0 0.0
        %v2785 = vand.u32 %v262, 4294901760
        %v2786 = vsub.f32 %v262, %v2785
        %v2787 = vand.u32 %v2786, 4294901760
        %v2788 = vsub.f32 %v2786, %v2787
        %v2789 = vand.u32 %v2788, 4294901760
        %2790 = vmatmul.mubr.f32.gmra.mrb[0].mxu0 %v2789
        %v2791 = vpop.f32.mrb[0].mxu0
        %v2792 = vadd.f32 0.0, %v2791
        %v2793 = vpop.f32.mrb[0].mxu0
        %v2794 = vadd.f32 0.0, %v2793
        %2795 = vmatprep.mubr.f32.mxu0 0.0
        %v2796 = vand.u32 %v263, 4294901760
        %v2797 = vsub.f32 %v263, %v2796
        %v2798 = vand.u32 %v2797, 4294901760
        %v2799 = vsub.f32 %v2797, %v2798
        %v2800 = vand.u32 %v2799, 4294901760
        %2801 = vmatmul.mubr.f32.gmra.mrb[0].mxu0 %v2800
        %v2802 = vpop.f32.mrb[0].mxu0
        %v2803 = vadd.f32 0.0, %v2802
        %v2804 = vpop.f32.mrb[0].mxu0
        %v2805 = vadd.f32 0.0, %v2804
        %2806 = vmatprep.mubr.f32.mxu0 0.0
        %v2807 = vand.u32 %v264, 4294901760
        %v2808 = vsub.f32 %v264, %v2807
        %v2809 = vand.u32 %v2808, 4294901760
        %v2810 = vsub.f32 %v2808, %v2809
        %v2811 = vand.u32 %v2810, 4294901760
        %2812 = vmatmul.mubr.f32.gmra.mrb[0].mxu0 %v2811
        %v2813 = vpop.f32.mrb[0].mxu0
        %v2814 = vadd.f32 0.0, %v2813
        %v2815 = vpop.f32.mrb[0].mxu0
        %v2816 = vadd.f32 0.0, %v2815
        %2817 = vmatprep.mubr.f32.mxu0 0.0
        %v2818 = vand.u32 %v265, 4294901760
        %v2819 = vsub.f32 %v265, %v2818
        %v2820 = vand.u32 %v2819, 4294901760
        %v2821 = vsub.f32 %v2819, %v2820
        %v2822 = vand.u32 %v2821, 4294901760
        %2823 = vmatmul.mubr.f32.gmra.mrb[0].mxu0 %v2822
        %v2824 = vpop.f32.mrb[0].mxu0
        %v2825 = vadd.f32 0.0, %v2824
        %v2826 = vpop.f32.mrb[0].mxu0
        %v2827 = vadd.f32 0.0, %v2826
        %2828 = vmatprep.mubr.f32.mxu0 0.0
        %v2829 = vand.u32 %v266, 4294901760
        %v2830 = vsub.f32 %v266, %v2829
        %v2831 = vand.u32 %v2830, 4294901760
        %v2832 = vsub.f32 %v2830, %v2831
        %v2833 = vand.u32 %v2832, 4294901760
        %2834 = vmatmul.mubr.f32.gmra.mrb[0].mxu0 %v2833
        %v2835 = vpop.f32.mrb[0].mxu0
        %v2836 = vadd.f32 0.0, %v2835
        %v2837 = vpop.f32.mrb[0].mxu0
        %v2838 = vadd.f32 0.0, %v2837
        %2839 = vmatprep.mubr.f32.mxu0 0.0
        %v2840 = vand.u32 %v267, 4294901760
        %v2841 = vsub.f32 %v267, %v2840
        %v2842 = vand.u32 %v2841, 4294901760
        %v2843 = vsub.f32 %v2841, %v2842
        %v2844 = vand.u32 %v2843, 4294901760
        %2845 = vmatmul.mubr.f32.gmra.mrb[0].mxu0 %v2844
        %v2846 = vpop.f32.mrb[0].mxu0
        %v2847 = vadd.f32 0.0, %v2846
        %v2848 = vpop.f32.mrb[0].mxu0
        %v2849 = vadd.f32 0.0, %v2848
        %2850 = vmatprep.mubr.f32.mxu0 0.0
        %v2851 = vand.u32 %v268, 4294901760
        %v2852 = vsub.f32 %v268, %v2851
        %v2853 = vand.u32 %v2852, 4294901760
        %v2854 = vsub.f32 %v2852, %v2853
        %v2855 = vand.u32 %v2854, 4294901760
        %2856 = vmatmul.mubr.f32.gmra.mrb[0].mxu0 %v2855
        %v2857 = vpop.f32.mrb[0].mxu0
        %v2858 = vadd.f32 0.0, %v2857
        %v2859 = vpop.f32.mrb[0].mxu0
        %v2860 = vadd.f32 0.0, %v2859
        %2861 = vmatprep.mubr.f32.mxu0 0.0
        %v2862 = vand.u32 %v269, 4294901760
        %v2863 = vsub.f32 %v269, %v2862
        %v2864 = vand.u32 %v2863, 4294901760
        %v2865 = vsub.f32 %v2863, %v2864
        %v2866 = vand.u32 %v2865, 4294901760
        %2867 = vmatmul.mubr.f32.gmra.mrb[0].mxu0 %v2866
        %v2868 = vpop.f32.mrb[0].mxu0
        %v2869 = vadd.f32 0.0, %v2868
        %v2870 = vpop.f32.mrb[0].mxu0
        %v2871 = vadd.f32 0.0, %v2870
        %2872 = vmatprep.mubr.f32.mxu0 0.0
        %v2873 = vand.u32 %v270, 4294901760
        %v2874 = vsub.f32 %v270, %v2873
        %v2875 = vand.u32 %v2874, 4294901760
        %v2876 = vsub.f32 %v2874, %v2875
        %v2877 = vand.u32 %v2876, 4294901760
        %2878 = vmatmul.mubr.f32.gmra.mrb[0].mxu0 %v2877
        %v2879 = vpop.f32.mrb[0].mxu0
        %v2880 = vadd.f32 0.0, %v2879
        %v2881 = vpop.f32.mrb[0].mxu0
        %v2882 = vadd.f32 0.0, %v2881
        %2883 = vmatprep.mubr.f32.mxu0 0.0
        %v2884 = vand.u32 %v271, 4294901760
        %v2885 = vsub.f32 %v271, %v2884
        %v2886 = vand.u32 %v2885, 4294901760
        %v2887 = vsub.f32 %v2885, %v2886
        %v2888 = vand.u32 %v2887, 4294901760
        %2889 = vmatmul.mubr.f32.gmra.mrb[0].mxu0 %v2888
        %v2890 = vpop.f32.mrb[0].mxu0
        %v2891 = vadd.f32 0.0, %v2890
        %v2892 = vpop.f32.mrb[0].mxu0
        %v2893 = vadd.f32 0.0, %v2892
        %2894 = vmatprep.mubr.f32.mxu0 0.0
        %v2895 = vand.u32 %v272, 4294901760
        %v2896 = vsub.f32 %v272, %v2895
        %v2897 = vand.u32 %v2896, 4294901760
        %v2898 = vsub.f32 %v2896, %v2897
        %v2899 = vand.u32 %v2898, 4294901760
        %2900 = vmatmul.mubr.f32.gmra.mrb[0].mxu0 %v2899
        %v2901 = vpop.f32.mrb[0].mxu0
        %v2902 = vadd.f32 0.0, %v2901
        %v2903 = vpop.f32.mrb[0].mxu0
        %v2904 = vadd.f32 0.0, %v2903
        %2905 = vmatprep.mubr.f32.mxu0 0.0
        %v2906 = vand.u32 %v273, 4294901760
        %v2907 = vsub.f32 %v273, %v2906
        %v2908 = vand.u32 %v2907, 4294901760
        %v2909 = vsub.f32 %v2907, %v2908
        %v2910 = vand.u32 %v2909, 4294901760
        %2911 = vmatmul.mubr.f32.gmra.mrb[0].mxu0 %v2910
        %v2912 = vpop.f32.mrb[0].mxu0
        %v2913 = vadd.f32 0.0, %v2912
        %v2914 = vpop.f32.mrb[0].mxu0
        %v2915 = vadd.f32 0.0, %v2914
        %2916 = vmatprep.mubr.f32.mxu0 0.0
        %v2917 = vand.u32 %v274, 4294901760
        %v2918 = vsub.f32 %v274, %v2917
        %v2919 = vand.u32 %v2918, 4294901760
        %v2920 = vsub.f32 %v2918, %v2919
        %v2921 = vand.u32 %v2920, 4294901760
        %2922 = vmatmul.mubr.f32.gmra.mrb[0].mxu0 %v2921
        %v2923 = vpop.f32.mrb[0].mxu0
        %v2924 = vadd.f32 0.0, %v2923
        %v2925 = vpop.f32.mrb[0].mxu0
        %v2926 = vadd.f32 0.0, %v2925
        %2927 = vmatprep.mubr.f32.mxu0 0.0
        %v2928 = vand.u32 %v275, 4294901760
        %v2929 = vsub.f32 %v275, %v2928
        %v2930 = vand.u32 %v2929, 4294901760
        %v2931 = vsub.f32 %v2929, %v2930
        %v2932 = vand.u32 %v2931, 4294901760
        %2933 = vmatmul.mubr.f32.gmra.mrb[0].mxu0 %v2932
        %v2934 = vpop.f32.mrb[0].mxu0
        %v2935 = vadd.f32 0.0, %v2934
        %v2936 = vpop.f32.mrb[0].mxu0
        %v2937 = vadd.f32 0.0, %v2936
        %2938 = vmatprep.mubr.f32.mxu0 0.0
        %v2939 = vand.u32 %v276, 4294901760
        %v2940 = vsub.f32 %v276, %v2939
        %v2941 = vand.u32 %v2940, 4294901760
        %v2942 = vsub.f32 %v2940, %v2941
        %v2943 = vand.u32 %v2942, 4294901760
        %2944 = vmatmul.mubr.f32.gmra.mrb[0].mxu0 %v2943
        %v2945 = vpop.f32.mrb[0].mxu0
        %v2946 = vadd.f32 0.0, %v2945
        %v2947 = vpop.f32.mrb[0].mxu0
        %v2948 = vadd.f32 0.0, %v2947
        %2949 = vmatprep.mubr.f32.mxu0 0.0
        %v2950 = vand.u32 %v277, 4294901760
        %v2951 = vsub.f32 %v277, %v2950
        %v2952 = vand.u32 %v2951, 4294901760
        %v2953 = vsub.f32 %v2951, %v2952
        %v2954 = vand.u32 %v2953, 4294901760
        %2955 = vmatmul.mubr.f32.gmra.mrb[0].mxu0 %v2954
        %v2956 = vpop.f32.mrb[0].mxu0
        %v2957 = vadd.f32 0.0, %v2956
        %v2958 = vpop.f32.mrb[0].mxu0
        %v2959 = vadd.f32 0.0, %v2958
        %2960 = vmatprep.mubr.f32.mxu0 0.0
        %v2961 = vand.u32 %v278, 4294901760
        %v2962 = vsub.f32 %v278, %v2961
        %v2963 = vand.u32 %v2962, 4294901760
        %v2964 = vsub.f32 %v2962, %v2963
        %v2965 = vand.u32 %v2964, 4294901760
        %2966 = vmatmul.mubr.f32.gmra.mrb[0].mxu0 %v2965
        %v2967 = vpop.f32.mrb[0].mxu0
        %v2968 = vadd.f32 0.0, %v2967
        %v2969 = vpop.f32.mrb[0].mxu0
        %v2970 = vadd.f32 0.0, %v2969
        %2971 = vmatprep.mubr.f32.mxu0 0.0
        %v2972 = vand.u32 %v279, 4294901760
        %v2973 = vsub.f32 %v279, %v2972
        %v2974 = vand.u32 %v2973, 4294901760
        %v2975 = vsub.f32 %v2973, %v2974
        %v2976 = vand.u32 %v2975, 4294901760
        %2977 = vmatmul.mubr.f32.gmra.mrb[0].mxu0 %v2976
        %v2978 = vpop.f32.mrb[0].mxu0
        %v2979 = vadd.f32 0.0, %v2978
        %v2980 = vpop.f32.mrb[0].mxu0
        %v2981 = vadd.f32 0.0, %v2980
        %2982 = vmatprep.mubr.f32.mxu0 0.0
        %v2983 = vand.u32 %v280, 4294901760
        %v2984 = vsub.f32 %v280, %v2983
        %v2985 = vand.u32 %v2984, 4294901760
        %v2986 = vsub.f32 %v2984, %v2985
        %v2987 = vand.u32 %v2986, 4294901760
        %2988 = vmatmul.mubr.f32.gmra.mrb[0].mxu0 %v2987
        %v2989 = vpop.f32.mrb[0].mxu0
        %v2990 = vadd.f32 0.0, %v2989
        %v2991 = vpop.f32.mrb[0].mxu0
        %v2992 = vadd.f32 0.0, %v2991
        %2993 = vmatprep.mubr.f32.mxu0 0.0
        %v2994 = vand.u32 %v281, 4294901760
        %v2995 = vsub.f32 %v281, %v2994
        %v2996 = vand.u32 %v2995, 4294901760
        %v2997 = vsub.f32 %v2995, %v2996
        %v2998 = vand.u32 %v2997, 4294901760
        %2999 = vmatmul.mubr.f32.gmra.mrb[0].mxu0 %v2998
        %v3000 = vpop.f32.mrb[0].mxu0
        %v3001 = vadd.f32 0.0, %v3000
        %v3002 = vpop.f32.mrb[0].mxu0
        %v3003 = vadd.f32 0.0, %v3002
        %3004 = vmatprep.mubr.f32.mxu0 0.0
        %v3005 = vand.u32 %v282, 4294901760
        %v3006 = vsub.f32 %v282, %v3005
        %v3007 = vand.u32 %v3006, 4294901760
        %v3008 = vsub.f32 %v3006, %v3007
        %v3009 = vand.u32 %v3008, 4294901760
        %3010 = vmatmul.mubr.f32.gmra.mrb[0].mxu0 %v3009
        %v3011 = vpop.f32.mrb[0].mxu0
        %v3012 = vadd.f32 0.0, %v3011
        %v3013 = vpop.f32.mrb[0].mxu0
        %v3014 = vadd.f32 0.0, %v3013
        %3015 = vmatprep.mubr.f32.mxu0 0.0
        %v3016 = vand.u32 %v283, 4294901760
        %v3017 = vsub.f32 %v283, %v3016
        %v3018 = vand.u32 %v3017, 4294901760
        %v3019 = vsub.f32 %v3017, %v3018
        %v3020 = vand.u32 %v3019, 4294901760
        %3021 = vmatmul.mubr.f32.gmra.mrb[0].mxu0 %v3020
        %v3022 = vpop.f32.mrb[0].mxu0
        %v3023 = vadd.f32 0.0, %v3022
        %v3024 = vpop.f32.mrb[0].mxu0
        %v3025 = vadd.f32 0.0, %v3024
        %3026 = vmatprep.mubr.f32.mxu0 0.0
        %v3027 = vand.u32 %v284, 4294901760
        %v3028 = vsub.f32 %v284, %v3027
        %v3029 = vand.u32 %v3028, 4294901760
        %v3030 = vsub.f32 %v3028, %v3029
        %v3031 = vand.u32 %v3030, 4294901760
        %3032 = vmatmul.mubr.f32.gmra.mrb[0].mxu0 %v3031
        %v3033 = vpop.f32.mrb[0].mxu0
        %v3034 = vadd.f32 0.0, %v3033
        %v3035 = vpop.f32.mrb[0].mxu0
        %v3036 = vadd.f32 0.0, %v3035
        %3037 = vmatprep.mubr.f32.mxu0 0.0
        %v3038 = vand.u32 %v285, 4294901760
        %v3039 = vsub.f32 %v285, %v3038
        %v3040 = vand.u32 %v3039, 4294901760
        %v3041 = vsub.f32 %v3039, %v3040
        %v3042 = vand.u32 %v3041, 4294901760
        %3043 = vmatmul.mubr.f32.gmra.mrb[0].mxu0 %v3042
        %v3044 = vpop.f32.mrb[0].mxu0
        %v3045 = vadd.f32 0.0, %v3044
        %v3046 = vpop.f32.mrb[0].mxu0
        %v3047 = vadd.f32 0.0, %v3046
        %3048 = vmatprep.mubr.f32.mxu0 0.0
        %v3049 = vand.u32 %v286, 4294901760
        %v3050 = vsub.f32 %v286, %v3049
        %v3051 = vand.u32 %v3050, 4294901760
        %v3052 = vsub.f32 %v3050, %v3051
        %v3053 = vand.u32 %v3052, 4294901760
        %3054 = vmatmul.mubr.f32.gmra.mrb[0].mxu0 %v3053
        %v3055 = vpop.f32.mrb[0].mxu0
        %v3056 = vadd.f32 0.0, %v3055
        %v3057 = vpop.f32.mrb[0].mxu0
        %v3058 = vadd.f32 0.0, %v3057
        %3059 = vmatprep.mubr.f32.mxu0 0.0
        %v3060 = vand.u32 %v287, 4294901760
        %v3061 = vsub.f32 %v287, %v3060
        %v3062 = vand.u32 %v3061, 4294901760
        %v3063 = vsub.f32 %v3061, %v3062
        %v3064 = vand.u32 %v3063, 4294901760
        %3065 = vmatmul.mubr.f32.gmra.mrb[0].mxu0 %v3064
        %v3066 = vpop.f32.mrb[0].mxu0
        %v3067 = vadd.f32 0.0, %v3066
        %v3068 = vpop.f32.mrb[0].mxu0
        %v3069 = vadd.f32 0.0, %v3068
        %3070 = vmatprep.mubr.f32.mxu0 0.0
        %v3071 = vand.u32 %v288, 4294901760
        %v3072 = vsub.f32 %v288, %v3071
        %v3073 = vand.u32 %v3072, 4294901760
        %v3074 = vsub.f32 %v3072, %v3073
        %v3075 = vand.u32 %v3074, 4294901760
        %3076 = vmatmul.mubr.f32.gmra.mrb[0].mxu0 %v3075
        %v3077 = vpop.f32.mrb[0].mxu0
        %v3078 = vadd.f32 0.0, %v3077
        %v3079 = vpop.f32.mrb[0].mxu0
        %v3080 = vadd.f32 0.0, %v3079
        %3081 = vmatprep.mubr.f32.mxu0 0.0
        %v3082 = vand.u32 %v289, 4294901760
        %v3083 = vsub.f32 %v289, %v3082
        %v3084 = vand.u32 %v3083, 4294901760
        %v3085 = vsub.f32 %v3083, %v3084
        %v3086 = vand.u32 %v3085, 4294901760
        %3087 = vmatmul.mubr.f32.gmra.mrb[0].mxu0 %v3086
        %v3088 = vpop.f32.mrb[0].mxu0
        %v3089 = vadd.f32 0.0, %v3088
        %v3090 = vpop.f32.mrb[0].mxu0
        %v3091 = vadd.f32 0.0, %v3090
        %3092 = vmatprep.mubr.f32.mxu0 0.0
        %v3093 = vand.u32 %v290, 4294901760
        %v3094 = vsub.f32 %v290, %v3093
        %v3095 = vand.u32 %v3094, 4294901760
        %v3096 = vsub.f32 %v3094, %v3095
        %v3097 = vand.u32 %v3096, 4294901760
        %3098 = vmatmul.mubr.f32.gmra.mrb[0].mxu0 %v3097
        %v3099 = vpop.f32.mrb[0].mxu0
        %v3100 = vadd.f32 0.0, %v3099
        %v3101 = vpop.f32.mrb[0].mxu0
        %v3102 = vadd.f32 0.0, %v3101
        %3103 = vmatprep.mubr.f32.mxu0 0.0
        %v3104 = vand.u32 %v291, 4294901760
        %v3105 = vsub.f32 %v291, %v3104
        %v3106 = vand.u32 %v3105, 4294901760
        %v3107 = vsub.f32 %v3105, %v3106
        %v3108 = vand.u32 %v3107, 4294901760
        %3109 = vmatmul.mubr.f32.gmra.mrb[0].mxu0 %v3108
        %v3110 = vpop.f32.mrb[0].mxu0
        %v3111 = vadd.f32 0.0, %v3110
        %v3112 = vpop.f32.mrb[0].mxu0
        %v3113 = vadd.f32 0.0, %v3112
        %3114 = vdwg.mxu0
        %3115 = vmatprep.subr.mxu0 0.0
        %v3116 = vand.u32 %v228, 4294901760
        %v3117 = vsub.f32 %v228, %v3116
        %v3118 = vand.u32 %v3117, 4294901760
        %v3119 = vsub.f32 %v3117, %v3118
        %v3120 = vand.u32 %v3119, 4294901760
        %3121 = vmatpush1.xpose.msra.mxu0 %v3120
        %3122 = vmatprep.subr.mxu0 0.0
        %v3123 = vand.u32 %v229, 4294901760
        %v3124 = vsub.f32 %v229, %v3123
        %v3125 = vand.u32 %v3124, 4294901760
        %v3126 = vsub.f32 %v3124, %v3125
        %v3127 = vand.u32 %v3126, 4294901760
        %3128 = vmatpush1.xpose.msra.mxu0 %v3127
        %3129 = vmatprep.subr.mxu0 0.0
        %v3130 = vand.u32 %v230, 4294901760
        %v3131 = vsub.f32 %v230, %v3130
        %v3132 = vand.u32 %v3131, 4294901760
        %v3133 = vsub.f32 %v3131, %v3132
        %v3134 = vand.u32 %v3133, 4294901760
        %3135 = vmatpush1.xpose.msra.mxu0 %v3134
        %3136 = vmatprep.subr.mxu0 0.0
        %v3137 = vand.u32 %v231, 4294901760
        %v3138 = vsub.f32 %v231, %v3137
        %v3139 = vand.u32 %v3138, 4294901760
        %v3140 = vsub.f32 %v3138, %v3139
        %v3141 = vand.u32 %v3140, 4294901760
        %3142 = vmatpush1.xpose.msra.mxu0 %v3141
        %3143 = vmatprep.subr.mxu0 0.0
        %v3144 = vand.u32 %v232, 4294901760
        %v3145 = vsub.f32 %v232, %v3144
        %v3146 = vand.u32 %v3145, 4294901760
        %v3147 = vsub.f32 %v3145, %v3146
        %v3148 = vand.u32 %v3147, 4294901760
        %3149 = vmatpush1.xpose.msra.mxu0 %v3148
        %3150 = vmatprep.subr.mxu0 0.0
        %v3151 = vand.u32 %v233, 4294901760
        %v3152 = vsub.f32 %v233, %v3151
        %v3153 = vand.u32 %v3152, 4294901760
        %v3154 = vsub.f32 %v3152, %v3153
        %v3155 = vand.u32 %v3154, 4294901760
        %3156 = vmatpush1.xpose.msra.mxu0 %v3155
        %3157 = vmatprep.subr.mxu0 0.0
        %v3158 = vand.u32 %v234, 4294901760
        %v3159 = vsub.f32 %v234, %v3158
        %v3160 = vand.u32 %v3159, 4294901760
        %v3161 = vsub.f32 %v3159, %v3160
        %v3162 = vand.u32 %v3161, 4294901760
        %3163 = vmatpush1.xpose.msra.mxu0 %v3162
        %3164 = vmatprep.subr.mxu0 0.0
        %v3165 = vand.u32 %v235, 4294901760
        %v3166 = vsub.f32 %v235, %v3165
        %v3167 = vand.u32 %v3166, 4294901760
        %v3168 = vsub.f32 %v3166, %v3167
        %v3169 = vand.u32 %v3168, 4294901760
        %3170 = vmatpush1.xpose.msra.mxu0 %v3169
        %3171 = vmatprep.subr.mxu0 0.0
        %v3172 = vand.u32 %v236, 4294901760
        %v3173 = vsub.f32 %v236, %v3172
        %v3174 = vand.u32 %v3173, 4294901760
        %v3175 = vsub.f32 %v3173, %v3174
        %v3176 = vand.u32 %v3175, 4294901760
        %3177 = vmatpush1.xpose.msra.mxu0 %v3176
        %3178 = vmatprep.subr.mxu0 0.0
        %v3179 = vand.u32 %v237, 4294901760
        %v3180 = vsub.f32 %v237, %v3179
        %v3181 = vand.u32 %v3180, 4294901760
        %v3182 = vsub.f32 %v3180, %v3181
        %v3183 = vand.u32 %v3182, 4294901760
        %3184 = vmatpush1.xpose.msra.mxu0 %v3183
        %3185 = vmatprep.subr.mxu0 0.0
        %v3186 = vand.u32 %v238, 4294901760
        %v3187 = vsub.f32 %v238, %v3186
        %v3188 = vand.u32 %v3187, 4294901760
        %v3189 = vsub.f32 %v3187, %v3188
        %v3190 = vand.u32 %v3189, 4294901760
        %3191 = vmatpush1.xpose.msra.mxu0 %v3190
        %3192 = vmatprep.subr.mxu0 0.0
        %v3193 = vand.u32 %v239, 4294901760
        %v3194 = vsub.f32 %v239, %v3193
        %v3195 = vand.u32 %v3194, 4294901760
        %v3196 = vsub.f32 %v3194, %v3195
        %v3197 = vand.u32 %v3196, 4294901760
        %3198 = vmatpush1.xpose.msra.mxu0 %v3197
        %3199 = vmatprep.subr.mxu0 0.0
        %v3200 = vand.u32 %v240, 4294901760
        %v3201 = vsub.f32 %v240, %v3200
        %v3202 = vand.u32 %v3201, 4294901760
        %v3203 = vsub.f32 %v3201, %v3202
        %v3204 = vand.u32 %v3203, 4294901760
        %3205 = vmatpush1.xpose.msra.mxu0 %v3204
        %3206 = vmatprep.subr.mxu0 0.0
        %v3207 = vand.u32 %v241, 4294901760
        %v3208 = vsub.f32 %v241, %v3207
        %v3209 = vand.u32 %v3208, 4294901760
        %v3210 = vsub.f32 %v3208, %v3209
        %v3211 = vand.u32 %v3210, 4294901760
        %3212 = vmatpush1.xpose.msra.mxu0 %v3211
        %3213 = vmatprep.subr.mxu0 0.0
        %v3214 = vand.u32 %v242, 4294901760
        %v3215 = vsub.f32 %v242, %v3214
        %v3216 = vand.u32 %v3215, 4294901760
        %v3217 = vsub.f32 %v3215, %v3216
        %v3218 = vand.u32 %v3217, 4294901760
        %3219 = vmatpush1.xpose.msra.mxu0 %v3218
        %3220 = vmatprep.subr.mxu0 0.0
        %v3221 = vand.u32 %v243, 4294901760
        %v3222 = vsub.f32 %v243, %v3221
        %v3223 = vand.u32 %v3222, 4294901760
        %v3224 = vsub.f32 %v3222, %v3223
        %v3225 = vand.u32 %v3224, 4294901760
        %3226 = vmatpush1.xpose.msra.mxu0 %v3225
        %3227 = vmatprep.subr.mxu0 0.0
        %v3228 = vand.u32 %v244, 4294901760
        %v3229 = vsub.f32 %v244, %v3228
        %v3230 = vand.u32 %v3229, 4294901760
        %v3231 = vsub.f32 %v3229, %v3230
        %v3232 = vand.u32 %v3231, 4294901760
        %3233 = vmatpush1.xpose.msra.mxu0 %v3232
        %3234 = vmatprep.subr.mxu0 0.0
        %v3235 = vand.u32 %v245, 4294901760
        %v3236 = vsub.f32 %v245, %v3235
        %v3237 = vand.u32 %v3236, 4294901760
        %v3238 = vsub.f32 %v3236, %v3237
        %v3239 = vand.u32 %v3238, 4294901760
        %3240 = vmatpush1.xpose.msra.mxu0 %v3239
        %3241 = vmatprep.subr.mxu0 0.0
        %v3242 = vand.u32 %v246, 4294901760
        %v3243 = vsub.f32 %v246, %v3242
        %v3244 = vand.u32 %v3243, 4294901760
        %v3245 = vsub.f32 %v3243, %v3244
        %v3246 = vand.u32 %v3245, 4294901760
        %3247 = vmatpush1.xpose.msra.mxu0 %v3246
        %3248 = vmatprep.subr.mxu0 0.0
        %v3249 = vand.u32 %v247, 4294901760
        %v3250 = vsub.f32 %v247, %v3249
        %v3251 = vand.u32 %v3250, 4294901760
        %v3252 = vsub.f32 %v3250, %v3251
        %v3253 = vand.u32 %v3252, 4294901760
        %3254 = vmatpush1.xpose.msra.mxu0 %v3253
        %3255 = vmatprep.subr.mxu0 0.0
        %v3256 = vand.u32 %v248, 4294901760
        %v3257 = vsub.f32 %v248, %v3256
        %v3258 = vand.u32 %v3257, 4294901760
        %v3259 = vsub.f32 %v3257, %v3258
        %v3260 = vand.u32 %v3259, 4294901760
        %3261 = vmatpush1.xpose.msra.mxu0 %v3260
        %3262 = vmatprep.subr.mxu0 0.0
        %v3263 = vand.u32 %v249, 4294901760
        %v3264 = vsub.f32 %v249, %v3263
        %v3265 = vand.u32 %v3264, 4294901760
        %v3266 = vsub.f32 %v3264, %v3265
        %v3267 = vand.u32 %v3266, 4294901760
        %3268 = vmatpush1.xpose.msra.mxu0 %v3267
        %3269 = vmatprep.subr.mxu0 0.0
        %v3270 = vand.u32 %v250, 4294901760
        %v3271 = vsub.f32 %v250, %v3270
        %v3272 = vand.u32 %v3271, 4294901760
        %v3273 = vsub.f32 %v3271, %v3272
        %v3274 = vand.u32 %v3273, 4294901760
        %3275 = vmatpush1.xpose.msra.mxu0 %v3274
        %3276 = vmatprep.subr.mxu0 0.0
        %v3277 = vand.u32 %v251, 4294901760
        %v3278 = vsub.f32 %v251, %v3277
        %v3279 = vand.u32 %v3278, 4294901760
        %v3280 = vsub.f32 %v3278, %v3279
        %v3281 = vand.u32 %v3280, 4294901760
        %3282 = vmatpush1.xpose.msra.mxu0 %v3281
        %3283 = vmatprep.subr.mxu0 0.0
        %v3284 = vand.u32 %v252, 4294901760
        %v3285 = vsub.f32 %v252, %v3284
        %v3286 = vand.u32 %v3285, 4294901760
        %v3287 = vsub.f32 %v3285, %v3286
        %v3288 = vand.u32 %v3287, 4294901760
        %3289 = vmatpush1.xpose.msra.mxu0 %v3288
        %3290 = vmatprep.subr.mxu0 0.0
        %v3291 = vand.u32 %v253, 4294901760
        %v3292 = vsub.f32 %v253, %v3291
        %v3293 = vand.u32 %v3292, 4294901760
        %v3294 = vsub.f32 %v3292, %v3293
        %v3295 = vand.u32 %v3294, 4294901760
        %3296 = vmatpush1.xpose.msra.mxu0 %v3295
        %3297 = vmatprep.subr.mxu0 0.0
        %v3298 = vand.u32 %v254, 4294901760
        %v3299 = vsub.f32 %v254, %v3298
        %v3300 = vand.u32 %v3299, 4294901760
        %v3301 = vsub.f32 %v3299, %v3300
        %v3302 = vand.u32 %v3301, 4294901760
        %3303 = vmatpush1.xpose.msra.mxu0 %v3302
        %3304 = vmatprep.subr.mxu0 0.0
        %v3305 = vand.u32 %v255, 4294901760
        %v3306 = vsub.f32 %v255, %v3305
        %v3307 = vand.u32 %v3306, 4294901760
        %v3308 = vsub.f32 %v3306, %v3307
        %v3309 = vand.u32 %v3308, 4294901760
        %3310 = vmatpush1.xpose.msra.mxu0 %v3309
        %3311 = vmatprep.subr.mxu0 0.0
        %v3312 = vand.u32 %v256, 4294901760
        %v3313 = vsub.f32 %v256, %v3312
        %v3314 = vand.u32 %v3313, 4294901760
        %v3315 = vsub.f32 %v3313, %v3314
        %v3316 = vand.u32 %v3315, 4294901760
        %3317 = vmatpush1.xpose.msra.mxu0 %v3316
        %3318 = vmatprep.subr.mxu0 0.0
        %v3319 = vand.u32 %v257, 4294901760
        %v3320 = vsub.f32 %v257, %v3319
        %v3321 = vand.u32 %v3320, 4294901760
        %v3322 = vsub.f32 %v3320, %v3321
        %v3323 = vand.u32 %v3322, 4294901760
        %3324 = vmatpush1.xpose.msra.mxu0 %v3323
        %3325 = vmatprep.subr.mxu0 0.0
        %v3326 = vand.u32 %v258, 4294901760
        %v3327 = vsub.f32 %v258, %v3326
        %v3328 = vand.u32 %v3327, 4294901760
        %v3329 = vsub.f32 %v3327, %v3328
        %v3330 = vand.u32 %v3329, 4294901760
        %3331 = vmatpush1.xpose.msra.mxu0 %v3330
        %3332 = vmatprep.subr.mxu0 0.0
        %v3333 = vand.u32 %v259, 4294901760
        %v3334 = vsub.f32 %v259, %v3333
        %v3335 = vand.u32 %v3334, 4294901760
        %v3336 = vsub.f32 %v3334, %v3335
        %v3337 = vand.u32 %v3336, 4294901760
        %3338 = vmatpush1.xpose.msra.mxu0 %v3337
        %3339 = vmatprep.mubr.f32.mxu0 0.0
        %v3340 = vand.u32 %v260, 4294901760
        %3341 = vmatmul.mubr.f32.gmra.mrb[0].mxu0 %v3340
        %v3342 = vpop.f32.mrb[0].mxu0
        %v3343 = vadd.f32 %v2770, %v3342
        %v3344 = vpop.f32.mrb[0].mxu0
        %v3345 = vadd.f32 %v2772, %v3344
        %3346 = vmatprep.mubr.f32.mxu0 0.0
        %v3347 = vand.u32 %v261, 4294901760
        %3348 = vmatmul.mubr.f32.gmra.mrb[0].mxu0 %v3347
        %v3349 = vpop.f32.mrb[0].mxu0
        %v3350 = vadd.f32 %v2781, %v3349
        %v3351 = vpop.f32.mrb[0].mxu0
        %v3352 = vadd.f32 %v2783, %v3351
        %3353 = vmatprep.mubr.f32.mxu0 0.0
        %v3354 = vand.u32 %v262, 4294901760
        %3355 = vmatmul.mubr.f32.gmra.mrb[0].mxu0 %v3354
        %v3356 = vpop.f32.mrb[0].mxu0
        %v3357 = vadd.f32 %v2792, %v3356
        %v3358 = vpop.f32.mrb[0].mxu0
        %v3359 = vadd.f32 %v2794, %v3358
        %3360 = vmatprep.mubr.f32.mxu0 0.0
        %v3361 = vand.u32 %v263, 4294901760
        %3362 = vmatmul.mubr.f32.gmra.mrb[0].mxu0 %v3361
        %v3363 = vpop.f32.mrb[0].mxu0
        %v3364 = vadd.f32 %v2803, %v3363
        %v3365 = vpop.f32.mrb[0].mxu0
        %v3366 = vadd.f32 %v2805, %v3365
        %3367 = vmatprep.mubr.f32.mxu0 0.0
        %v3368 = vand.u32 %v264, 4294901760
        %3369 = vmatmul.mubr.f32.gmra.mrb[0].mxu0 %v3368
        %v3370 = vpop.f32.mrb[0].mxu0
        %v3371 = vadd.f32 %v2814, %v3370
        %v3372 = vpop.f32.mrb[0].mxu0
        %v3373 = vadd.f32 %v2816, %v3372
        %3374 = vmatprep.mubr.f32.mxu0 0.0
        %v3375 = vand.u32 %v265, 4294901760
        %3376 = vmatmul.mubr.f32.gmra.mrb[0].mxu0 %v3375
        %v3377 = vpop.f32.mrb[0].mxu0
        %v3378 = vadd.f32 %v2825, %v3377
        %v3379 = vpop.f32.mrb[0].mxu0
        %v3380 = vadd.f32 %v2827, %v3379
        %3381 = vmatprep.mubr.f32.mxu0 0.0
        %v3382 = vand.u32 %v266, 4294901760
        %3383 = vmatmul.mubr.f32.gmra.mrb[0].mxu0 %v3382
        %v3384 = vpop.f32.mrb[0].mxu0
        %v3385 = vadd.f32 %v2836, %v3384
        %v3386 = vpop.f32.mrb[0].mxu0
        %v3387 = vadd.f32 %v2838, %v3386
        %3388 = vmatprep.mubr.f32.mxu0 0.0
        %v3389 = vand.u32 %v267, 4294901760
        %3390 = vmatmul.mubr.f32.gmra.mrb[0].mxu0 %v3389
        %v3391 = vpop.f32.mrb[0].mxu0
        %v3392 = vadd.f32 %v2847, %v3391
        %v3393 = vpop.f32.mrb[0].mxu0
        %v3394 = vadd.f32 %v2849, %v3393
        %3395 = vmatprep.mubr.f32.mxu0 0.0
        %v3396 = vand.u32 %v268, 4294901760
        %3397 = vmatmul.mubr.f32.gmra.mrb[0].mxu0 %v3396
        %v3398 = vpop.f32.mrb[0].mxu0
        %v3399 = vadd.f32 %v2858, %v3398
        %v3400 = vpop.f32.mrb[0].mxu0
        %v3401 = vadd.f32 %v2860, %v3400
        %3402 = vmatprep.mubr.f32.mxu0 0.0
        %v3403 = vand.u32 %v269, 4294901760
        %3404 = vmatmul.mubr.f32.gmra.mrb[0].mxu0 %v3403
        %v3405 = vpop.f32.mrb[0].mxu0
        %v3406 = vadd.f32 %v2869, %v3405
        %v3407 = vpop.f32.mrb[0].mxu0
        %v3408 = vadd.f32 %v2871, %v3407
        %3409 = vmatprep.mubr.f32.mxu0 0.0
        %v3410 = vand.u32 %v270, 4294901760
        %3411 = vmatmul.mubr.f32.gmra.mrb[0].mxu0 %v3410
        %v3412 = vpop.f32.mrb[0].mxu0
        %v3413 = vadd.f32 %v2880, %v3412
        %v3414 = vpop.f32.mrb[0].mxu0
        %v3415 = vadd.f32 %v2882, %v3414
        %3416 = vmatprep.mubr.f32.mxu0 0.0
        %v3417 = vand.u32 %v271, 4294901760
        %3418 = vmatmul.mubr.f32.gmra.mrb[0].mxu0 %v3417
        %v3419 = vpop.f32.mrb[0].mxu0
        %v3420 = vadd.f32 %v2891, %v3419
        %v3421 = vpop.f32.mrb[0].mxu0
        %v3422 = vadd.f32 %v2893, %v3421
        %3423 = vmatprep.mubr.f32.mxu0 0.0
        %v3424 = vand.u32 %v272, 4294901760
        %3425 = vmatmul.mubr.f32.gmra.mrb[0].mxu0 %v3424
        %v3426 = vpop.f32.mrb[0].mxu0
        %v3427 = vadd.f32 %v2902, %v3426
        %v3428 = vpop.f32.mrb[0].mxu0
        %v3429 = vadd.f32 %v2904, %v3428
        %3430 = vmatprep.mubr.f32.mxu0 0.0
        %v3431 = vand.u32 %v273, 4294901760
        %3432 = vmatmul.mubr.f32.gmra.mrb[0].mxu0 %v3431
        %v3433 = vpop.f32.mrb[0].mxu0
        %v3434 = vadd.f32 %v2913, %v3433
        %v3435 = vpop.f32.mrb[0].mxu0
        %v3436 = vadd.f32 %v2915, %v3435
        %3437 = vmatprep.mubr.f32.mxu0 0.0
        %v3438 = vand.u32 %v274, 4294901760
        %3439 = vmatmul.mubr.f32.gmra.mrb[0].mxu0 %v3438
        %v3440 = vpop.f32.mrb[0].mxu0
        %v3441 = vadd.f32 %v2924, %v3440
        %v3442 = vpop.f32.mrb[0].mxu0
        %v3443 = vadd.f32 %v2926, %v3442
        %3444 = vmatprep.mubr.f32.mxu0 0.0
        %v3445 = vand.u32 %v275, 4294901760
        %3446 = vmatmul.mubr.f32.gmra.mrb[0].mxu0 %v3445
        %v3447 = vpop.f32.mrb[0].mxu0
        %v3448 = vadd.f32 %v2935, %v3447
        %v3449 = vpop.f32.mrb[0].mxu0
        %v3450 = vadd.f32 %v2937, %v3449
        %3451 = vmatprep.mubr.f32.mxu0 0.0
        %v3452 = vand.u32 %v276, 4294901760
        %3453 = vmatmul.mubr.f32.gmra.mrb[0].mxu0 %v3452
        %v3454 = vpop.f32.mrb[0].mxu0
        %v3455 = vadd.f32 %v2946, %v3454
        %v3456 = vpop.f32.mrb[0].mxu0
        %v3457 = vadd.f32 %v2948, %v3456
        %3458 = vmatprep.mubr.f32.mxu0 0.0
        %v3459 = vand.u32 %v277, 4294901760
        %3460 = vmatmul.mubr.f32.gmra.mrb[0].mxu0 %v3459
        %v3461 = vpop.f32.mrb[0].mxu0
        %v3462 = vadd.f32 %v2957, %v3461
        %v3463 = vpop.f32.mrb[0].mxu0
        %v3464 = vadd.f32 %v2959, %v3463
        %3465 = vmatprep.mubr.f32.mxu0 0.0
        %v3466 = vand.u32 %v278, 4294901760
        %3467 = vmatmul.mubr.f32.gmra.mrb[0].mxu0 %v3466
        %v3468 = vpop.f32.mrb[0].mxu0
        %v3469 = vadd.f32 %v2968, %v3468
        %v3470 = vpop.f32.mrb[0].mxu0
        %v3471 = vadd.f32 %v2970, %v3470
        %3472 = vmatprep.mubr.f32.mxu0 0.0
        %v3473 = vand.u32 %v279, 4294901760
        %3474 = vmatmul.mubr.f32.gmra.mrb[0].mxu0 %v3473
        %v3475 = vpop.f32.mrb[0].mxu0
        %v3476 = vadd.f32 %v2979, %v3475
        %v3477 = vpop.f32.mrb[0].mxu0
        %v3478 = vadd.f32 %v2981, %v3477
        %3479 = vmatprep.mubr.f32.mxu0 0.0
        %v3480 = vand.u32 %v280, 4294901760
        %3481 = vmatmul.mubr.f32.gmra.mrb[0].mxu0 %v3480
        %v3482 = vpop.f32.mrb[0].mxu0
        %v3483 = vadd.f32 %v2990, %v3482
        %v3484 = vpop.f32.mrb[0].mxu0
        %v3485 = vadd.f32 %v2992, %v3484
        %3486 = vmatprep.mubr.f32.mxu0 0.0
        %v3487 = vand.u32 %v281, 4294901760
        %3488 = vmatmul.mubr.f32.gmra.mrb[0].mxu0 %v3487
        %v3489 = vpop.f32.mrb[0].mxu0
        %v3490 = vadd.f32 %v3001, %v3489
        %v3491 = vpop.f32.mrb[0].mxu0
        %v3492 = vadd.f32 %v3003, %v3491
        %3493 = vmatprep.mubr.f32.mxu0 0.0
        %v3494 = vand.u32 %v282, 4294901760
        %3495 = vmatmul.mubr.f32.gmra.mrb[0].mxu0 %v3494
        %v3496 = vpop.f32.mrb[0].mxu0
        %v3497 = vadd.f32 %v3012, %v3496
        %v3498 = vpop.f32.mrb[0].mxu0
        %v3499 = vadd.f32 %v3014, %v3498
        %3500 = vmatprep.mubr.f32.mxu0 0.0
        %v3501 = vand.u32 %v283, 4294901760
        %3502 = vmatmul.mubr.f32.gmra.mrb[0].mxu0 %v3501
        %v3503 = vpop.f32.mrb[0].mxu0
        %v3504 = vadd.f32 %v3023, %v3503
        %v3505 = vpop.f32.mrb[0].mxu0
        %v3506 = vadd.f32 %v3025, %v3505
        %3507 = vmatprep.mubr.f32.mxu0 0.0
        %v3508 = vand.u32 %v284, 4294901760
        %3509 = vmatmul.mubr.f32.gmra.mrb[0].mxu0 %v3508
        %v3510 = vpop.f32.mrb[0].mxu0
        %v3511 = vadd.f32 %v3034, %v3510
        %v3512 = vpop.f32.mrb[0].mxu0
        %v3513 = vadd.f32 %v3036, %v3512
        %3514 = vmatprep.mubr.f32.mxu0 0.0
        %v3515 = vand.u32 %v285, 4294901760
        %3516 = vmatmul.mubr.f32.gmra.mrb[0].mxu0 %v3515
        %v3517 = vpop.f32.mrb[0].mxu0
        %v3518 = vadd.f32 %v3045, %v3517
        %v3519 = vpop.f32.mrb[0].mxu0
        %v3520 = vadd.f32 %v3047, %v3519
        %3521 = vmatprep.mubr.f32.mxu0 0.0
        %v3522 = vand.u32 %v286, 4294901760
        %3523 = vmatmul.mubr.f32.gmra.mrb[0].mxu0 %v3522
        %v3524 = vpop.f32.mrb[0].mxu0
        %v3525 = vadd.f32 %v3056, %v3524
        %v3526 = vpop.f32.mrb[0].mxu0
        %v3527 = vadd.f32 %v3058, %v3526
        %3528 = vmatprep.mubr.f32.mxu0 0.0
        %v3529 = vand.u32 %v287, 4294901760
        %3530 = vmatmul.mubr.f32.gmra.mrb[0].mxu0 %v3529
        %v3531 = vpop.f32.mrb[0].mxu0
        %v3532 = vadd.f32 %v3067, %v3531
        %v3533 = vpop.f32.mrb[0].mxu0
        %v3534 = vadd.f32 %v3069, %v3533
        %3535 = vmatprep.mubr.f32.mxu0 0.0
        %v3536 = vand.u32 %v288, 4294901760
        %3537 = vmatmul.mubr.f32.gmra.mrb[0].mxu0 %v3536
        %v3538 = vpop.f32.mrb[0].mxu0
        %v3539 = vadd.f32 %v3078, %v3538
        %v3540 = vpop.f32.mrb[0].mxu0
        %v3541 = vadd.f32 %v3080, %v3540
        %3542 = vmatprep.mubr.f32.mxu0 0.0
        %v3543 = vand.u32 %v289, 4294901760
        %3544 = vmatmul.mubr.f32.gmra.mrb[0].mxu0 %v3543
        %v3545 = vpop.f32.mrb[0].mxu0
        %v3546 = vadd.f32 %v3089, %v3545
        %v3547 = vpop.f32.mrb[0].mxu0
        %v3548 = vadd.f32 %v3091, %v3547
        %3549 = vmatprep.mubr.f32.mxu0 0.0
        %v3550 = vand.u32 %v290, 4294901760
        %3551 = vmatmul.mubr.f32.gmra.mrb[0].mxu0 %v3550
        %v3552 = vpop.f32.mrb[0].mxu0
        %v3553 = vadd.f32 %v3100, %v3552
        %v3554 = vpop.f32.mrb[0].mxu0
        %v3555 = vadd.f32 %v3102, %v3554
        %3556 = vmatprep.mubr.f32.mxu0 0.0
        %v3557 = vand.u32 %v291, 4294901760
        %3558 = vmatmul.mubr.f32.gmra.mrb[0].mxu0 %v3557
        %v3559 = vpop.f32.mrb[0].mxu0
        %v3560 = vadd.f32 %v3111, %v3559
        %v3561 = vpop.f32.mrb[0].mxu0
        %v3562 = vadd.f32 %v3113, %v3561
        %3563 = vdwg.mxu0
        %3564 = vmatprep.subr.mxu0 0.0
        %v3565 = vand.u32 %v228, 4294901760
        %v3566 = vsub.f32 %v228, %v3565
        %3567 = vmatpush1.xpose.msra.mxu0 %v3566
        %3568 = vmatprep.subr.mxu0 0.0
        %v3569 = vand.u32 %v229, 4294901760
        %v3570 = vsub.f32 %v229, %v3569
        %3571 = vmatpush1.xpose.msra.mxu0 %v3570
        %3572 = vmatprep.subr.mxu0 0.0
        %v3573 = vand.u32 %v230, 4294901760
        %v3574 = vsub.f32 %v230, %v3573
        %3575 = vmatpush1.xpose.msra.mxu0 %v3574
        %3576 = vmatprep.subr.mxu0 0.0
        %v3577 = vand.u32 %v231, 4294901760
        %v3578 = vsub.f32 %v231, %v3577
        %3579 = vmatpush1.xpose.msra.mxu0 %v3578
        %3580 = vmatprep.subr.mxu0 0.0
        %v3581 = vand.u32 %v232, 4294901760
        %v3582 = vsub.f32 %v232, %v3581
        %3583 = vmatpush1.xpose.msra.mxu0 %v3582
        %3584 = vmatprep.subr.mxu0 0.0
        %v3585 = vand.u32 %v233, 4294901760
        %v3586 = vsub.f32 %v233, %v3585
        %3587 = vmatpush1.xpose.msra.mxu0 %v3586
        %3588 = vmatprep.subr.mxu0 0.0
        %v3589 = vand.u32 %v234, 4294901760
        %v3590 = vsub.f32 %v234, %v3589
        %3591 = vmatpush1.xpose.msra.mxu0 %v3590
        %3592 = vmatprep.subr.mxu0 0.0
        %v3593 = vand.u32 %v235, 4294901760
        %v3594 = vsub.f32 %v235, %v3593
        %3595 = vmatpush1.xpose.msra.mxu0 %v3594
        %3596 = vmatprep.subr.mxu0 0.0
        %v3597 = vand.u32 %v236, 4294901760
        %v3598 = vsub.f32 %v236, %v3597
        %3599 = vmatpush1.xpose.msra.mxu0 %v3598
        %3600 = vmatprep.subr.mxu0 0.0
        %v3601 = vand.u32 %v237, 4294901760
        %v3602 = vsub.f32 %v237, %v3601
        %3603 = vmatpush1.xpose.msra.mxu0 %v3602
        %3604 = vmatprep.subr.mxu0 0.0
        %v3605 = vand.u32 %v238, 4294901760
        %v3606 = vsub.f32 %v238, %v3605
        %3607 = vmatpush1.xpose.msra.mxu0 %v3606
        %3608 = vmatprep.subr.mxu0 0.0
        %v3609 = vand.u32 %v239, 4294901760
        %v3610 = vsub.f32 %v239, %v3609
        %3611 = vmatpush1.xpose.msra.mxu0 %v3610
        %3612 = vmatprep.subr.mxu0 0.0
        %v3613 = vand.u32 %v240, 4294901760
        %v3614 = vsub.f32 %v240, %v3613
        %3615 = vmatpush1.xpose.msra.mxu0 %v3614
        %3616 = vmatprep.subr.mxu0 0.0
        %v3617 = vand.u32 %v241, 4294901760
        %v3618 = vsub.f32 %v241, %v3617
        %3619 = vmatpush1.xpose.msra.mxu0 %v3618
        %3620 = vmatprep.subr.mxu0 0.0
        %v3621 = vand.u32 %v242, 4294901760
        %v3622 = vsub.f32 %v242, %v3621
        %3623 = vmatpush1.xpose.msra.mxu0 %v3622
        %3624 = vmatprep.subr.mxu0 0.0
        %v3625 = vand.u32 %v243, 4294901760
        %v3626 = vsub.f32 %v243, %v3625
        %3627 = vmatpush1.xpose.msra.mxu0 %v3626
        %3628 = vmatprep.subr.mxu0 0.0
        %v3629 = vand.u32 %v244, 4294901760
        %v3630 = vsub.f32 %v244, %v3629
        %3631 = vmatpush1.xpose.msra.mxu0 %v3630
        %3632 = vmatprep.subr.mxu0 0.0
        %v3633 = vand.u32 %v245, 4294901760
        %v3634 = vsub.f32 %v245, %v3633
        %3635 = vmatpush1.xpose.msra.mxu0 %v3634
        %3636 = vmatprep.subr.mxu0 0.0
        %v3637 = vand.u32 %v246, 4294901760
        %v3638 = vsub.f32 %v246, %v3637
        %3639 = vmatpush1.xpose.msra.mxu0 %v3638
        %3640 = vmatprep.subr.mxu0 0.0
        %v3641 = vand.u32 %v247, 4294901760
        %v3642 = vsub.f32 %v247, %v3641
        %3643 = vmatpush1.xpose.msra.mxu0 %v3642
        %3644 = vmatprep.subr.mxu0 0.0
        %v3645 = vand.u32 %v248, 4294901760
        %v3646 = vsub.f32 %v248, %v3645
        %3647 = vmatpush1.xpose.msra.mxu0 %v3646
        %3648 = vmatprep.subr.mxu0 0.0
        %v3649 = vand.u32 %v249, 4294901760
        %v3650 = vsub.f32 %v249, %v3649
        %3651 = vmatpush1.xpose.msra.mxu0 %v3650
        %3652 = vmatprep.subr.mxu0 0.0
        %v3653 = vand.u32 %v250, 4294901760
        %v3654 = vsub.f32 %v250, %v3653
        %3655 = vmatpush1.xpose.msra.mxu0 %v3654
        %3656 = vmatprep.subr.mxu0 0.0
        %v3657 = vand.u32 %v251, 4294901760
        %v3658 = vsub.f32 %v251, %v3657
        %3659 = vmatpush1.xpose.msra.mxu0 %v3658
        %3660 = vmatprep.subr.mxu0 0.0
        %v3661 = vand.u32 %v252, 4294901760
        %v3662 = vsub.f32 %v252, %v3661
        %3663 = vmatpush1.xpose.msra.mxu0 %v3662
        %3664 = vmatprep.subr.mxu0 0.0
        %v3665 = vand.u32 %v253, 4294901760
        %v3666 = vsub.f32 %v253, %v3665
        %3667 = vmatpush1.xpose.msra.mxu0 %v3666
        %3668 = vmatprep.subr.mxu0 0.0
        %v3669 = vand.u32 %v254, 4294901760
        %v3670 = vsub.f32 %v254, %v3669
        %3671 = vmatpush1.xpose.msra.mxu0 %v3670
        %3672 = vmatprep.subr.mxu0 0.0
        %v3673 = vand.u32 %v255, 4294901760
        %v3674 = vsub.f32 %v255, %v3673
        %3675 = vmatpush1.xpose.msra.mxu0 %v3674
        %3676 = vmatprep.subr.mxu0 0.0
        %v3677 = vand.u32 %v256, 4294901760
        %v3678 = vsub.f32 %v256, %v3677
        %3679 = vmatpush1.xpose.msra.mxu0 %v3678
        %3680 = vmatprep.subr.mxu0 0.0
        %v3681 = vand.u32 %v257, 4294901760
        %v3682 = vsub.f32 %v257, %v3681
        %3683 = vmatpush1.xpose.msra.mxu0 %v3682
        %3684 = vmatprep.subr.mxu0 0.0
        %v3685 = vand.u32 %v258, 4294901760
        %v3686 = vsub.f32 %v258, %v3685
        %3687 = vmatpush1.xpose.msra.mxu0 %v3686
        %3688 = vmatprep.subr.mxu0 0.0
        %v3689 = vand.u32 %v259, 4294901760
        %v3690 = vsub.f32 %v259, %v3689
        %3691 = vmatpush1.xpose.msra.mxu0 %v3690
        %3692 = vmatprep.mubr.f32.mxu0 0.0
        %v3693 = vand.u32 %v260, 4294901760
        %v3694 = vsub.f32 %v260, %v3693
        %3695 = vmatmul.mubr.f32.gmra.mrb[0].mxu0 %v3694
        %v3696 = vpop.f32.mrb[0].mxu0
        %v3697 = vadd.f32 %v3343, %v3696
        %v3698 = vpop.f32.mrb[0].mxu0
        %v3699 = vadd.f32 %v3345, %v3698
        %3700 = vmatprep.mubr.f32.mxu0 0.0
        %v3701 = vand.u32 %v261, 4294901760
        %v3702 = vsub.f32 %v261, %v3701
        %3703 = vmatmul.mubr.f32.gmra.mrb[0].mxu0 %v3702
        %v3704 = vpop.f32.mrb[0].mxu0
        %v3705 = vadd.f32 %v3350, %v3704
        %v3706 = vpop.f32.mrb[0].mxu0
        %v3707 = vadd.f32 %v3352, %v3706
        %3708 = vmatprep.mubr.f32.mxu0 0.0
        %v3709 = vand.u32 %v262, 4294901760
        %v3710 = vsub.f32 %v262, %v3709
        %3711 = vmatmul.mubr.f32.gmra.mrb[0].mxu0 %v3710
        %v3712 = vpop.f32.mrb[0].mxu0
        %v3713 = vadd.f32 %v3357, %v3712
        %v3714 = vpop.f32.mrb[0].mxu0
        %v3715 = vadd.f32 %v3359, %v3714
        %3716 = vmatprep.mubr.f32.mxu0 0.0
        %v3717 = vand.u32 %v263, 4294901760
        %v3718 = vsub.f32 %v263, %v3717
        %3719 = vmatmul.mubr.f32.gmra.mrb[0].mxu0 %v3718
        %v3720 = vpop.f32.mrb[0].mxu0
        %v3721 = vadd.f32 %v3364, %v3720
        %v3722 = vpop.f32.mrb[0].mxu0
        %v3723 = vadd.f32 %v3366, %v3722
        %3724 = vmatprep.mubr.f32.mxu0 0.0
        %v3725 = vand.u32 %v264, 4294901760
        %v3726 = vsub.f32 %v264, %v3725
        %3727 = vmatmul.mubr.f32.gmra.mrb[0].mxu0 %v3726
        %v3728 = vpop.f32.mrb[0].mxu0
        %v3729 = vadd.f32 %v3371, %v3728
        %v3730 = vpop.f32.mrb[0].mxu0
        %v3731 = vadd.f32 %v3373, %v3730
        %3732 = vmatprep.mubr.f32.mxu0 0.0
        %v3733 = vand.u32 %v265, 4294901760
        %v3734 = vsub.f32 %v265, %v3733
        %3735 = vmatmul.mubr.f32.gmra.mrb[0].mxu0 %v3734
        %v3736 = vpop.f32.mrb[0].mxu0
        %v3737 = vadd.f32 %v3378, %v3736
        %v3738 = vpop.f32.mrb[0].mxu0
        %v3739 = vadd.f32 %v3380, %v3738
        %3740 = vmatprep.mubr.f32.mxu0 0.0
        %v3741 = vand.u32 %v266, 4294901760
        %v3742 = vsub.f32 %v266, %v3741
        %3743 = vmatmul.mubr.f32.gmra.mrb[0].mxu0 %v3742
        %v3744 = vpop.f32.mrb[0].mxu0
        %v3745 = vadd.f32 %v3385, %v3744
        %v3746 = vpop.f32.mrb[0].mxu0
        %v3747 = vadd.f32 %v3387, %v3746
        %3748 = vmatprep.mubr.f32.mxu0 0.0
        %v3749 = vand.u32 %v267, 4294901760
        %v3750 = vsub.f32 %v267, %v3749
        %3751 = vmatmul.mubr.f32.gmra.mrb[0].mxu0 %v3750
        %v3752 = vpop.f32.mrb[0].mxu0
        %v3753 = vadd.f32 %v3392, %v3752
        %v3754 = vpop.f32.mrb[0].mxu0
        %v3755 = vadd.f32 %v3394, %v3754
        %3756 = vmatprep.mubr.f32.mxu0 0.0
        %v3757 = vand.u32 %v268, 4294901760
        %v3758 = vsub.f32 %v268, %v3757
        %3759 = vmatmul.mubr.f32.gmra.mrb[0].mxu0 %v3758
        %v3760 = vpop.f32.mrb[0].mxu0
        %v3761 = vadd.f32 %v3399, %v3760
        %v3762 = vpop.f32.mrb[0].mxu0
        %v3763 = vadd.f32 %v3401, %v3762
        %3764 = vmatprep.mubr.f32.mxu0 0.0
        %v3765 = vand.u32 %v269, 4294901760
        %v3766 = vsub.f32 %v269, %v3765
        %3767 = vmatmul.mubr.f32.gmra.mrb[0].mxu0 %v3766
        %v3768 = vpop.f32.mrb[0].mxu0
        %v3769 = vadd.f32 %v3406, %v3768
        %v3770 = vpop.f32.mrb[0].mxu0
        %v3771 = vadd.f32 %v3408, %v3770
        %3772 = vmatprep.mubr.f32.mxu0 0.0
        %v3773 = vand.u32 %v270, 4294901760
        %v3774 = vsub.f32 %v270, %v3773
        %3775 = vmatmul.mubr.f32.gmra.mrb[0].mxu0 %v3774
        %v3776 = vpop.f32.mrb[0].mxu0
        %v3777 = vadd.f32 %v3413, %v3776
        %v3778 = vpop.f32.mrb[0].mxu0
        %v3779 = vadd.f32 %v3415, %v3778
        %3780 = vmatprep.mubr.f32.mxu0 0.0
        %v3781 = vand.u32 %v271, 4294901760
        %v3782 = vsub.f32 %v271, %v3781
        %3783 = vmatmul.mubr.f32.gmra.mrb[0].mxu0 %v3782
        %v3784 = vpop.f32.mrb[0].mxu0
        %v3785 = vadd.f32 %v3420, %v3784
        %v3786 = vpop.f32.mrb[0].mxu0
        %v3787 = vadd.f32 %v3422, %v3786
        %3788 = vmatprep.mubr.f32.mxu0 0.0
        %v3789 = vand.u32 %v272, 4294901760
        %v3790 = vsub.f32 %v272, %v3789
        %3791 = vmatmul.mubr.f32.gmra.mrb[0].mxu0 %v3790
        %v3792 = vpop.f32.mrb[0].mxu0
        %v3793 = vadd.f32 %v3427, %v3792
        %v3794 = vpop.f32.mrb[0].mxu0
        %v3795 = vadd.f32 %v3429, %v3794
        %3796 = vmatprep.mubr.f32.mxu0 0.0
        %v3797 = vand.u32 %v273, 4294901760
        %v3798 = vsub.f32 %v273, %v3797
        %3799 = vmatmul.mubr.f32.gmra.mrb[0].mxu0 %v3798
        %v3800 = vpop.f32.mrb[0].mxu0
        %v3801 = vadd.f32 %v3434, %v3800
        %v3802 = vpop.f32.mrb[0].mxu0
        %v3803 = vadd.f32 %v3436, %v3802
        %3804 = vmatprep.mubr.f32.mxu0 0.0
        %v3805 = vand.u32 %v274, 4294901760
        %v3806 = vsub.f32 %v274, %v3805
        %3807 = vmatmul.mubr.f32.gmra.mrb[0].mxu0 %v3806
        %v3808 = vpop.f32.mrb[0].mxu0
        %v3809 = vadd.f32 %v3441, %v3808
        %v3810 = vpop.f32.mrb[0].mxu0
        %v3811 = vadd.f32 %v3443, %v3810
        %3812 = vmatprep.mubr.f32.mxu0 0.0
        %v3813 = vand.u32 %v275, 4294901760
        %v3814 = vsub.f32 %v275, %v3813
        %3815 = vmatmul.mubr.f32.gmra.mrb[0].mxu0 %v3814
        %v3816 = vpop.f32.mrb[0].mxu0
        %v3817 = vadd.f32 %v3448, %v3816
        %v3818 = vpop.f32.mrb[0].mxu0
        %v3819 = vadd.f32 %v3450, %v3818
        %3820 = vmatprep.mubr.f32.mxu0 0.0
        %v3821 = vand.u32 %v276, 4294901760
        %v3822 = vsub.f32 %v276, %v3821
        %3823 = vmatmul.mubr.f32.gmra.mrb[0].mxu0 %v3822
        %v3824 = vpop.f32.mrb[0].mxu0
        %v3825 = vadd.f32 %v3455, %v3824
        %v3826 = vpop.f32.mrb[0].mxu0
        %v3827 = vadd.f32 %v3457, %v3826
        %3828 = vmatprep.mubr.f32.mxu0 0.0
        %v3829 = vand.u32 %v277, 4294901760
        %v3830 = vsub.f32 %v277, %v3829
        %3831 = vmatmul.mubr.f32.gmra.mrb[0].mxu0 %v3830
        %v3832 = vpop.f32.mrb[0].mxu0
        %v3833 = vadd.f32 %v3462, %v3832
        %v3834 = vpop.f32.mrb[0].mxu0
        %v3835 = vadd.f32 %v3464, %v3834
        %3836 = vmatprep.mubr.f32.mxu0 0.0
        %v3837 = vand.u32 %v278, 4294901760
        %v3838 = vsub.f32 %v278, %v3837
        %3839 = vmatmul.mubr.f32.gmra.mrb[0].mxu0 %v3838
        %v3840 = vpop.f32.mrb[0].mxu0
        %v3841 = vadd.f32 %v3469, %v3840
        %v3842 = vpop.f32.mrb[0].mxu0
        %v3843 = vadd.f32 %v3471, %v3842
        %3844 = vmatprep.mubr.f32.mxu0 0.0
        %v3845 = vand.u32 %v279, 4294901760
        %v3846 = vsub.f32 %v279, %v3845
        %3847 = vmatmul.mubr.f32.gmra.mrb[0].mxu0 %v3846
        %v3848 = vpop.f32.mrb[0].mxu0
        %v3849 = vadd.f32 %v3476, %v3848
        %v3850 = vpop.f32.mrb[0].mxu0
        %v3851 = vadd.f32 %v3478, %v3850
        %3852 = vmatprep.mubr.f32.mxu0 0.0
        %v3853 = vand.u32 %v280, 4294901760
        %v3854 = vsub.f32 %v280, %v3853
        %3855 = vmatmul.mubr.f32.gmra.mrb[0].mxu0 %v3854
        %v3856 = vpop.f32.mrb[0].mxu0
        %v3857 = vadd.f32 %v3483, %v3856
        %v3858 = vpop.f32.mrb[0].mxu0
        %v3859 = vadd.f32 %v3485, %v3858
        %3860 = vmatprep.mubr.f32.mxu0 0.0
        %v3861 = vand.u32 %v281, 4294901760
        %v3862 = vsub.f32 %v281, %v3861
        %3863 = vmatmul.mubr.f32.gmra.mrb[0].mxu0 %v3862
        %v3864 = vpop.f32.mrb[0].mxu0
        %v3865 = vadd.f32 %v3490, %v3864
        %v3866 = vpop.f32.mrb[0].mxu0
        %v3867 = vadd.f32 %v3492, %v3866
        %3868 = vmatprep.mubr.f32.mxu0 0.0
        %v3869 = vand.u32 %v282, 4294901760
        %v3870 = vsub.f32 %v282, %v3869
        %3871 = vmatmul.mubr.f32.gmra.mrb[0].mxu0 %v3870
        %v3872 = vpop.f32.mrb[0].mxu0
        %v3873 = vadd.f32 %v3497, %v3872
        %v3874 = vpop.f32.mrb[0].mxu0
        %v3875 = vadd.f32 %v3499, %v3874
        %3876 = vmatprep.mubr.f32.mxu0 0.0
        %v3877 = vand.u32 %v283, 4294901760
        %v3878 = vsub.f32 %v283, %v3877
        %3879 = vmatmul.mubr.f32.gmra.mrb[0].mxu0 %v3878
        %v3880 = vpop.f32.mrb[0].mxu0
        %v3881 = vadd.f32 %v3504, %v3880
        %v3882 = vpop.f32.mrb[0].mxu0
        %v3883 = vadd.f32 %v3506, %v3882
        %3884 = vmatprep.mubr.f32.mxu0 0.0
        %v3885 = vand.u32 %v284, 4294901760
        %v3886 = vsub.f32 %v284, %v3885
        %3887 = vmatmul.mubr.f32.gmra.mrb[0].mxu0 %v3886
        %v3888 = vpop.f32.mrb[0].mxu0
        %v3889 = vadd.f32 %v3511, %v3888
        %v3890 = vpop.f32.mrb[0].mxu0
        %v3891 = vadd.f32 %v3513, %v3890
        %3892 = vmatprep.mubr.f32.mxu0 0.0
        %v3893 = vand.u32 %v285, 4294901760
        %v3894 = vsub.f32 %v285, %v3893
        %3895 = vmatmul.mubr.f32.gmra.mrb[0].mxu0 %v3894
        %v3896 = vpop.f32.mrb[0].mxu0
        %v3897 = vadd.f32 %v3518, %v3896
        %v3898 = vpop.f32.mrb[0].mxu0
        %v3899 = vadd.f32 %v3520, %v3898
        %3900 = vmatprep.mubr.f32.mxu0 0.0
        %v3901 = vand.u32 %v286, 4294901760
        %v3902 = vsub.f32 %v286, %v3901
        %3903 = vmatmul.mubr.f32.gmra.mrb[0].mxu0 %v3902
        %v3904 = vpop.f32.mrb[0].mxu0
        %v3905 = vadd.f32 %v3525, %v3904
        %v3906 = vpop.f32.mrb[0].mxu0
        %v3907 = vadd.f32 %v3527, %v3906
        %3908 = vmatprep.mubr.f32.mxu0 0.0
        %v3909 = vand.u32 %v287, 4294901760
        %v3910 = vsub.f32 %v287, %v3909
        %3911 = vmatmul.mubr.f32.gmra.mrb[0].mxu0 %v3910
        %v3912 = vpop.f32.mrb[0].mxu0
        %v3913 = vadd.f32 %v3532, %v3912
        %v3914 = vpop.f32.mrb[0].mxu0
        %v3915 = vadd.f32 %v3534, %v3914
        %3916 = vmatprep.mubr.f32.mxu0 0.0
        %v3917 = vand.u32 %v288, 4294901760
        %v3918 = vsub.f32 %v288, %v3917
        %3919 = vmatmul.mubr.f32.gmra.mrb[0].mxu0 %v3918
        %v3920 = vpop.f32.mrb[0].mxu0
        %v3921 = vadd.f32 %v3539, %v3920
        %v3922 = vpop.f32.mrb[0].mxu0
        %v3923 = vadd.f32 %v3541, %v3922
        %3924 = vmatprep.mubr.f32.mxu0 0.0
        %v3925 = vand.u32 %v289, 4294901760
        %v3926 = vsub.f32 %v289, %v3925
        %3927 = vmatmul.mubr.f32.gmra.mrb[0].mxu0 %v3926
        %v3928 = vpop.f32.mrb[0].mxu0
        %v3929 = vadd.f32 %v3546, %v3928
        %v3930 = vpop.f32.mrb[0].mxu0
        %v3931 = vadd.f32 %v3548, %v3930
        %3932 = vmatprep.mubr.f32.mxu0 0.0
        %v3933 = vand.u32 %v290, 4294901760
        %v3934 = vsub.f32 %v290, %v3933
        %3935 = vmatmul.mubr.f32.gmra.mrb[0].mxu0 %v3934
        %v3936 = vpop.f32.mrb[0].mxu0
        %v3937 = vadd.f32 %v3553, %v3936
        %v3938 = vpop.f32.mrb[0].mxu0
        %v3939 = vadd.f32 %v3555, %v3938
        %3940 = vmatprep.mubr.f32.mxu0 0.0
        %v3941 = vand.u32 %v291, 4294901760
        %v3942 = vsub.f32 %v291, %v3941
        %3943 = vmatmul.mubr.f32.gmra.mrb[0].mxu0 %v3942
        %v3944 = vpop.f32.mrb[0].mxu0
        %v3945 = vadd.f32 %v3560, %v3944
        %v3946 = vpop.f32.mrb[0].mxu0
        %v3947 = vadd.f32 %v3562, %v3946
        %3948 = vdwg.mxu0
        %3949 = vmatprep.subr.mxu0 0.0
        %v3950 = vand.u32 %v228, 4294901760
        %3951 = vmatpush1.xpose.msra.mxu0 %v3950
        %3952 = vmatprep.subr.mxu0 0.0
        %v3953 = vand.u32 %v229, 4294901760
        %3954 = vmatpush1.xpose.msra.mxu0 %v3953
        %3955 = vmatprep.subr.mxu0 0.0
        %v3956 = vand.u32 %v230, 4294901760
        %3957 = vmatpush1.xpose.msra.mxu0 %v3956
        %3958 = vmatprep.subr.mxu0 0.0
        %v3959 = vand.u32 %v231, 4294901760
        %3960 = vmatpush1.xpose.msra.mxu0 %v3959
        %3961 = vmatprep.subr.mxu0 0.0
        %v3962 = vand.u32 %v232, 4294901760
        %3963 = vmatpush1.xpose.msra.mxu0 %v3962
        %3964 = vmatprep.subr.mxu0 0.0
        %v3965 = vand.u32 %v233, 4294901760
        %3966 = vmatpush1.xpose.msra.mxu0 %v3965
        %3967 = vmatprep.subr.mxu0 0.0
        %v3968 = vand.u32 %v234, 4294901760
        %3969 = vmatpush1.xpose.msra.mxu0 %v3968
        %3970 = vmatprep.subr.mxu0 0.0
        %v3971 = vand.u32 %v235, 4294901760
        %3972 = vmatpush1.xpose.msra.mxu0 %v3971
        %3973 = vmatprep.subr.mxu0 0.0
        %v3974 = vand.u32 %v236, 4294901760
        %3975 = vmatpush1.xpose.msra.mxu0 %v3974
        %3976 = vmatprep.subr.mxu0 0.0
        %v3977 = vand.u32 %v237, 4294901760
        %3978 = vmatpush1.xpose.msra.mxu0 %v3977
        %3979 = vmatprep.subr.mxu0 0.0
        %v3980 = vand.u32 %v238, 4294901760
        %3981 = vmatpush1.xpose.msra.mxu0 %v3980
        %3982 = vmatprep.subr.mxu0 0.0
        %v3983 = vand.u32 %v239, 4294901760
        %3984 = vmatpush1.xpose.msra.mxu0 %v3983
        %3985 = vmatprep.subr.mxu0 0.0
        %v3986 = vand.u32 %v240, 4294901760
        %3987 = vmatpush1.xpose.msra.mxu0 %v3986
        %3988 = vmatprep.subr.mxu0 0.0
        %v3989 = vand.u32 %v241, 4294901760
        %3990 = vmatpush1.xpose.msra.mxu0 %v3989
        %3991 = vmatprep.subr.mxu0 0.0
        %v3992 = vand.u32 %v242, 4294901760
        %3993 = vmatpush1.xpose.msra.mxu0 %v3992
        %3994 = vmatprep.subr.mxu0 0.0
        %v3995 = vand.u32 %v243, 4294901760
        %3996 = vmatpush1.xpose.msra.mxu0 %v3995
        %3997 = vmatprep.subr.mxu0 0.0
        %v3998 = vand.u32 %v244, 4294901760
        %3999 = vmatpush1.xpose.msra.mxu0 %v3998
        %4000 = vmatprep.subr.mxu0 0.0
        %v4001 = vand.u32 %v245, 4294901760
        %4002 = vmatpush1.xpose.msra.mxu0 %v4001
        %4003 = vmatprep.subr.mxu0 0.0
        %v4004 = vand.u32 %v246, 4294901760
        %4005 = vmatpush1.xpose.msra.mxu0 %v4004
        %4006 = vmatprep.subr.mxu0 0.0
        %v4007 = vand.u32 %v247, 4294901760
        %4008 = vmatpush1.xpose.msra.mxu0 %v4007
        %4009 = vmatprep.subr.mxu0 0.0
        %v4010 = vand.u32 %v248, 4294901760
        %4011 = vmatpush1.xpose.msra.mxu0 %v4010
        %4012 = vmatprep.subr.mxu0 0.0
        %v4013 = vand.u32 %v249, 4294901760
        %4014 = vmatpush1.xpose.msra.mxu0 %v4013
        %4015 = vmatprep.subr.mxu0 0.0
        %v4016 = vand.u32 %v250, 4294901760
        %4017 = vmatpush1.xpose.msra.mxu0 %v4016
        %4018 = vmatprep.subr.mxu0 0.0
        %v4019 = vand.u32 %v251, 4294901760
        %4020 = vmatpush1.xpose.msra.mxu0 %v4019
        %4021 = vmatprep.subr.mxu0 0.0
        %v4022 = vand.u32 %v252, 4294901760
        %4023 = vmatpush1.xpose.msra.mxu0 %v4022
        %4024 = vmatprep.subr.mxu0 0.0
        %v4025 = vand.u32 %v253, 4294901760
        %4026 = vmatpush1.xpose.msra.mxu0 %v4025
        %4027 = vmatprep.subr.mxu0 0.0
        %v4028 = vand.u32 %v254, 4294901760
        %4029 = vmatpush1.xpose.msra.mxu0 %v4028
        %4030 = vmatprep.subr.mxu0 0.0
        %v4031 = vand.u32 %v255, 4294901760
        %4032 = vmatpush1.xpose.msra.mxu0 %v4031
        %4033 = vmatprep.subr.mxu0 0.0
        %v4034 = vand.u32 %v256, 4294901760
        %4035 = vmatpush1.xpose.msra.mxu0 %v4034
        %4036 = vmatprep.subr.mxu0 0.0
        %v4037 = vand.u32 %v257, 4294901760
        %4038 = vmatpush1.xpose.msra.mxu0 %v4037
        %4039 = vmatprep.subr.mxu0 0.0
        %v4040 = vand.u32 %v258, 4294901760
        %4041 = vmatpush1.xpose.msra.mxu0 %v4040
        %4042 = vmatprep.subr.mxu0 0.0
        %v4043 = vand.u32 %v259, 4294901760
        %4044 = vmatpush1.xpose.msra.mxu0 %v4043
        %4045 = vmatprep.mubr.f32.mxu0 0.0
        %v4046 = vand.u32 %v260, 4294901760
        %v4047 = vsub.f32 %v260, %v4046
        %v4048 = vand.u32 %v4047, 4294901760
        %4049 = vmatmul.mubr.f32.gmra.mrb[0].mxu0 %v4048
        %v4050 = vpop.f32.mrb[0].mxu0
        %v4051 = vadd.f32 %v3697, %v4050
        %v4052 = vpop.f32.mrb[0].mxu0
        %v4053 = vadd.f32 %v3699, %v4052
        %4054 = vmatprep.mubr.f32.mxu0 0.0
        %v4055 = vand.u32 %v261, 4294901760
        %v4056 = vsub.f32 %v261, %v4055
        %v4057 = vand.u32 %v4056, 4294901760
        %4058 = vmatmul.mubr.f32.gmra.mrb[0].mxu0 %v4057
        %v4059 = vpop.f32.mrb[0].mxu0
        %v4060 = vadd.f32 %v3705, %v4059
        %v4061 = vpop.f32.mrb[0].mxu0
        %v4062 = vadd.f32 %v3707, %v4061
        %4063 = vmatprep.mubr.f32.mxu0 0.0
        %v4064 = vand.u32 %v262, 4294901760
        %v4065 = vsub.f32 %v262, %v4064
        %v4066 = vand.u32 %v4065, 4294901760
        %4067 = vmatmul.mubr.f32.gmra.mrb[0].mxu0 %v4066
        %v4068 = vpop.f32.mrb[0].mxu0
        %v4069 = vadd.f32 %v3713, %v4068
        %v4070 = vpop.f32.mrb[0].mxu0
        %v4071 = vadd.f32 %v3715, %v4070
        %4072 = vmatprep.mubr.f32.mxu0 0.0
        %v4073 = vand.u32 %v263, 4294901760
        %v4074 = vsub.f32 %v263, %v4073
        %v4075 = vand.u32 %v4074, 4294901760
        %4076 = vmatmul.mubr.f32.gmra.mrb[0].mxu0 %v4075
        %v4077 = vpop.f32.mrb[0].mxu0
        %v4078 = vadd.f32 %v3721, %v4077
        %v4079 = vpop.f32.mrb[0].mxu0
        %v4080 = vadd.f32 %v3723, %v4079
        %4081 = vmatprep.mubr.f32.mxu0 0.0
        %v4082 = vand.u32 %v264, 4294901760
        %v4083 = vsub.f32 %v264, %v4082
        %v4084 = vand.u32 %v4083, 4294901760
        %4085 = vmatmul.mubr.f32.gmra.mrb[0].mxu0 %v4084
        %v4086 = vpop.f32.mrb[0].mxu0
        %v4087 = vadd.f32 %v3729, %v4086
        %v4088 = vpop.f32.mrb[0].mxu0
        %v4089 = vadd.f32 %v3731, %v4088
        %4090 = vmatprep.mubr.f32.mxu0 0.0
        %v4091 = vand.u32 %v265, 4294901760
        %v4092 = vsub.f32 %v265, %v4091
        %v4093 = vand.u32 %v4092, 4294901760
        %4094 = vmatmul.mubr.f32.gmra.mrb[0].mxu0 %v4093
        %v4095 = vpop.f32.mrb[0].mxu0
        %v4096 = vadd.f32 %v3737, %v4095
        %v4097 = vpop.f32.mrb[0].mxu0
        %v4098 = vadd.f32 %v3739, %v4097
        %4099 = vmatprep.mubr.f32.mxu0 0.0
        %v4100 = vand.u32 %v266, 4294901760
        %v4101 = vsub.f32 %v266, %v4100
        %v4102 = vand.u32 %v4101, 4294901760
        %4103 = vmatmul.mubr.f32.gmra.mrb[0].mxu0 %v4102
        %v4104 = vpop.f32.mrb[0].mxu0
        %v4105 = vadd.f32 %v3745, %v4104
        %v4106 = vpop.f32.mrb[0].mxu0
        %v4107 = vadd.f32 %v3747, %v4106
        %4108 = vmatprep.mubr.f32.mxu0 0.0
        %v4109 = vand.u32 %v267, 4294901760
        %v4110 = vsub.f32 %v267, %v4109
        %v4111 = vand.u32 %v4110, 4294901760
        %4112 = vmatmul.mubr.f32.gmra.mrb[0].mxu0 %v4111
        %v4113 = vpop.f32.mrb[0].mxu0
        %v4114 = vadd.f32 %v3753, %v4113
        %v4115 = vpop.f32.mrb[0].mxu0
        %v4116 = vadd.f32 %v3755, %v4115
        %4117 = vmatprep.mubr.f32.mxu0 0.0
        %v4118 = vand.u32 %v268, 4294901760
        %v4119 = vsub.f32 %v268, %v4118
        %v4120 = vand.u32 %v4119, 4294901760
        %4121 = vmatmul.mubr.f32.gmra.mrb[0].mxu0 %v4120
        %v4122 = vpop.f32.mrb[0].mxu0
        %v4123 = vadd.f32 %v3761, %v4122
        %v4124 = vpop.f32.mrb[0].mxu0
        %v4125 = vadd.f32 %v3763, %v4124
        %4126 = vmatprep.mubr.f32.mxu0 0.0
        %v4127 = vand.u32 %v269, 4294901760
        %v4128 = vsub.f32 %v269, %v4127
        %v4129 = vand.u32 %v4128, 4294901760
        %4130 = vmatmul.mubr.f32.gmra.mrb[0].mxu0 %v4129
        %v4131 = vpop.f32.mrb[0].mxu0
        %v4132 = vadd.f32 %v3769, %v4131
        %v4133 = vpop.f32.mrb[0].mxu0
        %v4134 = vadd.f32 %v3771, %v4133
        %4135 = vmatprep.mubr.f32.mxu0 0.0
        %v4136 = vand.u32 %v270, 4294901760
        %v4137 = vsub.f32 %v270, %v4136
        %v4138 = vand.u32 %v4137, 4294901760
        %4139 = vmatmul.mubr.f32.gmra.mrb[0].mxu0 %v4138
        %v4140 = vpop.f32.mrb[0].mxu0
        %v4141 = vadd.f32 %v3777, %v4140
        %v4142 = vpop.f32.mrb[0].mxu0
        %v4143 = vadd.f32 %v3779, %v4142
        %4144 = vmatprep.mubr.f32.mxu0 0.0
        %v4145 = vand.u32 %v271, 4294901760
        %v4146 = vsub.f32 %v271, %v4145
        %v4147 = vand.u32 %v4146, 4294901760
        %4148 = vmatmul.mubr.f32.gmra.mrb[0].mxu0 %v4147
        %v4149 = vpop.f32.mrb[0].mxu0
        %v4150 = vadd.f32 %v3785, %v4149
        %v4151 = vpop.f32.mrb[0].mxu0
        %v4152 = vadd.f32 %v3787, %v4151
        %4153 = vmatprep.mubr.f32.mxu0 0.0
        %v4154 = vand.u32 %v272, 4294901760
        %v4155 = vsub.f32 %v272, %v4154
        %v4156 = vand.u32 %v4155, 4294901760
        %4157 = vmatmul.mubr.f32.gmra.mrb[0].mxu0 %v4156
        %v4158 = vpop.f32.mrb[0].mxu0
        %v4159 = vadd.f32 %v3793, %v4158
        %v4160 = vpop.f32.mrb[0].mxu0
        %v4161 = vadd.f32 %v3795, %v4160
        %4162 = vmatprep.mubr.f32.mxu0 0.0
        %v4163 = vand.u32 %v273, 4294901760
        %v4164 = vsub.f32 %v273, %v4163
        %v4165 = vand.u32 %v4164, 4294901760
        %4166 = vmatmul.mubr.f32.gmra.mrb[0].mxu0 %v4165
        %v4167 = vpop.f32.mrb[0].mxu0
        %v4168 = vadd.f32 %v3801, %v4167
        %v4169 = vpop.f32.mrb[0].mxu0
        %v4170 = vadd.f32 %v3803, %v4169
        %4171 = vmatprep.mubr.f32.mxu0 0.0
        %v4172 = vand.u32 %v274, 4294901760
        %v4173 = vsub.f32 %v274, %v4172
        %v4174 = vand.u32 %v4173, 4294901760
        %4175 = vmatmul.mubr.f32.gmra.mrb[0].mxu0 %v4174
        %v4176 = vpop.f32.mrb[0].mxu0
        %v4177 = vadd.f32 %v3809, %v4176
        %v4178 = vpop.f32.mrb[0].mxu0
        %v4179 = vadd.f32 %v3811, %v4178
        %4180 = vmatprep.mubr.f32.mxu0 0.0
        %v4181 = vand.u32 %v275, 4294901760
        %v4182 = vsub.f32 %v275, %v4181
        %v4183 = vand.u32 %v4182, 4294901760
        %4184 = vmatmul.mubr.f32.gmra.mrb[0].mxu0 %v4183
        %v4185 = vpop.f32.mrb[0].mxu0
        %v4186 = vadd.f32 %v3817, %v4185
        %v4187 = vpop.f32.mrb[0].mxu0
        %v4188 = vadd.f32 %v3819, %v4187
        %4189 = vmatprep.mubr.f32.mxu0 0.0
        %v4190 = vand.u32 %v276, 4294901760
        %v4191 = vsub.f32 %v276, %v4190
        %v4192 = vand.u32 %v4191, 4294901760
        %4193 = vmatmul.mubr.f32.gmra.mrb[0].mxu0 %v4192
        %v4194 = vpop.f32.mrb[0].mxu0
        %v4195 = vadd.f32 %v3825, %v4194
        %v4196 = vpop.f32.mrb[0].mxu0
        %v4197 = vadd.f32 %v3827, %v4196
        %4198 = vmatprep.mubr.f32.mxu0 0.0
        %v4199 = vand.u32 %v277, 4294901760
        %v4200 = vsub.f32 %v277, %v4199
        %v4201 = vand.u32 %v4200, 4294901760
        %4202 = vmatmul.mubr.f32.gmra.mrb[0].mxu0 %v4201
        %v4203 = vpop.f32.mrb[0].mxu0
        %v4204 = vadd.f32 %v3833, %v4203
        %v4205 = vpop.f32.mrb[0].mxu0
        %v4206 = vadd.f32 %v3835, %v4205
        %4207 = vmatprep.mubr.f32.mxu0 0.0
        %v4208 = vand.u32 %v278, 4294901760
        %v4209 = vsub.f32 %v278, %v4208
        %v4210 = vand.u32 %v4209, 4294901760
        %4211 = vmatmul.mubr.f32.gmra.mrb[0].mxu0 %v4210
        %v4212 = vpop.f32.mrb[0].mxu0
        %v4213 = vadd.f32 %v3841, %v4212
        %v4214 = vpop.f32.mrb[0].mxu0
        %v4215 = vadd.f32 %v3843, %v4214
        %4216 = vmatprep.mubr.f32.mxu0 0.0
        %v4217 = vand.u32 %v279, 4294901760
        %v4218 = vsub.f32 %v279, %v4217
        %v4219 = vand.u32 %v4218, 4294901760
        %4220 = vmatmul.mubr.f32.gmra.mrb[0].mxu0 %v4219
        %v4221 = vpop.f32.mrb[0].mxu0
        %v4222 = vadd.f32 %v3849, %v4221
        %v4223 = vpop.f32.mrb[0].mxu0
        %v4224 = vadd.f32 %v3851, %v4223
        %4225 = vmatprep.mubr.f32.mxu0 0.0
        %v4226 = vand.u32 %v280, 4294901760
        %v4227 = vsub.f32 %v280, %v4226
        %v4228 = vand.u32 %v4227, 4294901760
        %4229 = vmatmul.mubr.f32.gmra.mrb[0].mxu0 %v4228
        %v4230 = vpop.f32.mrb[0].mxu0
        %v4231 = vadd.f32 %v3857, %v4230
        %v4232 = vpop.f32.mrb[0].mxu0
        %v4233 = vadd.f32 %v3859, %v4232
        %4234 = vmatprep.mubr.f32.mxu0 0.0
        %v4235 = vand.u32 %v281, 4294901760
        %v4236 = vsub.f32 %v281, %v4235
        %v4237 = vand.u32 %v4236, 4294901760
        %4238 = vmatmul.mubr.f32.gmra.mrb[0].mxu0 %v4237
        %v4239 = vpop.f32.mrb[0].mxu0
        %v4240 = vadd.f32 %v3865, %v4239
        %v4241 = vpop.f32.mrb[0].mxu0
        %v4242 = vadd.f32 %v3867, %v4241
        %4243 = vmatprep.mubr.f32.mxu0 0.0
        %v4244 = vand.u32 %v282, 4294901760
        %v4245 = vsub.f32 %v282, %v4244
        %v4246 = vand.u32 %v4245, 4294901760
        %4247 = vmatmul.mubr.f32.gmra.mrb[0].mxu0 %v4246
        %v4248 = vpop.f32.mrb[0].mxu0
        %v4249 = vadd.f32 %v3873, %v4248
        %v4250 = vpop.f32.mrb[0].mxu0
        %v4251 = vadd.f32 %v3875, %v4250
        %4252 = vmatprep.mubr.f32.mxu0 0.0
        %v4253 = vand.u32 %v283, 4294901760
        %v4254 = vsub.f32 %v283, %v4253
        %v4255 = vand.u32 %v4254, 4294901760
        %4256 = vmatmul.mubr.f32.gmra.mrb[0].mxu0 %v4255
        %v4257 = vpop.f32.mrb[0].mxu0
        %v4258 = vadd.f32 %v3881, %v4257
        %v4259 = vpop.f32.mrb[0].mxu0
        %v4260 = vadd.f32 %v3883, %v4259
        %4261 = vmatprep.mubr.f32.mxu0 0.0
        %v4262 = vand.u32 %v284, 4294901760
        %v4263 = vsub.f32 %v284, %v4262
        %v4264 = vand.u32 %v4263, 4294901760
        %4265 = vmatmul.mubr.f32.gmra.mrb[0].mxu0 %v4264
        %v4266 = vpop.f32.mrb[0].mxu0
        %v4267 = vadd.f32 %v3889, %v4266
        %v4268 = vpop.f32.mrb[0].mxu0
        %v4269 = vadd.f32 %v3891, %v4268
        %4270 = vmatprep.mubr.f32.mxu0 0.0
        %v4271 = vand.u32 %v285, 4294901760
        %v4272 = vsub.f32 %v285, %v4271
        %v4273 = vand.u32 %v4272, 4294901760
        %4274 = vmatmul.mubr.f32.gmra.mrb[0].mxu0 %v4273
        %v4275 = vpop.f32.mrb[0].mxu0
        %v4276 = vadd.f32 %v3897, %v4275
        %v4277 = vpop.f32.mrb[0].mxu0
        %v4278 = vadd.f32 %v3899, %v4277
        %4279 = vmatprep.mubr.f32.mxu0 0.0
        %v4280 = vand.u32 %v286, 4294901760
        %v4281 = vsub.f32 %v286, %v4280
        %v4282 = vand.u32 %v4281, 4294901760
        %4283 = vmatmul.mubr.f32.gmra.mrb[0].mxu0 %v4282
        %v4284 = vpop.f32.mrb[0].mxu0
        %v4285 = vadd.f32 %v3905, %v4284
        %v4286 = vpop.f32.mrb[0].mxu0
        %v4287 = vadd.f32 %v3907, %v4286
        %4288 = vmatprep.mubr.f32.mxu0 0.0
        %v4289 = vand.u32 %v287, 4294901760
        %v4290 = vsub.f32 %v287, %v4289
        %v4291 = vand.u32 %v4290, 4294901760
        %4292 = vmatmul.mubr.f32.gmra.mrb[0].mxu0 %v4291
        %v4293 = vpop.f32.mrb[0].mxu0
        %v4294 = vadd.f32 %v3913, %v4293
        %v4295 = vpop.f32.mrb[0].mxu0
        %v4296 = vadd.f32 %v3915, %v4295
        %4297 = vmatprep.mubr.f32.mxu0 0.0
        %v4298 = vand.u32 %v288, 4294901760
        %v4299 = vsub.f32 %v288, %v4298
        %v4300 = vand.u32 %v4299, 4294901760
        %4301 = vmatmul.mubr.f32.gmra.mrb[0].mxu0 %v4300
        %v4302 = vpop.f32.mrb[0].mxu0
        %v4303 = vadd.f32 %v3921, %v4302
        %v4304 = vpop.f32.mrb[0].mxu0
        %v4305 = vadd.f32 %v3923, %v4304
        %4306 = vmatprep.mubr.f32.mxu0 0.0
        %v4307 = vand.u32 %v289, 4294901760
        %v4308 = vsub.f32 %v289, %v4307
        %v4309 = vand.u32 %v4308, 4294901760
        %4310 = vmatmul.mubr.f32.gmra.mrb[0].mxu0 %v4309
        %v4311 = vpop.f32.mrb[0].mxu0
        %v4312 = vadd.f32 %v3929, %v4311
        %v4313 = vpop.f32.mrb[0].mxu0
        %v4314 = vadd.f32 %v3931, %v4313
        %4315 = vmatprep.mubr.f32.mxu0 0.0
        %v4316 = vand.u32 %v290, 4294901760
        %v4317 = vsub.f32 %v290, %v4316
        %v4318 = vand.u32 %v4317, 4294901760
        %4319 = vmatmul.mubr.f32.gmra.mrb[0].mxu0 %v4318
        %v4320 = vpop.f32.mrb[0].mxu0
        %v4321 = vadd.f32 %v3937, %v4320
        %v4322 = vpop.f32.mrb[0].mxu0
        %v4323 = vadd.f32 %v3939, %v4322
        %4324 = vmatprep.mubr.f32.mxu0 0.0
        %v4325 = vand.u32 %v291, 4294901760
        %v4326 = vsub.f32 %v291, %v4325
        %v4327 = vand.u32 %v4326, 4294901760
        %4328 = vmatmul.mubr.f32.gmra.mrb[0].mxu0 %v4327
        %v4329 = vpop.f32.mrb[0].mxu0
        %v4330 = vadd.f32 %v3945, %v4329
        %v4331 = vpop.f32.mrb[0].mxu0
        %v4332 = vadd.f32 %v3947, %v4331
        %4333 = vdwg.mxu0
        %4334 = vmatprep.subr.mxu0 0.0
        %v4335 = vand.u32 %v228, 4294901760
        %v4336 = vsub.f32 %v228, %v4335
        %v4337 = vand.u32 %v4336, 4294901760
        %4338 = vmatpush1.xpose.msra.mxu0 %v4337
        %4339 = vmatprep.subr.mxu0 0.0
        %v4340 = vand.u32 %v229, 4294901760
        %v4341 = vsub.f32 %v229, %v4340
        %v4342 = vand.u32 %v4341, 4294901760
        %4343 = vmatpush1.xpose.msra.mxu0 %v4342
        %4344 = vmatprep.subr.mxu0 0.0
        %v4345 = vand.u32 %v230, 4294901760
        %v4346 = vsub.f32 %v230, %v4345
        %v4347 = vand.u32 %v4346, 4294901760
        %4348 = vmatpush1.xpose.msra.mxu0 %v4347
        %4349 = vmatprep.subr.mxu0 0.0
        %v4350 = vand.u32 %v231, 4294901760
        %v4351 = vsub.f32 %v231, %v4350
        %v4352 = vand.u32 %v4351, 4294901760
        %4353 = vmatpush1.xpose.msra.mxu0 %v4352
        %4354 = vmatprep.subr.mxu0 0.0
        %v4355 = vand.u32 %v232, 4294901760
        %v4356 = vsub.f32 %v232, %v4355
        %v4357 = vand.u32 %v4356, 4294901760
        %4358 = vmatpush1.xpose.msra.mxu0 %v4357
        %4359 = vmatprep.subr.mxu0 0.0
        %v4360 = vand.u32 %v233, 4294901760
        %v4361 = vsub.f32 %v233, %v4360
        %v4362 = vand.u32 %v4361, 4294901760
        %4363 = vmatpush1.xpose.msra.mxu0 %v4362
        %4364 = vmatprep.subr.mxu0 0.0
        %v4365 = vand.u32 %v234, 4294901760
        %v4366 = vsub.f32 %v234, %v4365
        %v4367 = vand.u32 %v4366, 4294901760
        %4368 = vmatpush1.xpose.msra.mxu0 %v4367
        %4369 = vmatprep.subr.mxu0 0.0
        %v4370 = vand.u32 %v235, 4294901760
        %v4371 = vsub.f32 %v235, %v4370
        %v4372 = vand.u32 %v4371, 4294901760
        %4373 = vmatpush1.xpose.msra.mxu0 %v4372
        %4374 = vmatprep.subr.mxu0 0.0
        %v4375 = vand.u32 %v236, 4294901760
        %v4376 = vsub.f32 %v236, %v4375
        %v4377 = vand.u32 %v4376, 4294901760
        %4378 = vmatpush1.xpose.msra.mxu0 %v4377
        %4379 = vmatprep.subr.mxu0 0.0
        %v4380 = vand.u32 %v237, 4294901760
        %v4381 = vsub.f32 %v237, %v4380
        %v4382 = vand.u32 %v4381, 4294901760
        %4383 = vmatpush1.xpose.msra.mxu0 %v4382
        %4384 = vmatprep.subr.mxu0 0.0
        %v4385 = vand.u32 %v238, 4294901760
        %v4386 = vsub.f32 %v238, %v4385
        %v4387 = vand.u32 %v4386, 4294901760
        %4388 = vmatpush1.xpose.msra.mxu0 %v4387
        %4389 = vmatprep.subr.mxu0 0.0
        %v4390 = vand.u32 %v239, 4294901760
        %v4391 = vsub.f32 %v239, %v4390
        %v4392 = vand.u32 %v4391, 4294901760
        %4393 = vmatpush1.xpose.msra.mxu0 %v4392
        %4394 = vmatprep.subr.mxu0 0.0
        %v4395 = vand.u32 %v240, 4294901760
        %v4396 = vsub.f32 %v240, %v4395
        %v4397 = vand.u32 %v4396, 4294901760
        %4398 = vmatpush1.xpose.msra.mxu0 %v4397
        %4399 = vmatprep.subr.mxu0 0.0
        %v4400 = vand.u32 %v241, 4294901760
        %v4401 = vsub.f32 %v241, %v4400
        %v4402 = vand.u32 %v4401, 4294901760
        %4403 = vmatpush1.xpose.msra.mxu0 %v4402
        %4404 = vmatprep.subr.mxu0 0.0
        %v4405 = vand.u32 %v242, 4294901760
        %v4406 = vsub.f32 %v242, %v4405
        %v4407 = vand.u32 %v4406, 4294901760
        %4408 = vmatpush1.xpose.msra.mxu0 %v4407
        %4409 = vmatprep.subr.mxu0 0.0
        %v4410 = vand.u32 %v243, 4294901760
        %v4411 = vsub.f32 %v243, %v4410
        %v4412 = vand.u32 %v4411, 4294901760
        %4413 = vmatpush1.xpose.msra.mxu0 %v4412
        %4414 = vmatprep.subr.mxu0 0.0
        %v4415 = vand.u32 %v244, 4294901760
        %v4416 = vsub.f32 %v244, %v4415
        %v4417 = vand.u32 %v4416, 4294901760
        %4418 = vmatpush1.xpose.msra.mxu0 %v4417
        %4419 = vmatprep.subr.mxu0 0.0
        %v4420 = vand.u32 %v245, 4294901760
        %v4421 = vsub.f32 %v245, %v4420
        %v4422 = vand.u32 %v4421, 4294901760
        %4423 = vmatpush1.xpose.msra.mxu0 %v4422
        %4424 = vmatprep.subr.mxu0 0.0
        %v4425 = vand.u32 %v246, 4294901760
        %v4426 = vsub.f32 %v246, %v4425
        %v4427 = vand.u32 %v4426, 4294901760
        %4428 = vmatpush1.xpose.msra.mxu0 %v4427
        %4429 = vmatprep.subr.mxu0 0.0
        %v4430 = vand.u32 %v247, 4294901760
        %v4431 = vsub.f32 %v247, %v4430
        %v4432 = vand.u32 %v4431, 4294901760
        %4433 = vmatpush1.xpose.msra.mxu0 %v4432
        %4434 = vmatprep.subr.mxu0 0.0
        %v4435 = vand.u32 %v248, 4294901760
        %v4436 = vsub.f32 %v248, %v4435
        %v4437 = vand.u32 %v4436, 4294901760
        %4438 = vmatpush1.xpose.msra.mxu0 %v4437
        %4439 = vmatprep.subr.mxu0 0.0
        %v4440 = vand.u32 %v249, 4294901760
        %v4441 = vsub.f32 %v249, %v4440
        %v4442 = vand.u32 %v4441, 4294901760
        %4443 = vmatpush1.xpose.msra.mxu0 %v4442
        %4444 = vmatprep.subr.mxu0 0.0
        %v4445 = vand.u32 %v250, 4294901760
        %v4446 = vsub.f32 %v250, %v4445
        %v4447 = vand.u32 %v4446, 4294901760
        %4448 = vmatpush1.xpose.msra.mxu0 %v4447
        %4449 = vmatprep.subr.mxu0 0.0
        %v4450 = vand.u32 %v251, 4294901760
        %v4451 = vsub.f32 %v251, %v4450
        %v4452 = vand.u32 %v4451, 4294901760
        %4453 = vmatpush1.xpose.msra.mxu0 %v4452
        %4454 = vmatprep.subr.mxu0 0.0
        %v4455 = vand.u32 %v252, 4294901760
        %v4456 = vsub.f32 %v252, %v4455
        %v4457 = vand.u32 %v4456, 4294901760
        %4458 = vmatpush1.xpose.msra.mxu0 %v4457
        %4459 = vmatprep.subr.mxu0 0.0
        %v4460 = vand.u32 %v253, 4294901760
        %v4461 = vsub.f32 %v253, %v4460
        %v4462 = vand.u32 %v4461, 4294901760
        %4463 = vmatpush1.xpose.msra.mxu0 %v4462
        %4464 = vmatprep.subr.mxu0 0.0
        %v4465 = vand.u32 %v254, 4294901760
        %v4466 = vsub.f32 %v254, %v4465
        %v4467 = vand.u32 %v4466, 4294901760
        %4468 = vmatpush1.xpose.msra.mxu0 %v4467
        %4469 = vmatprep.subr.mxu0 0.0
        %v4470 = vand.u32 %v255, 4294901760
        %v4471 = vsub.f32 %v255, %v4470
        %v4472 = vand.u32 %v4471, 4294901760
        %4473 = vmatpush1.xpose.msra.mxu0 %v4472
        %4474 = vmatprep.subr.mxu0 0.0
        %v4475 = vand.u32 %v256, 4294901760
        %v4476 = vsub.f32 %v256, %v4475
        %v4477 = vand.u32 %v4476, 4294901760
        %4478 = vmatpush1.xpose.msra.mxu0 %v4477
        %4479 = vmatprep.subr.mxu0 0.0
        %v4480 = vand.u32 %v257, 4294901760
        %v4481 = vsub.f32 %v257, %v4480
        %v4482 = vand.u32 %v4481, 4294901760
        %4483 = vmatpush1.xpose.msra.mxu0 %v4482
        %4484 = vmatprep.subr.mxu0 0.0
        %v4485 = vand.u32 %v258, 4294901760
        %v4486 = vsub.f32 %v258, %v4485
        %v4487 = vand.u32 %v4486, 4294901760
        %4488 = vmatpush1.xpose.msra.mxu0 %v4487
        %4489 = vmatprep.subr.mxu0 0.0
        %v4490 = vand.u32 %v259, 4294901760
        %v4491 = vsub.f32 %v259, %v4490
        %v4492 = vand.u32 %v4491, 4294901760
        %4493 = vmatpush1.xpose.msra.mxu0 %v4492
        %4494 = vmatprep.mubr.f32.mxu0 0.0
        %v4495 = vand.u32 %v260, 4294901760
        %4496 = vmatmul.mubr.f32.gmra.mrb[0].mxu0 %v4495
        %v4497 = vpop.f32.mrb[0].mxu0
        %v4498 = vadd.f32 %v4051, %v4497
        %v4499 = vpop.f32.mrb[0].mxu0
        %v4500 = vadd.f32 %v4053, %v4499
        %4501 = vmatprep.mubr.f32.mxu0 0.0
        %v4502 = vand.u32 %v261, 4294901760
        %4503 = vmatmul.mubr.f32.gmra.mrb[0].mxu0 %v4502
        %v4504 = vpop.f32.mrb[0].mxu0
        %v4505 = vadd.f32 %v4060, %v4504
        %v4506 = vpop.f32.mrb[0].mxu0
        %v4507 = vadd.f32 %v4062, %v4506
        %4508 = vmatprep.mubr.f32.mxu0 0.0
        %v4509 = vand.u32 %v262, 4294901760
        %4510 = vmatmul.mubr.f32.gmra.mrb[0].mxu0 %v4509
        %v4511 = vpop.f32.mrb[0].mxu0
        %v4512 = vadd.f32 %v4069, %v4511
        %v4513 = vpop.f32.mrb[0].mxu0
        %v4514 = vadd.f32 %v4071, %v4513
        %4515 = vmatprep.mubr.f32.mxu0 0.0
        %v4516 = vand.u32 %v263, 4294901760
        %4517 = vmatmul.mubr.f32.gmra.mrb[0].mxu0 %v4516
        %v4518 = vpop.f32.mrb[0].mxu0
        %v4519 = vadd.f32 %v4078, %v4518
        %v4520 = vpop.f32.mrb[0].mxu0
        %v4521 = vadd.f32 %v4080, %v4520
        %4522 = vmatprep.mubr.f32.mxu0 0.0
        %v4523 = vand.u32 %v264, 4294901760
        %4524 = vmatmul.mubr.f32.gmra.mrb[0].mxu0 %v4523
        %v4525 = vpop.f32.mrb[0].mxu0
        %v4526 = vadd.f32 %v4087, %v4525
        %v4527 = vpop.f32.mrb[0].mxu0
        %v4528 = vadd.f32 %v4089, %v4527
        %4529 = vmatprep.mubr.f32.mxu0 0.0
        %v4530 = vand.u32 %v265, 4294901760
        %4531 = vmatmul.mubr.f32.gmra.mrb[0].mxu0 %v4530
        %v4532 = vpop.f32.mrb[0].mxu0
        %v4533 = vadd.f32 %v4096, %v4532
        %v4534 = vpop.f32.mrb[0].mxu0
        %v4535 = vadd.f32 %v4098, %v4534
        %4536 = vmatprep.mubr.f32.mxu0 0.0
        %v4537 = vand.u32 %v266, 4294901760
        %4538 = vmatmul.mubr.f32.gmra.mrb[0].mxu0 %v4537
        %v4539 = vpop.f32.mrb[0].mxu0
        %v4540 = vadd.f32 %v4105, %v4539
        %v4541 = vpop.f32.mrb[0].mxu0
        %v4542 = vadd.f32 %v4107, %v4541
        %4543 = vmatprep.mubr.f32.mxu0 0.0
        %v4544 = vand.u32 %v267, 4294901760
        %4545 = vmatmul.mubr.f32.gmra.mrb[0].mxu0 %v4544
        %v4546 = vpop.f32.mrb[0].mxu0
        %v4547 = vadd.f32 %v4114, %v4546
        %v4548 = vpop.f32.mrb[0].mxu0
        %v4549 = vadd.f32 %v4116, %v4548
        %4550 = vmatprep.mubr.f32.mxu0 0.0
        %v4551 = vand.u32 %v268, 4294901760
        %4552 = vmatmul.mubr.f32.gmra.mrb[0].mxu0 %v4551
        %v4553 = vpop.f32.mrb[0].mxu0
        %v4554 = vadd.f32 %v4123, %v4553
        %v4555 = vpop.f32.mrb[0].mxu0
        %v4556 = vadd.f32 %v4125, %v4555
        %4557 = vmatprep.mubr.f32.mxu0 0.0
        %v4558 = vand.u32 %v269, 4294901760
        %4559 = vmatmul.mubr.f32.gmra.mrb[0].mxu0 %v4558
        %v4560 = vpop.f32.mrb[0].mxu0
        %v4561 = vadd.f32 %v4132, %v4560
        %v4562 = vpop.f32.mrb[0].mxu0
        %v4563 = vadd.f32 %v4134, %v4562
        %4564 = vmatprep.mubr.f32.mxu0 0.0
        %v4565 = vand.u32 %v270, 4294901760
        %4566 = vmatmul.mubr.f32.gmra.mrb[0].mxu0 %v4565
        %v4567 = vpop.f32.mrb[0].mxu0
        %v4568 = vadd.f32 %v4141, %v4567
        %v4569 = vpop.f32.mrb[0].mxu0
        %v4570 = vadd.f32 %v4143, %v4569
        %4571 = vmatprep.mubr.f32.mxu0 0.0
        %v4572 = vand.u32 %v271, 4294901760
        %4573 = vmatmul.mubr.f32.gmra.mrb[0].mxu0 %v4572
        %v4574 = vpop.f32.mrb[0].mxu0
        %v4575 = vadd.f32 %v4150, %v4574
        %v4576 = vpop.f32.mrb[0].mxu0
        %v4577 = vadd.f32 %v4152, %v4576
        %4578 = vmatprep.mubr.f32.mxu0 0.0
        %v4579 = vand.u32 %v272, 4294901760
        %4580 = vmatmul.mubr.f32.gmra.mrb[0].mxu0 %v4579
        %v4581 = vpop.f32.mrb[0].mxu0
        %v4582 = vadd.f32 %v4159, %v4581
        %v4583 = vpop.f32.mrb[0].mxu0
        %v4584 = vadd.f32 %v4161, %v4583
        %4585 = vmatprep.mubr.f32.mxu0 0.0
        %v4586 = vand.u32 %v273, 4294901760
        %4587 = vmatmul.mubr.f32.gmra.mrb[0].mxu0 %v4586
        %v4588 = vpop.f32.mrb[0].mxu0
        %v4589 = vadd.f32 %v4168, %v4588
        %v4590 = vpop.f32.mrb[0].mxu0
        %v4591 = vadd.f32 %v4170, %v4590
        %4592 = vmatprep.mubr.f32.mxu0 0.0
        %v4593 = vand.u32 %v274, 4294901760
        %4594 = vmatmul.mubr.f32.gmra.mrb[0].mxu0 %v4593
        %v4595 = vpop.f32.mrb[0].mxu0
        %v4596 = vadd.f32 %v4177, %v4595
        %v4597 = vpop.f32.mrb[0].mxu0
        %v4598 = vadd.f32 %v4179, %v4597
        %4599 = vmatprep.mubr.f32.mxu0 0.0
        %v4600 = vand.u32 %v275, 4294901760
        %4601 = vmatmul.mubr.f32.gmra.mrb[0].mxu0 %v4600
        %v4602 = vpop.f32.mrb[0].mxu0
        %v4603 = vadd.f32 %v4186, %v4602
        %v4604 = vpop.f32.mrb[0].mxu0
        %v4605 = vadd.f32 %v4188, %v4604
        %4606 = vmatprep.mubr.f32.mxu0 0.0
        %v4607 = vand.u32 %v276, 4294901760
        %4608 = vmatmul.mubr.f32.gmra.mrb[0].mxu0 %v4607
        %v4609 = vpop.f32.mrb[0].mxu0
        %v4610 = vadd.f32 %v4195, %v4609
        %v4611 = vpop.f32.mrb[0].mxu0
        %v4612 = vadd.f32 %v4197, %v4611
        %4613 = vmatprep.mubr.f32.mxu0 0.0
        %v4614 = vand.u32 %v277, 4294901760
        %4615 = vmatmul.mubr.f32.gmra.mrb[0].mxu0 %v4614
        %v4616 = vpop.f32.mrb[0].mxu0
        %v4617 = vadd.f32 %v4204, %v4616
        %v4618 = vpop.f32.mrb[0].mxu0
        %v4619 = vadd.f32 %v4206, %v4618
        %4620 = vmatprep.mubr.f32.mxu0 0.0
        %v4621 = vand.u32 %v278, 4294901760
        %4622 = vmatmul.mubr.f32.gmra.mrb[0].mxu0 %v4621
        %v4623 = vpop.f32.mrb[0].mxu0
        %v4624 = vadd.f32 %v4213, %v4623
        %v4625 = vpop.f32.mrb[0].mxu0
        %v4626 = vadd.f32 %v4215, %v4625
        %4627 = vmatprep.mubr.f32.mxu0 0.0
        %v4628 = vand.u32 %v279, 4294901760
        %4629 = vmatmul.mubr.f32.gmra.mrb[0].mxu0 %v4628
        %v4630 = vpop.f32.mrb[0].mxu0
        %v4631 = vadd.f32 %v4222, %v4630
        %v4632 = vpop.f32.mrb[0].mxu0
        %v4633 = vadd.f32 %v4224, %v4632
        %4634 = vmatprep.mubr.f32.mxu0 0.0
        %v4635 = vand.u32 %v280, 4294901760
        %4636 = vmatmul.mubr.f32.gmra.mrb[0].mxu0 %v4635
        %v4637 = vpop.f32.mrb[0].mxu0
        %v4638 = vadd.f32 %v4231, %v4637
        %v4639 = vpop.f32.mrb[0].mxu0
        %v4640 = vadd.f32 %v4233, %v4639
        %4641 = vmatprep.mubr.f32.mxu0 0.0
        %v4642 = vand.u32 %v281, 4294901760
        %4643 = vmatmul.mubr.f32.gmra.mrb[0].mxu0 %v4642
        %v4644 = vpop.f32.mrb[0].mxu0
        %v4645 = vadd.f32 %v4240, %v4644
        %v4646 = vpop.f32.mrb[0].mxu0
        %v4647 = vadd.f32 %v4242, %v4646
        %4648 = vmatprep.mubr.f32.mxu0 0.0
        %v4649 = vand.u32 %v282, 4294901760
        %4650 = vmatmul.mubr.f32.gmra.mrb[0].mxu0 %v4649
        %v4651 = vpop.f32.mrb[0].mxu0
        %v4652 = vadd.f32 %v4249, %v4651
        %v4653 = vpop.f32.mrb[0].mxu0
        %v4654 = vadd.f32 %v4251, %v4653
        %4655 = vmatprep.mubr.f32.mxu0 0.0
        %v4656 = vand.u32 %v283, 4294901760
        %4657 = vmatmul.mubr.f32.gmra.mrb[0].mxu0 %v4656
        %v4658 = vpop.f32.mrb[0].mxu0
        %v4659 = vadd.f32 %v4258, %v4658
        %v4660 = vpop.f32.mrb[0].mxu0
        %v4661 = vadd.f32 %v4260, %v4660
        %4662 = vmatprep.mubr.f32.mxu0 0.0
        %v4663 = vand.u32 %v284, 4294901760
        %4664 = vmatmul.mubr.f32.gmra.mrb[0].mxu0 %v4663
        %v4665 = vpop.f32.mrb[0].mxu0
        %v4666 = vadd.f32 %v4267, %v4665
        %v4667 = vpop.f32.mrb[0].mxu0
        %v4668 = vadd.f32 %v4269, %v4667
        %4669 = vmatprep.mubr.f32.mxu0 0.0
        %v4670 = vand.u32 %v285, 4294901760
        %4671 = vmatmul.mubr.f32.gmra.mrb[0].mxu0 %v4670
        %v4672 = vpop.f32.mrb[0].mxu0
        %v4673 = vadd.f32 %v4276, %v4672
        %v4674 = vpop.f32.mrb[0].mxu0
        %v4675 = vadd.f32 %v4278, %v4674
        %4676 = vmatprep.mubr.f32.mxu0 0.0
        %v4677 = vand.u32 %v286, 4294901760
        %4678 = vmatmul.mubr.f32.gmra.mrb[0].mxu0 %v4677
        %v4679 = vpop.f32.mrb[0].mxu0
        %v4680 = vadd.f32 %v4285, %v4679
        %v4681 = vpop.f32.mrb[0].mxu0
        %v4682 = vadd.f32 %v4287, %v4681
        %4683 = vmatprep.mubr.f32.mxu0 0.0
        %v4684 = vand.u32 %v287, 4294901760
        %4685 = vmatmul.mubr.f32.gmra.mrb[0].mxu0 %v4684
        %v4686 = vpop.f32.mrb[0].mxu0
        %v4687 = vadd.f32 %v4294, %v4686
        %v4688 = vpop.f32.mrb[0].mxu0
        %v4689 = vadd.f32 %v4296, %v4688
        %4690 = vmatprep.mubr.f32.mxu0 0.0
        %v4691 = vand.u32 %v288, 4294901760
        %4692 = vmatmul.mubr.f32.gmra.mrb[0].mxu0 %v4691
        %v4693 = vpop.f32.mrb[0].mxu0
        %v4694 = vadd.f32 %v4303, %v4693
        %v4695 = vpop.f32.mrb[0].mxu0
        %v4696 = vadd.f32 %v4305, %v4695
        %4697 = vmatprep.mubr.f32.mxu0 0.0
        %v4698 = vand.u32 %v289, 4294901760
        %4699 = vmatmul.mubr.f32.gmra.mrb[0].mxu0 %v4698
        %v4700 = vpop.f32.mrb[0].mxu0
        %v4701 = vadd.f32 %v4312, %v4700
        %v4702 = vpop.f32.mrb[0].mxu0
        %v4703 = vadd.f32 %v4314, %v4702
        %4704 = vmatprep.mubr.f32.mxu0 0.0
        %v4705 = vand.u32 %v290, 4294901760
        %4706 = vmatmul.mubr.f32.gmra.mrb[0].mxu0 %v4705
        %v4707 = vpop.f32.mrb[0].mxu0
        %v4708 = vadd.f32 %v4321, %v4707
        %v4709 = vpop.f32.mrb[0].mxu0
        %v4710 = vadd.f32 %v4323, %v4709
        %4711 = vmatprep.mubr.f32.mxu0 0.0
        %v4712 = vand.u32 %v291, 4294901760
        %4713 = vmatmul.mubr.f32.gmra.mrb[0].mxu0 %v4712
        %v4714 = vpop.f32.mrb[0].mxu0
        %v4715 = vadd.f32 %v4330, %v4714
        %v4716 = vpop.f32.mrb[0].mxu0
        %v4717 = vadd.f32 %v4332, %v4716
        %4718 = vdwg.mxu0
        %4719 = vmatprep.subr.mxu0 0.0
        %v4720 = vand.u32 %v228, 4294901760
        %4721 = vmatpush1.xpose.msra.mxu0 %v4720
        %4722 = vmatprep.subr.mxu0 0.0
        %v4723 = vand.u32 %v229, 4294901760
        %4724 = vmatpush1.xpose.msra.mxu0 %v4723
        %4725 = vmatprep.subr.mxu0 0.0
        %v4726 = vand.u32 %v230, 4294901760
        %4727 = vmatpush1.xpose.msra.mxu0 %v4726
        %4728 = vmatprep.subr.mxu0 0.0
        %v4729 = vand.u32 %v231, 4294901760
        %4730 = vmatpush1.xpose.msra.mxu0 %v4729
        %4731 = vmatprep.subr.mxu0 0.0
        %v4732 = vand.u32 %v232, 4294901760
        %4733 = vmatpush1.xpose.msra.mxu0 %v4732
        %4734 = vmatprep.subr.mxu0 0.0
        %v4735 = vand.u32 %v233, 4294901760
        %4736 = vmatpush1.xpose.msra.mxu0 %v4735
        %4737 = vmatprep.subr.mxu0 0.0
        %v4738 = vand.u32 %v234, 4294901760
        %4739 = vmatpush1.xpose.msra.mxu0 %v4738
        %4740 = vmatprep.subr.mxu0 0.0
        %v4741 = vand.u32 %v235, 4294901760
        %4742 = vmatpush1.xpose.msra.mxu0 %v4741
        %4743 = vmatprep.subr.mxu0 0.0
        %v4744 = vand.u32 %v236, 4294901760
        %4745 = vmatpush1.xpose.msra.mxu0 %v4744
        %4746 = vmatprep.subr.mxu0 0.0
        %v4747 = vand.u32 %v237, 4294901760
        %4748 = vmatpush1.xpose.msra.mxu0 %v4747
        %4749 = vmatprep.subr.mxu0 0.0
        %v4750 = vand.u32 %v238, 4294901760
        %4751 = vmatpush1.xpose.msra.mxu0 %v4750
        %4752 = vmatprep.subr.mxu0 0.0
        %v4753 = vand.u32 %v239, 4294901760
        %4754 = vmatpush1.xpose.msra.mxu0 %v4753
        %4755 = vmatprep.subr.mxu0 0.0
        %v4756 = vand.u32 %v240, 4294901760
        %4757 = vmatpush1.xpose.msra.mxu0 %v4756
        %4758 = vmatprep.subr.mxu0 0.0
        %v4759 = vand.u32 %v241, 4294901760
        %4760 = vmatpush1.xpose.msra.mxu0 %v4759
        %4761 = vmatprep.subr.mxu0 0.0
        %v4762 = vand.u32 %v242, 4294901760
        %4763 = vmatpush1.xpose.msra.mxu0 %v4762
        %4764 = vmatprep.subr.mxu0 0.0
        %v4765 = vand.u32 %v243, 4294901760
        %4766 = vmatpush1.xpose.msra.mxu0 %v4765
        %4767 = vmatprep.subr.mxu0 0.0
        %v4768 = vand.u32 %v244, 4294901760
        %4769 = vmatpush1.xpose.msra.mxu0 %v4768
        %4770 = vmatprep.subr.mxu0 0.0
        %v4771 = vand.u32 %v245, 4294901760
        %4772 = vmatpush1.xpose.msra.mxu0 %v4771
        %4773 = vmatprep.subr.mxu0 0.0
        %v4774 = vand.u32 %v246, 4294901760
        %4775 = vmatpush1.xpose.msra.mxu0 %v4774
        %4776 = vmatprep.subr.mxu0 0.0
        %v4777 = vand.u32 %v247, 4294901760
        %4778 = vmatpush1.xpose.msra.mxu0 %v4777
        %4779 = vmatprep.subr.mxu0 0.0
        %v4780 = vand.u32 %v248, 4294901760
        %4781 = vmatpush1.xpose.msra.mxu0 %v4780
        %4782 = vmatprep.subr.mxu0 0.0
        %v4783 = vand.u32 %v249, 4294901760
        %4784 = vmatpush1.xpose.msra.mxu0 %v4783
        %4785 = vmatprep.subr.mxu0 0.0
        %v4786 = vand.u32 %v250, 4294901760
        %4787 = vmatpush1.xpose.msra.mxu0 %v4786
        %4788 = vmatprep.subr.mxu0 0.0
        %v4789 = vand.u32 %v251, 4294901760
        %4790 = vmatpush1.xpose.msra.mxu0 %v4789
        %4791 = vmatprep.subr.mxu0 0.0
        %v4792 = vand.u32 %v252, 4294901760
        %4793 = vmatpush1.xpose.msra.mxu0 %v4792
        %4794 = vmatprep.subr.mxu0 0.0
        %v4795 = vand.u32 %v253, 4294901760
        %4796 = vmatpush1.xpose.msra.mxu0 %v4795
        %4797 = vmatprep.subr.mxu0 0.0
        %v4798 = vand.u32 %v254, 4294901760
        %4799 = vmatpush1.xpose.msra.mxu0 %v4798
        %4800 = vmatprep.subr.mxu0 0.0
        %v4801 = vand.u32 %v255, 4294901760
        %4802 = vmatpush1.xpose.msra.mxu0 %v4801
        %4803 = vmatprep.subr.mxu0 0.0
        %v4804 = vand.u32 %v256, 4294901760
        %4805 = vmatpush1.xpose.msra.mxu0 %v4804
        %4806 = vmatprep.subr.mxu0 0.0
        %v4807 = vand.u32 %v257, 4294901760
        %4808 = vmatpush1.xpose.msra.mxu0 %v4807
        %4809 = vmatprep.subr.mxu0 0.0
        %v4810 = vand.u32 %v258, 4294901760
        %4811 = vmatpush1.xpose.msra.mxu0 %v4810
        %4812 = vmatprep.subr.mxu0 0.0
        %v4813 = vand.u32 %v259, 4294901760
        %4814 = vmatpush1.xpose.msra.mxu0 %v4813
        %4815 = vmatprep.mubr.f32.mxu0 0.0
        %v4816 = vand.u32 %v260, 4294901760
        %4817 = vmatmul.mubr.f32.gmra.mrb[0].mxu0 %v4816
        %v4818 = vpop.f32.mrb[0].mxu0
        %v4819 = vadd.f32 %v4498, %v4818
        %v4820 = vpop.f32.mrb[0].mxu0
        %v4821 = vadd.f32 %v4500, %v4820
        %4822 = vmatprep.mubr.f32.mxu0 0.0
        %v4823 = vand.u32 %v261, 4294901760
        %4824 = vmatmul.mubr.f32.gmra.mrb[0].mxu0 %v4823
        %v4825 = vpop.f32.mrb[0].mxu0
        %v4826 = vadd.f32 %v4505, %v4825
        %v4827 = vpop.f32.mrb[0].mxu0
        %v4828 = vadd.f32 %v4507, %v4827
        %4829 = vmatprep.mubr.f32.mxu0 0.0
        %v4830 = vand.u32 %v262, 4294901760
        %4831 = vmatmul.mubr.f32.gmra.mrb[0].mxu0 %v4830
        %v4832 = vpop.f32.mrb[0].mxu0
        %v4833 = vadd.f32 %v4512, %v4832
        %v4834 = vpop.f32.mrb[0].mxu0
        %v4835 = vadd.f32 %v4514, %v4834
        %4836 = vmatprep.mubr.f32.mxu0 0.0
        %v4837 = vand.u32 %v263, 4294901760
        %4838 = vmatmul.mubr.f32.gmra.mrb[0].mxu0 %v4837
        %v4839 = vpop.f32.mrb[0].mxu0
        %v4840 = vadd.f32 %v4519, %v4839
        %v4841 = vpop.f32.mrb[0].mxu0
        %v4842 = vadd.f32 %v4521, %v4841
        %4843 = vmatprep.mubr.f32.mxu0 0.0
        %v4844 = vand.u32 %v264, 4294901760
        %4845 = vmatmul.mubr.f32.gmra.mrb[0].mxu0 %v4844
        %v4846 = vpop.f32.mrb[0].mxu0
        %v4847 = vadd.f32 %v4526, %v4846
        %v4848 = vpop.f32.mrb[0].mxu0
        %v4849 = vadd.f32 %v4528, %v4848
        %4850 = vmatprep.mubr.f32.mxu0 0.0
        %v4851 = vand.u32 %v265, 4294901760
        %4852 = vmatmul.mubr.f32.gmra.mrb[0].mxu0 %v4851
        %v4853 = vpop.f32.mrb[0].mxu0
        %v4854 = vadd.f32 %v4533, %v4853
        %v4855 = vpop.f32.mrb[0].mxu0
        %v4856 = vadd.f32 %v4535, %v4855
        %4857 = vmatprep.mubr.f32.mxu0 0.0
        %v4858 = vand.u32 %v266, 4294901760
        %4859 = vmatmul.mubr.f32.gmra.mrb[0].mxu0 %v4858
        %v4860 = vpop.f32.mrb[0].mxu0
        %v4861 = vadd.f32 %v4540, %v4860
        %v4862 = vpop.f32.mrb[0].mxu0
        %v4863 = vadd.f32 %v4542, %v4862
        %4864 = vmatprep.mubr.f32.mxu0 0.0
        %v4865 = vand.u32 %v267, 4294901760
        %4866 = vmatmul.mubr.f32.gmra.mrb[0].mxu0 %v4865
        %v4867 = vpop.f32.mrb[0].mxu0
        %v4868 = vadd.f32 %v4547, %v4867
        %v4869 = vpop.f32.mrb[0].mxu0
        %v4870 = vadd.f32 %v4549, %v4869
        %4871 = vmatprep.mubr.f32.mxu0 0.0
        %v4872 = vand.u32 %v268, 4294901760
        %4873 = vmatmul.mubr.f32.gmra.mrb[0].mxu0 %v4872
        %v4874 = vpop.f32.mrb[0].mxu0
        %v4875 = vadd.f32 %v4554, %v4874
        %v4876 = vpop.f32.mrb[0].mxu0
        %v4877 = vadd.f32 %v4556, %v4876
        %4878 = vmatprep.mubr.f32.mxu0 0.0
        %v4879 = vand.u32 %v269, 4294901760
        %4880 = vmatmul.mubr.f32.gmra.mrb[0].mxu0 %v4879
        %v4881 = vpop.f32.mrb[0].mxu0
        %v4882 = vadd.f32 %v4561, %v4881
        %v4883 = vpop.f32.mrb[0].mxu0
        %v4884 = vadd.f32 %v4563, %v4883
        %4885 = vmatprep.mubr.f32.mxu0 0.0
        %v4886 = vand.u32 %v270, 4294901760
        %4887 = vmatmul.mubr.f32.gmra.mrb[0].mxu0 %v4886
        %v4888 = vpop.f32.mrb[0].mxu0
        %v4889 = vadd.f32 %v4568, %v4888
        %v4890 = vpop.f32.mrb[0].mxu0
        %v4891 = vadd.f32 %v4570, %v4890
        %4892 = vmatprep.mubr.f32.mxu0 0.0
        %v4893 = vand.u32 %v271, 4294901760
        %4894 = vmatmul.mubr.f32.gmra.mrb[0].mxu0 %v4893
        %v4895 = vpop.f32.mrb[0].mxu0
        %v4896 = vadd.f32 %v4575, %v4895
        %v4897 = vpop.f32.mrb[0].mxu0
        %v4898 = vadd.f32 %v4577, %v4897
        %4899 = vmatprep.mubr.f32.mxu0 0.0
        %v4900 = vand.u32 %v272, 4294901760
        %4901 = vmatmul.mubr.f32.gmra.mrb[0].mxu0 %v4900
        %v4902 = vpop.f32.mrb[0].mxu0
        %v4903 = vadd.f32 %v4582, %v4902
        %v4904 = vpop.f32.mrb[0].mxu0
        %v4905 = vadd.f32 %v4584, %v4904
        %4906 = vmatprep.mubr.f32.mxu0 0.0
        %v4907 = vand.u32 %v273, 4294901760
        %4908 = vmatmul.mubr.f32.gmra.mrb[0].mxu0 %v4907
        %v4909 = vpop.f32.mrb[0].mxu0
        %v4910 = vadd.f32 %v4589, %v4909
        %v4911 = vpop.f32.mrb[0].mxu0
        %v4912 = vadd.f32 %v4591, %v4911
        %4913 = vmatprep.mubr.f32.mxu0 0.0
        %v4914 = vand.u32 %v274, 4294901760
        %4915 = vmatmul.mubr.f32.gmra.mrb[0].mxu0 %v4914
        %v4916 = vpop.f32.mrb[0].mxu0
        %v4917 = vadd.f32 %v4596, %v4916
        %v4918 = vpop.f32.mrb[0].mxu0
        %v4919 = vadd.f32 %v4598, %v4918
        %4920 = vmatprep.mubr.f32.mxu0 0.0
        %v4921 = vand.u32 %v275, 4294901760
        %4922 = vmatmul.mubr.f32.gmra.mrb[0].mxu0 %v4921
        %v4923 = vpop.f32.mrb[0].mxu0
        %v4924 = vadd.f32 %v4603, %v4923
        %v4925 = vpop.f32.mrb[0].mxu0
        %v4926 = vadd.f32 %v4605, %v4925
        %4927 = vmatprep.mubr.f32.mxu0 0.0
        %v4928 = vand.u32 %v276, 4294901760
        %4929 = vmatmul.mubr.f32.gmra.mrb[0].mxu0 %v4928
        %v4930 = vpop.f32.mrb[0].mxu0
        %v4931 = vadd.f32 %v4610, %v4930
        %v4932 = vpop.f32.mrb[0].mxu0
        %v4933 = vadd.f32 %v4612, %v4932
        %4934 = vmatprep.mubr.f32.mxu0 0.0
        %v4935 = vand.u32 %v277, 4294901760
        %4936 = vmatmul.mubr.f32.gmra.mrb[0].mxu0 %v4935
        %v4937 = vpop.f32.mrb[0].mxu0
        %v4938 = vadd.f32 %v4617, %v4937
        %v4939 = vpop.f32.mrb[0].mxu0
        %v4940 = vadd.f32 %v4619, %v4939
        %4941 = vmatprep.mubr.f32.mxu0 0.0
        %v4942 = vand.u32 %v278, 4294901760
        %4943 = vmatmul.mubr.f32.gmra.mrb[0].mxu0 %v4942
        %v4944 = vpop.f32.mrb[0].mxu0
        %v4945 = vadd.f32 %v4624, %v4944
        %v4946 = vpop.f32.mrb[0].mxu0
        %v4947 = vadd.f32 %v4626, %v4946
        %4948 = vmatprep.mubr.f32.mxu0 0.0
        %v4949 = vand.u32 %v279, 4294901760
        %4950 = vmatmul.mubr.f32.gmra.mrb[0].mxu0 %v4949
        %v4951 = vpop.f32.mrb[0].mxu0
        %v4952 = vadd.f32 %v4631, %v4951
        %v4953 = vpop.f32.mrb[0].mxu0
        %v4954 = vadd.f32 %v4633, %v4953
        %4955 = vmatprep.mubr.f32.mxu0 0.0
        %v4956 = vand.u32 %v280, 4294901760
        %4957 = vmatmul.mubr.f32.gmra.mrb[0].mxu0 %v4956
        %v4958 = vpop.f32.mrb[0].mxu0
        %v4959 = vadd.f32 %v4638, %v4958
        %v4960 = vpop.f32.mrb[0].mxu0
        %v4961 = vadd.f32 %v4640, %v4960
        %4962 = vmatprep.mubr.f32.mxu0 0.0
        %v4963 = vand.u32 %v281, 4294901760
        %4964 = vmatmul.mubr.f32.gmra.mrb[0].mxu0 %v4963
        %v4965 = vpop.f32.mrb[0].mxu0
        %v4966 = vadd.f32 %v4645, %v4965
        %v4967 = vpop.f32.mrb[0].mxu0
        %v4968 = vadd.f32 %v4647, %v4967
        %4969 = vmatprep.mubr.f32.mxu0 0.0
        %v4970 = vand.u32 %v282, 4294901760
        %4971 = vmatmul.mubr.f32.gmra.mrb[0].mxu0 %v4970
        %v4972 = vpop.f32.mrb[0].mxu0
        %v4973 = vadd.f32 %v4652, %v4972
        %v4974 = vpop.f32.mrb[0].mxu0
        %v4975 = vadd.f32 %v4654, %v4974
        %4976 = vmatprep.mubr.f32.mxu0 0.0
        %v4977 = vand.u32 %v283, 4294901760
        %4978 = vmatmul.mubr.f32.gmra.mrb[0].mxu0 %v4977
        %v4979 = vpop.f32.mrb[0].mxu0
        %v4980 = vadd.f32 %v4659, %v4979
        %v4981 = vpop.f32.mrb[0].mxu0
        %v4982 = vadd.f32 %v4661, %v4981
        %4983 = vmatprep.mubr.f32.mxu0 0.0
        %v4984 = vand.u32 %v284, 4294901760
        %4985 = vmatmul.mubr.f32.gmra.mrb[0].mxu0 %v4984
        %v4986 = vpop.f32.mrb[0].mxu0
        %v4987 = vadd.f32 %v4666, %v4986
        %v4988 = vpop.f32.mrb[0].mxu0
        %v4989 = vadd.f32 %v4668, %v4988
        %4990 = vmatprep.mubr.f32.mxu0 0.0
        %v4991 = vand.u32 %v285, 4294901760
        %4992 = vmatmul.mubr.f32.gmra.mrb[0].mxu0 %v4991
        %v4993 = vpop.f32.mrb[0].mxu0
        %v4994 = vadd.f32 %v4673, %v4993
        %v4995 = vpop.f32.mrb[0].mxu0
        %v4996 = vadd.f32 %v4675, %v4995
        %4997 = vmatprep.mubr.f32.mxu0 0.0
        %v4998 = vand.u32 %v286, 4294901760
        %4999 = vmatmul.mubr.f32.gmra.mrb[0].mxu0 %v4998
        %v5000 = vpop.f32.mrb[0].mxu0
        %v5001 = vadd.f32 %v4680, %v5000
        %v5002 = vpop.f32.mrb[0].mxu0
        %v5003 = vadd.f32 %v4682, %v5002
        %5004 = vmatprep.mubr.f32.mxu0 0.0
        %v5005 = vand.u32 %v287, 4294901760
        %5006 = vmatmul.mubr.f32.gmra.mrb[0].mxu0 %v5005
        %v5007 = vpop.f32.mrb[0].mxu0
        %v5008 = vadd.f32 %v4687, %v5007
        %v5009 = vpop.f32.mrb[0].mxu0
        %v5010 = vadd.f32 %v4689, %v5009
        %5011 = vmatprep.mubr.f32.mxu0 0.0
        %v5012 = vand.u32 %v288, 4294901760
        %5013 = vmatmul.mubr.f32.gmra.mrb[0].mxu0 %v5012
        %v5014 = vpop.f32.mrb[0].mxu0
        %v5015 = vadd.f32 %v4694, %v5014
        %v5016 = vpop.f32.mrb[0].mxu0
        %v5017 = vadd.f32 %v4696, %v5016
        %5018 = vmatprep.mubr.f32.mxu0 0.0
        %v5019 = vand.u32 %v289, 4294901760
        %5020 = vmatmul.mubr.f32.gmra.mrb[0].mxu0 %v5019
        %v5021 = vpop.f32.mrb[0].mxu0
        %v5022 = vadd.f32 %v4701, %v5021
        %v5023 = vpop.f32.mrb[0].mxu0
        %v5024 = vadd.f32 %v4703, %v5023
        %5025 = vmatprep.mubr.f32.mxu0 0.0
        %v5026 = vand.u32 %v290, 4294901760
        %5027 = vmatmul.mubr.f32.gmra.mrb[0].mxu0 %v5026
        %v5028 = vpop.f32.mrb[0].mxu0
        %v5029 = vadd.f32 %v4708, %v5028
        %v5030 = vpop.f32.mrb[0].mxu0
        %v5031 = vadd.f32 %v4710, %v5030
        %5032 = vmatprep.mubr.f32.mxu0 0.0
        %v5033 = vand.u32 %v291, 4294901760
        %5034 = vmatmul.mubr.f32.gmra.mrb[0].mxu0 %v5033
        %v5035 = vpop.f32.mrb[0].mxu0
        %v5036 = vadd.f32 %v4715, %v5035
        %v5037 = vpop.f32.mrb[0].mxu0
        %v5038 = vadd.f32 %v4717, %v5037
        %5039 = vdwg.mxu0
        %v5040 = vxor.u32 %v2445, 2147483648
        %v5041 = vxor.u32 %v2447, 2147483648
        %v5042 = vxor.u32 %v4819, 2147483648
        %v5043 = vxor.u32 %v4821, 2147483648
        %v5044 = vxor.u32 %v2452, 2147483648
        %v5045 = vxor.u32 %v2454, 2147483648
        %v5046 = vxor.u32 %v4826, 2147483648
        %v5047 = vxor.u32 %v4828, 2147483648
        %v5048 = vxor.u32 %v2459, 2147483648
        %v5049 = vxor.u32 %v2461, 2147483648
        %v5050 = vxor.u32 %v4833, 2147483648
        %v5051 = vxor.u32 %v4835, 2147483648
        %v5052 = vxor.u32 %v2466, 2147483648
        %v5053 = vxor.u32 %v2468, 2147483648
        %v5054 = vxor.u32 %v4840, 2147483648
        %v5055 = vxor.u32 %v4842, 2147483648
        %v5056 = vxor.u32 %v2473, 2147483648
        %v5057 = vxor.u32 %v2475, 2147483648
        %v5058 = vxor.u32 %v4847, 2147483648
        %v5059 = vxor.u32 %v4849, 2147483648
        %v5060 = vxor.u32 %v2480, 2147483648
        %v5061 = vxor.u32 %v2482, 2147483648
        %v5062 = vxor.u32 %v4854, 2147483648
        %v5063 = vxor.u32 %v4856, 2147483648
        %v5064 = vxor.u32 %v2487, 2147483648
        %v5065 = vxor.u32 %v2489, 2147483648
        %v5066 = vxor.u32 %v4861, 2147483648
        %v5067 = vxor.u32 %v4863, 2147483648
        %v5068 = vxor.u32 %v2494, 2147483648
        %v5069 = vxor.u32 %v2496, 2147483648
        %v5070 = vxor.u32 %v4868, 2147483648
        %v5071 = vxor.u32 %v4870, 2147483648
        %v5072 = vxor.u32 %v2501, 2147483648
        %v5073 = vxor.u32 %v2503, 2147483648
        %v5074 = vxor.u32 %v4875, 2147483648
        %v5075 = vxor.u32 %v4877, 2147483648
        %v5076 = vxor.u32 %v2508, 2147483648
        %v5077 = vxor.u32 %v2510, 2147483648
        %v5078 = vxor.u32 %v4882, 2147483648
        %v5079 = vxor.u32 %v4884, 2147483648
        %v5080 = vxor.u32 %v2515, 2147483648
        %v5081 = vxor.u32 %v2517, 2147483648
        %v5082 = vxor.u32 %v4889, 2147483648
        %v5083 = vxor.u32 %v4891, 2147483648
        %v5084 = vxor.u32 %v2522, 2147483648
        %v5085 = vxor.u32 %v2524, 2147483648
        %v5086 = vxor.u32 %v4896, 2147483648
        %v5087 = vxor.u32 %v4898, 2147483648
        %v5088 = vxor.u32 %v2529, 2147483648
        %v5089 = vxor.u32 %v2531, 2147483648
        %v5090 = vxor.u32 %v4903, 2147483648
        %v5091 = vxor.u32 %v4905, 2147483648
        %v5092 = vxor.u32 %v2536, 2147483648
        %v5093 = vxor.u32 %v2538, 2147483648
        %v5094 = vxor.u32 %v4910, 2147483648
        %v5095 = vxor.u32 %v4912, 2147483648
        %v5096 = vxor.u32 %v2543, 2147483648
        %v5097 = vxor.u32 %v2545, 2147483648
        %v5098 = vxor.u32 %v4917, 2147483648
        %v5099 = vxor.u32 %v4919, 2147483648
        %v5100 = vxor.u32 %v2550, 2147483648
        %v5101 = vxor.u32 %v2552, 2147483648
        %v5102 = vxor.u32 %v4924, 2147483648
        %v5103 = vxor.u32 %v4926, 2147483648
        %v5104 = vxor.u32 %v2557, 2147483648
        %v5105 = vxor.u32 %v2559, 2147483648
        %v5106 = vxor.u32 %v4931, 2147483648
        %v5107 = vxor.u32 %v4933, 2147483648
        %v5108 = vxor.u32 %v2564, 2147483648
        %v5109 = vxor.u32 %v2566, 2147483648
        %v5110 = vxor.u32 %v4938, 2147483648
        %v5111 = vxor.u32 %v4940, 2147483648
        %v5112 = vxor.u32 %v2571, 2147483648
        %v5113 = vxor.u32 %v2573, 2147483648
        %v5114 = vxor.u32 %v4945, 2147483648
        %v5115 = vxor.u32 %v4947, 2147483648
        %v5116 = vxor.u32 %v2578, 2147483648
        %v5117 = vxor.u32 %v2580, 2147483648
        %v5118 = vxor.u32 %v4952, 2147483648
        %v5119 = vxor.u32 %v4954, 2147483648
        %v5120 = vxor.u32 %v2585, 2147483648
        %v5121 = vxor.u32 %v2587, 2147483648
        %v5122 = vxor.u32 %v4959, 2147483648
        %v5123 = vxor.u32 %v4961, 2147483648
        %v5124 = vxor.u32 %v2592, 2147483648
        %v5125 = vxor.u32 %v2594, 2147483648
        %v5126 = vxor.u32 %v4966, 2147483648
        %v5127 = vxor.u32 %v4968, 2147483648
        %v5128 = vxor.u32 %v2599, 2147483648
        %v5129 = vxor.u32 %v2601, 2147483648
        %v5130 = vxor.u32 %v4973, 2147483648
        %v5131 = vxor.u32 %v4975, 2147483648
        %v5132 = vxor.u32 %v2606, 2147483648
        %v5133 = vxor.u32 %v2608, 2147483648
        %v5134 = vxor.u32 %v4980, 2147483648
        %v5135 = vxor.u32 %v4982, 2147483648
        %v5136 = vxor.u32 %v2613, 2147483648
        %v5137 = vxor.u32 %v2615, 2147483648
        %v5138 = vxor.u32 %v4987, 2147483648
        %v5139 = vxor.u32 %v4989, 2147483648
        %v5140 = vxor.u32 %v2620, 2147483648
        %v5141 = vxor.u32 %v2622, 2147483648
        %v5142 = vxor.u32 %v4994, 2147483648
        %v5143 = vxor.u32 %v4996, 2147483648
        %v5144 = vxor.u32 %v2627, 2147483648
        %v5145 = vxor.u32 %v2629, 2147483648
        %v5146 = vxor.u32 %v5001, 2147483648
        %v5147 = vxor.u32 %v5003, 2147483648
        %v5148 = vxor.u32 %v2634, 2147483648
        %v5149 = vxor.u32 %v2636, 2147483648
        %v5150 = vxor.u32 %v5008, 2147483648
        %v5151 = vxor.u32 %v5010, 2147483648
        %v5152 = vxor.u32 %v2641, 2147483648
        %v5153 = vxor.u32 %v2643, 2147483648
        %v5154 = vxor.u32 %v5015, 2147483648
        %v5155 = vxor.u32 %v5017, 2147483648
        %v5156 = vxor.u32 %v2648, 2147483648
        %v5157 = vxor.u32 %v2650, 2147483648
        %v5158 = vxor.u32 %v5022, 2147483648
        %v5159 = vxor.u32 %v5024, 2147483648
        %v5160 = vxor.u32 %v2655, 2147483648
        %v5161 = vxor.u32 %v2657, 2147483648
        %v5162 = vxor.u32 %v5029, 2147483648
        %v5163 = vxor.u32 %v5031, 2147483648
        %v5164 = vxor.u32 %v2662, 2147483648
        %v5165 = vxor.u32 %v2664, 2147483648
        %v5166 = vxor.u32 %v5036, 2147483648
        %v5167 = vxor.u32 %v5038, 2147483648
        %v5168 = vmul.f32 %v5040, 1.442695
        %v5169 = vpow.pop %v5168
        %v5170 = vmul.f32 %v5041, 1.442695
        %v5171 = vpow.pop %v5170
        %v5172 = vmul.f32 %v5042, 1.442695
        %v5173 = vpow.pop %v5172
        %v5174 = vmul.f32 %v5043, 1.442695
        %v5175 = vpow.pop %v5174
        %v5176 = vmul.f32 %v5044, 1.442695
        %v5177 = vpow.pop %v5176
        %v5178 = vmul.f32 %v5045, 1.442695
        %v5179 = vpow.pop %v5178
        %v5180 = vmul.f32 %v5046, 1.442695
        %v5181 = vpow.pop %v5180
        %v5182 = vmul.f32 %v5047, 1.442695
        %v5183 = vpow.pop %v5182
        %v5184 = vmul.f32 %v5048, 1.442695
        %v5185 = vpow.pop %v5184
        %v5186 = vmul.f32 %v5049, 1.442695
        %v5187 = vpow.pop %v5186
        %v5188 = vmul.f32 %v5050, 1.442695
        %v5189 = vpow.pop %v5188
        %v5190 = vmul.f32 %v5051, 1.442695
        %v5191 = vpow.pop %v5190
        %v5192 = vmul.f32 %v5052, 1.442695
        %v5193 = vpow.pop %v5192
        %v5194 = vmul.f32 %v5053, 1.442695
        %v5195 = vpow.pop %v5194
        %v5196 = vmul.f32 %v5054, 1.442695
        %v5197 = vpow.pop %v5196
        %v5198 = vmul.f32 %v5055, 1.442695
        %v5199 = vpow.pop %v5198
        %v5200 = vmul.f32 %v5056, 1.442695
        %v5201 = vpow.pop %v5200
        %v5202 = vmul.f32 %v5057, 1.442695
        %v5203 = vpow.pop %v5202
        %v5204 = vmul.f32 %v5058, 1.442695
        %v5205 = vpow.pop %v5204
        %v5206 = vmul.f32 %v5059, 1.442695
        %v5207 = vpow.pop %v5206
        %v5208 = vmul.f32 %v5060, 1.442695
        %v5209 = vpow.pop %v5208
        %v5210 = vmul.f32 %v5061, 1.442695
        %v5211 = vpow.pop %v5210
        %v5212 = vmul.f32 %v5062, 1.442695
        %v5213 = vpow.pop %v5212
        %v5214 = vmul.f32 %v5063, 1.442695
        %v5215 = vpow.pop %v5214
        %v5216 = vmul.f32 %v5064, 1.442695
        %v5217 = vpow.pop %v5216
        %v5218 = vmul.f32 %v5065, 1.442695
        %v5219 = vpow.pop %v5218
        %v5220 = vmul.f32 %v5066, 1.442695
        %v5221 = vpow.pop %v5220
        %v5222 = vmul.f32 %v5067, 1.442695
        %v5223 = vpow.pop %v5222
        %v5224 = vmul.f32 %v5068, 1.442695
        %v5225 = vpow.pop %v5224
        %v5226 = vmul.f32 %v5069, 1.442695
        %v5227 = vpow.pop %v5226
        %v5228 = vmul.f32 %v5070, 1.442695
        %v5229 = vpow.pop %v5228
        %v5230 = vmul.f32 %v5071, 1.442695
        %v5231 = vpow.pop %v5230
        %v5232 = vmul.f32 %v5072, 1.442695
        %v5233 = vpow.pop %v5232
        %v5234 = vmul.f32 %v5073, 1.442695
        %v5235 = vpow.pop %v5234
        %v5236 = vmul.f32 %v5074, 1.442695
        %v5237 = vpow.pop %v5236
        %v5238 = vmul.f32 %v5075, 1.442695
        %v5239 = vpow.pop %v5238
        %v5240 = vmul.f32 %v5076, 1.442695
        %v5241 = vpow.pop %v5240
        %v5242 = vmul.f32 %v5077, 1.442695
        %v5243 = vpow.pop %v5242
        %v5244 = vmul.f32 %v5078, 1.442695
        %v5245 = vpow.pop %v5244
        %v5246 = vmul.f32 %v5079, 1.442695
        %v5247 = vpow.pop %v5246
        %v5248 = vmul.f32 %v5080, 1.442695
        %v5249 = vpow.pop %v5248
        %v5250 = vmul.f32 %v5081, 1.442695
        %v5251 = vpow.pop %v5250
        %v5252 = vmul.f32 %v5082, 1.442695
        %v5253 = vpow.pop %v5252
        %v5254 = vmul.f32 %v5083, 1.442695
        %v5255 = vpow.pop %v5254
        %v5256 = vmul.f32 %v5084, 1.442695
        %v5257 = vpow.pop %v5256
        %v5258 = vmul.f32 %v5085, 1.442695
        %v5259 = vpow.pop %v5258
        %v5260 = vmul.f32 %v5086, 1.442695
        %v5261 = vpow.pop %v5260
        %v5262 = vmul.f32 %v5087, 1.442695
        %v5263 = vpow.pop %v5262
        %v5264 = vmul.f32 %v5088, 1.442695
        %v5265 = vpow.pop %v5264
        %v5266 = vmul.f32 %v5089, 1.442695
        %v5267 = vpow.pop %v5266
        %v5268 = vmul.f32 %v5090, 1.442695
        %v5269 = vpow.pop %v5268
        %v5270 = vmul.f32 %v5091, 1.442695
        %v5271 = vpow.pop %v5270
        %v5272 = vmul.f32 %v5092, 1.442695
        %v5273 = vpow.pop %v5272
        %v5274 = vmul.f32 %v5093, 1.442695
        %v5275 = vpow.pop %v5274
        %v5276 = vmul.f32 %v5094, 1.442695
        %v5277 = vpow.pop %v5276
        %v5278 = vmul.f32 %v5095, 1.442695
        %v5279 = vpow.pop %v5278
        %v5280 = vmul.f32 %v5096, 1.442695
        %v5281 = vpow.pop %v5280
        %v5282 = vmul.f32 %v5097, 1.442695
        %v5283 = vpow.pop %v5282
        %v5284 = vmul.f32 %v5098, 1.442695
        %v5285 = vpow.pop %v5284
        %v5286 = vmul.f32 %v5099, 1.442695
        %v5287 = vpow.pop %v5286
        %v5288 = vmul.f32 %v5100, 1.442695
        %v5289 = vpow.pop %v5288
        %v5290 = vmul.f32 %v5101, 1.442695
        %v5291 = vpow.pop %v5290
        %v5292 = vmul.f32 %v5102, 1.442695
        %v5293 = vpow.pop %v5292
        %v5294 = vmul.f32 %v5103, 1.442695
        %v5295 = vpow.pop %v5294
        %v5296 = vmul.f32 %v5104, 1.442695
        %v5297 = vpow.pop %v5296
        %v5298 = vmul.f32 %v5105, 1.442695
        %v5299 = vpow.pop %v5298
        %v5300 = vmul.f32 %v5106, 1.442695
        %v5301 = vpow.pop %v5300
        %v5302 = vmul.f32 %v5107, 1.442695
        %v5303 = vpow.pop %v5302
        %v5304 = vmul.f32 %v5108, 1.442695
        %v5305 = vpow.pop %v5304
        %v5306 = vmul.f32 %v5109, 1.442695
        %v5307 = vpow.pop %v5306
        %v5308 = vmul.f32 %v5110, 1.442695
        %v5309 = vpow.pop %v5308
        %v5310 = vmul.f32 %v5111, 1.442695
        %v5311 = vpow.pop %v5310
        %v5312 = vmul.f32 %v5112, 1.442695
        %v5313 = vpow.pop %v5312
        %v5314 = vmul.f32 %v5113, 1.442695
        %v5315 = vpow.pop %v5314
        %v5316 = vmul.f32 %v5114, 1.442695
        %v5317 = vpow.pop %v5316
        %v5318 = vmul.f32 %v5115, 1.442695
        %v5319 = vpow.pop %v5318
        %v5320 = vmul.f32 %v5116, 1.442695
        %v5321 = vpow.pop %v5320
        %v5322 = vmul.f32 %v5117, 1.442695
        %v5323 = vpow.pop %v5322
        %v5324 = vmul.f32 %v5118, 1.442695
        %v5325 = vpow.pop %v5324
        %v5326 = vmul.f32 %v5119, 1.442695
        %v5327 = vpow.pop %v5326
        %v5328 = vmul.f32 %v5120, 1.442695
        %v5329 = vpow.pop %v5328
        %v5330 = vmul.f32 %v5121, 1.442695
        %v5331 = vpow.pop %v5330
        %v5332 = vmul.f32 %v5122, 1.442695
        %v5333 = vpow.pop %v5332
        %v5334 = vmul.f32 %v5123, 1.442695
        %v5335 = vpow.pop %v5334
        %v5336 = vmul.f32 %v5124, 1.442695
        %v5337 = vpow.pop %v5336
        %v5338 = vmul.f32 %v5125, 1.442695
        %v5339 = vpow.pop %v5338
        %v5340 = vmul.f32 %v5126, 1.442695
        %v5341 = vpow.pop %v5340
        %v5342 = vmul.f32 %v5127, 1.442695
        %v5343 = vpow.pop %v5342
        %v5344 = vmul.f32 %v5128, 1.442695
        %v5345 = vpow.pop %v5344
        %v5346 = vmul.f32 %v5129, 1.442695
        %v5347 = vpow.pop %v5346
        %v5348 = vmul.f32 %v5130, 1.442695
        %v5349 = vpow.pop %v5348
        %v5350 = vmul.f32 %v5131, 1.442695
        %v5351 = vpow.pop %v5350
        %v5352 = vmul.f32 %v5132, 1.442695
        %v5353 = vpow.pop %v5352
        %v5354 = vmul.f32 %v5133, 1.442695
        %v5355 = vpow.pop %v5354
        %v5356 = vmul.f32 %v5134, 1.442695
        %v5357 = vpow.pop %v5356
        %v5358 = vmul.f32 %v5135, 1.442695
        %v5359 = vpow.pop %v5358
        %v5360 = vmul.f32 %v5136, 1.442695
        %v5361 = vpow.pop %v5360
        %v5362 = vmul.f32 %v5137, 1.442695
        %v5363 = vpow.pop %v5362
        %v5364 = vmul.f32 %v5138, 1.442695
        %v5365 = vpow.pop %v5364
        %v5366 = vmul.f32 %v5139, 1.442695
        %v5367 = vpow.pop %v5366
        %v5368 = vmul.f32 %v5140, 1.442695
        %v5369 = vpow.pop %v5368
        %v5370 = vmul.f32 %v5141, 1.442695
        %v5371 = vpow.pop %v5370
        %v5372 = vmul.f32 %v5142, 1.442695
        %v5373 = vpow.pop %v5372
        %v5374 = vmul.f32 %v5143, 1.442695
        %v5375 = vpow.pop %v5374
        %v5376 = vmul.f32 %v5144, 1.442695
        %v5377 = vpow.pop %v5376
        %v5378 = vmul.f32 %v5145, 1.442695
        %v5379 = vpow.pop %v5378
        %v5380 = vmul.f32 %v5146, 1.442695
        %v5381 = vpow.pop %v5380
        %v5382 = vmul.f32 %v5147, 1.442695
        %v5383 = vpow.pop %v5382
        %v5384 = vmul.f32 %v5148, 1.442695
        %v5385 = vpow.pop %v5384
        %v5386 = vmul.f32 %v5149, 1.442695
        %v5387 = vpow.pop %v5386
        %v5388 = vmul.f32 %v5150, 1.442695
        %v5389 = vpow.pop %v5388
        %v5390 = vmul.f32 %v5151, 1.442695
        %v5391 = vpow.pop %v5390
        %v5392 = vmul.f32 %v5152, 1.442695
        %v5393 = vpow.pop %v5392
        %v5394 = vmul.f32 %v5153, 1.442695
        %v5395 = vpow.pop %v5394
        %v5396 = vmul.f32 %v5154, 1.442695
        %v5397 = vpow.pop %v5396
        %v5398 = vmul.f32 %v5155, 1.442695
        %v5399 = vpow.pop %v5398
        %v5400 = vmul.f32 %v5156, 1.442695
        %v5401 = vpow.pop %v5400
        %v5402 = vmul.f32 %v5157, 1.442695
        %v5403 = vpow.pop %v5402
        %v5404 = vmul.f32 %v5158, 1.442695
        %v5405 = vpow.pop %v5404
        %v5406 = vmul.f32 %v5159, 1.442695
        %v5407 = vpow.pop %v5406
        %v5408 = vmul.f32 %v5160, 1.442695
        %v5409 = vpow.pop %v5408
        %v5410 = vmul.f32 %v5161, 1.442695
        %v5411 = vpow.pop %v5410
        %v5412 = vmul.f32 %v5162, 1.442695
        %v5413 = vpow.pop %v5412
        %v5414 = vmul.f32 %v5163, 1.442695
        %v5415 = vpow.pop %v5414
        %v5416 = vmul.f32 %v5164, 1.442695
        %v5417 = vpow.pop %v5416
        %v5418 = vmul.f32 %v5165, 1.442695
        %v5419 = vpow.pop %v5418
        %v5420 = vmul.f32 %v5166, 1.442695
        %v5421 = vpow.pop %v5420
        %v5422 = vmul.f32 %v5167, 1.442695
        %v5423 = vpow.pop %v5422
        %v5424 = vadd.f32 %v5169, 1.0
        %v5425 = vadd.f32 %v5171, 1.0
        %v5426 = vadd.f32 %v5173, 1.0
        %v5427 = vadd.f32 %v5175, 1.0
        %v5428 = vadd.f32 %v5177, 1.0
        %v5429 = vadd.f32 %v5179, 1.0
        %v5430 = vadd.f32 %v5181, 1.0
        %v5431 = vadd.f32 %v5183, 1.0
        %v5432 = vadd.f32 %v5185, 1.0
        %v5433 = vadd.f32 %v5187, 1.0
        %v5434 = vadd.f32 %v5189, 1.0
        %v5435 = vadd.f32 %v5191, 1.0
        %v5436 = vadd.f32 %v5193, 1.0
        %v5437 = vadd.f32 %v5195, 1.0
        %v5438 = vadd.f32 %v5197, 1.0
        %v5439 = vadd.f32 %v5199, 1.0
        %v5440 = vadd.f32 %v5201, 1.0
        %v5441 = vadd.f32 %v5203, 1.0
        %v5442 = vadd.f32 %v5205, 1.0
        %v5443 = vadd.f32 %v5207, 1.0
        %v5444 = vadd.f32 %v5209, 1.0
        %v5445 = vadd.f32 %v5211, 1.0
        %v5446 = vadd.f32 %v5213, 1.0
        %v5447 = vadd.f32 %v5215, 1.0
        %v5448 = vadd.f32 %v5217, 1.0
        %v5449 = vadd.f32 %v5219, 1.0
        %v5450 = vadd.f32 %v5221, 1.0
        %v5451 = vadd.f32 %v5223, 1.0
        %v5452 = vadd.f32 %v5225, 1.0
        %v5453 = vadd.f32 %v5227, 1.0
        %v5454 = vadd.f32 %v5229, 1.0
        %v5455 = vadd.f32 %v5231, 1.0
        %v5456 = vadd.f32 %v5233, 1.0
        %v5457 = vadd.f32 %v5235, 1.0
        %v5458 = vadd.f32 %v5237, 1.0
        %v5459 = vadd.f32 %v5239, 1.0
        %v5460 = vadd.f32 %v5241, 1.0
        %v5461 = vadd.f32 %v5243, 1.0
        %v5462 = vadd.f32 %v5245, 1.0
        %v5463 = vadd.f32 %v5247, 1.0
        %v5464 = vadd.f32 %v5249, 1.0
        %v5465 = vadd.f32 %v5251, 1.0
        %v5466 = vadd.f32 %v5253, 1.0
        %v5467 = vadd.f32 %v5255, 1.0
        %v5468 = vadd.f32 %v5257, 1.0
        %v5469 = vadd.f32 %v5259, 1.0
        %v5470 = vadd.f32 %v5261, 1.0
        %v5471 = vadd.f32 %v5263, 1.0
        %v5472 = vadd.f32 %v5265, 1.0
        %v5473 = vadd.f32 %v5267, 1.0
        %v5474 = vadd.f32 %v5269, 1.0
        %v5475 = vadd.f32 %v5271, 1.0
        %v5476 = vadd.f32 %v5273, 1.0
        %v5477 = vadd.f32 %v5275, 1.0
        %v5478 = vadd.f32 %v5277, 1.0
        %v5479 = vadd.f32 %v5279, 1.0
        %v5480 = vadd.f32 %v5281, 1.0
        %v5481 = vadd.f32 %v5283, 1.0
        %v5482 = vadd.f32 %v5285, 1.0
        %v5483 = vadd.f32 %v5287, 1.0
        %v5484 = vadd.f32 %v5289, 1.0
        %v5485 = vadd.f32 %v5291, 1.0
        %v5486 = vadd.f32 %v5293, 1.0
        %v5487 = vadd.f32 %v5295, 1.0
        %v5488 = vadd.f32 %v5297, 1.0
        %v5489 = vadd.f32 %v5299, 1.0
        %v5490 = vadd.f32 %v5301, 1.0
        %v5491 = vadd.f32 %v5303, 1.0
        %v5492 = vadd.f32 %v5305, 1.0
        %v5493 = vadd.f32 %v5307, 1.0
        %v5494 = vadd.f32 %v5309, 1.0
        %v5495 = vadd.f32 %v5311, 1.0
        %v5496 = vadd.f32 %v5313, 1.0
        %v5497 = vadd.f32 %v5315, 1.0
        %v5498 = vadd.f32 %v5317, 1.0
        %v5499 = vadd.f32 %v5319, 1.0
        %v5500 = vadd.f32 %v5321, 1.0
        %v5501 = vadd.f32 %v5323, 1.0
        %v5502 = vadd.f32 %v5325, 1.0
        %v5503 = vadd.f32 %v5327, 1.0
        %v5504 = vadd.f32 %v5329, 1.0
        %v5505 = vadd.f32 %v5331, 1.0
        %v5506 = vadd.f32 %v5333, 1.0
        %v5507 = vadd.f32 %v5335, 1.0
        %v5508 = vadd.f32 %v5337, 1.0
        %v5509 = vadd.f32 %v5339, 1.0
        %v5510 = vadd.f32 %v5341, 1.0
        %v5511 = vadd.f32 %v5343, 1.0
        %v5512 = vadd.f32 %v5345, 1.0
        %v5513 = vadd.f32 %v5347, 1.0
        %v5514 = vadd.f32 %v5349, 1.0
        %v5515 = vadd.f32 %v5351, 1.0
        %v5516 = vadd.f32 %v5353, 1.0
        %v5517 = vadd.f32 %v5355, 1.0
        %v5518 = vadd.f32 %v5357, 1.0
        %v5519 = vadd.f32 %v5359, 1.0
        %v5520 = vadd.f32 %v5361, 1.0
        %v5521 = vadd.f32 %v5363, 1.0
        %v5522 = vadd.f32 %v5365, 1.0
        %v5523 = vadd.f32 %v5367, 1.0
        %v5524 = vadd.f32 %v5369, 1.0
        %v5525 = vadd.f32 %v5371, 1.0
        %v5526 = vadd.f32 %v5373, 1.0
        %v5527 = vadd.f32 %v5375, 1.0
        %v5528 = vadd.f32 %v5377, 1.0
        %v5529 = vadd.f32 %v5379, 1.0
        %v5530 = vadd.f32 %v5381, 1.0
        %v5531 = vadd.f32 %v5383, 1.0
        %v5532 = vadd.f32 %v5385, 1.0
        %v5533 = vadd.f32 %v5387, 1.0
        %v5534 = vadd.f32 %v5389, 1.0
        %v5535 = vadd.f32 %v5391, 1.0
        %v5536 = vadd.f32 %v5393, 1.0
        %v5537 = vadd.f32 %v5395, 1.0
        %v5538 = vadd.f32 %v5397, 1.0
        %v5539 = vadd.f32 %v5399, 1.0
        %v5540 = vadd.f32 %v5401, 1.0
        %v5541 = vadd.f32 %v5403, 1.0
        %v5542 = vadd.f32 %v5405, 1.0
        %v5543 = vadd.f32 %v5407, 1.0
        %v5544 = vadd.f32 %v5409, 1.0
        %v5545 = vadd.f32 %v5411, 1.0
        %v5546 = vadd.f32 %v5413, 1.0
        %v5547 = vadd.f32 %v5415, 1.0
        %v5548 = vadd.f32 %v5417, 1.0
        %v5549 = vadd.f32 %v5419, 1.0
        %v5550 = vadd.f32 %v5421, 1.0
        %v5551 = vadd.f32 %v5423, 1.0
        %v5552 = vrcp.pop %v5424
        %v5553 = vmul.f32 1.0, %v5552
        %v5554 = vrcp.pop %v5425
        %v5555 = vmul.f32 1.0, %v5554
        %v5556 = vrcp.pop %v5426
        %v5557 = vmul.f32 1.0, %v5556
        %v5558 = vrcp.pop %v5427
        %v5559 = vmul.f32 1.0, %v5558
        %v5560 = vrcp.pop %v5428
        %v5561 = vmul.f32 1.0, %v5560
        %v5562 = vrcp.pop %v5429
        %v5563 = vmul.f32 1.0, %v5562
        %v5564 = vrcp.pop %v5430
        %v5565 = vmul.f32 1.0, %v5564
        %v5566 = vrcp.pop %v5431
        %v5567 = vmul.f32 1.0, %v5566
        %v5568 = vrcp.pop %v5432
        %v5569 = vmul.f32 1.0, %v5568
        %v5570 = vrcp.pop %v5433
        %v5571 = vmul.f32 1.0, %v5570
        %v5572 = vrcp.pop %v5434
        %v5573 = vmul.f32 1.0, %v5572
        %v5574 = vrcp.pop %v5435
        %v5575 = vmul.f32 1.0, %v5574
        %v5576 = vrcp.pop %v5436
        %v5577 = vmul.f32 1.0, %v5576
        %v5578 = vrcp.pop %v5437
        %v5579 = vmul.f32 1.0, %v5578
        %v5580 = vrcp.pop %v5438
        %v5581 = vmul.f32 1.0, %v5580
        %v5582 = vrcp.pop %v5439
        %v5583 = vmul.f32 1.0, %v5582
        %v5584 = vrcp.pop %v5440
        %v5585 = vmul.f32 1.0, %v5584
        %v5586 = vrcp.pop %v5441
        %v5587 = vmul.f32 1.0, %v5586
        %v5588 = vrcp.pop %v5442
        %v5589 = vmul.f32 1.0, %v5588
        %v5590 = vrcp.pop %v5443
        %v5591 = vmul.f32 1.0, %v5590
        %v5592 = vrcp.pop %v5444
        %v5593 = vmul.f32 1.0, %v5592
        %v5594 = vrcp.pop %v5445
        %v5595 = vmul.f32 1.0, %v5594
        %v5596 = vrcp.pop %v5446
        %v5597 = vmul.f32 1.0, %v5596
        %v5598 = vrcp.pop %v5447
        %v5599 = vmul.f32 1.0, %v5598
        %v5600 = vrcp.pop %v5448
        %v5601 = vmul.f32 1.0, %v5600
        %v5602 = vrcp.pop %v5449
        %v5603 = vmul.f32 1.0, %v5602
        %v5604 = vrcp.pop %v5450
        %v5605 = vmul.f32 1.0, %v5604
        %v5606 = vrcp.pop %v5451
        %v5607 = vmul.f32 1.0, %v5606
        %v5608 = vrcp.pop %v5452
        %v5609 = vmul.f32 1.0, %v5608
        %v5610 = vrcp.pop %v5453
        %v5611 = vmul.f32 1.0, %v5610
        %v5612 = vrcp.pop %v5454
        %v5613 = vmul.f32 1.0, %v5612
        %v5614 = vrcp.pop %v5455
        %v5615 = vmul.f32 1.0, %v5614
        %v5616 = vrcp.pop %v5456
        %v5617 = vmul.f32 1.0, %v5616
        %v5618 = vrcp.pop %v5457
        %v5619 = vmul.f32 1.0, %v5618
        %v5620 = vrcp.pop %v5458
        %v5621 = vmul.f32 1.0, %v5620
        %v5622 = vrcp.pop %v5459
        %v5623 = vmul.f32 1.0, %v5622
        %v5624 = vrcp.pop %v5460
        %v5625 = vmul.f32 1.0, %v5624
        %v5626 = vrcp.pop %v5461
        %v5627 = vmul.f32 1.0, %v5626
        %v5628 = vrcp.pop %v5462
        %v5629 = vmul.f32 1.0, %v5628
        %v5630 = vrcp.pop %v5463
        %v5631 = vmul.f32 1.0, %v5630
        %v5632 = vrcp.pop %v5464
        %v5633 = vmul.f32 1.0, %v5632
        %v5634 = vrcp.pop %v5465
        %v5635 = vmul.f32 1.0, %v5634
        %v5636 = vrcp.pop %v5466
        %v5637 = vmul.f32 1.0, %v5636
        %v5638 = vrcp.pop %v5467
        %v5639 = vmul.f32 1.0, %v5638
        %v5640 = vrcp.pop %v5468
        %v5641 = vmul.f32 1.0, %v5640
        %v5642 = vrcp.pop %v5469
        %v5643 = vmul.f32 1.0, %v5642
        %v5644 = vrcp.pop %v5470
        %v5645 = vmul.f32 1.0, %v5644
        %v5646 = vrcp.pop %v5471
        %v5647 = vmul.f32 1.0, %v5646
        %v5648 = vrcp.pop %v5472
        %v5649 = vmul.f32 1.0, %v5648
        %v5650 = vrcp.pop %v5473
        %v5651 = vmul.f32 1.0, %v5650
        %v5652 = vrcp.pop %v5474
        %v5653 = vmul.f32 1.0, %v5652
        %v5654 = vrcp.pop %v5475
        %v5655 = vmul.f32 1.0, %v5654
        %v5656 = vrcp.pop %v5476
        %v5657 = vmul.f32 1.0, %v5656
        %v5658 = vrcp.pop %v5477
        %v5659 = vmul.f32 1.0, %v5658
        %v5660 = vrcp.pop %v5478
        %v5661 = vmul.f32 1.0, %v5660
        %v5662 = vrcp.pop %v5479
        %v5663 = vmul.f32 1.0, %v5662
        %v5664 = vrcp.pop %v5480
        %v5665 = vmul.f32 1.0, %v5664
        %v5666 = vrcp.pop %v5481
        %v5667 = vmul.f32 1.0, %v5666
        %v5668 = vrcp.pop %v5482
        %v5669 = vmul.f32 1.0, %v5668
        %v5670 = vrcp.pop %v5483
        %v5671 = vmul.f32 1.0, %v5670
        %v5672 = vrcp.pop %v5484
        %v5673 = vmul.f32 1.0, %v5672
        %v5674 = vrcp.pop %v5485
        %v5675 = vmul.f32 1.0, %v5674
        %v5676 = vrcp.pop %v5486
        %v5677 = vmul.f32 1.0, %v5676
        %v5678 = vrcp.pop %v5487
        %v5679 = vmul.f32 1.0, %v5678
        %v5680 = vrcp.pop %v5488
        %v5681 = vmul.f32 1.0, %v5680
        %v5682 = vrcp.pop %v5489
        %v5683 = vmul.f32 1.0, %v5682
        %v5684 = vrcp.pop %v5490
        %v5685 = vmul.f32 1.0, %v5684
        %v5686 = vrcp.pop %v5491
        %v5687 = vmul.f32 1.0, %v5686
        %v5688 = vrcp.pop %v5492
        %v5689 = vmul.f32 1.0, %v5688
        %v5690 = vrcp.pop %v5493
        %v5691 = vmul.f32 1.0, %v5690
        %v5692 = vrcp.pop %v5494
        %v5693 = vmul.f32 1.0, %v5692
        %v5694 = vrcp.pop %v5495
        %v5695 = vmul.f32 1.0, %v5694
        %v5696 = vrcp.pop %v5496
        %v5697 = vmul.f32 1.0, %v5696
        %v5698 = vrcp.pop %v5497
        %v5699 = vmul.f32 1.0, %v5698
        %v5700 = vrcp.pop %v5498
        %v5701 = vmul.f32 1.0, %v5700
        %v5702 = vrcp.pop %v5499
        %v5703 = vmul.f32 1.0, %v5702
        %v5704 = vrcp.pop %v5500
        %v5705 = vmul.f32 1.0, %v5704
        %v5706 = vrcp.pop %v5501
        %v5707 = vmul.f32 1.0, %v5706
        %v5708 = vrcp.pop %v5502
        %v5709 = vmul.f32 1.0, %v5708
        %v5710 = vrcp.pop %v5503
        %v5711 = vmul.f32 1.0, %v5710
        %v5712 = vrcp.pop %v5504
        %v5713 = vmul.f32 1.0, %v5712
        %v5714 = vrcp.pop %v5505
        %v5715 = vmul.f32 1.0, %v5714
        %v5716 = vrcp.pop %v5506
        %v5717 = vmul.f32 1.0, %v5716
        %v5718 = vrcp.pop %v5507
        %v5719 = vmul.f32 1.0, %v5718
        %v5720 = vrcp.pop %v5508
        %v5721 = vmul.f32 1.0, %v5720
        %v5722 = vrcp.pop %v5509
        %v5723 = vmul.f32 1.0, %v5722
        %v5724 = vrcp.pop %v5510
        %v5725 = vmul.f32 1.0, %v5724
        %v5726 = vrcp.pop %v5511
        %v5727 = vmul.f32 1.0, %v5726
        %v5728 = vrcp.pop %v5512
        %v5729 = vmul.f32 1.0, %v5728
        %v5730 = vrcp.pop %v5513
        %v5731 = vmul.f32 1.0, %v5730
        %v5732 = vrcp.pop %v5514
        %v5733 = vmul.f32 1.0, %v5732
        %v5734 = vrcp.pop %v5515
        %v5735 = vmul.f32 1.0, %v5734
        %v5736 = vrcp.pop %v5516
        %v5737 = vmul.f32 1.0, %v5736
        %v5738 = vrcp.pop %v5517
        %v5739 = vmul.f32 1.0, %v5738
        %v5740 = vrcp.pop %v5518
        %v5741 = vmul.f32 1.0, %v5740
        %v5742 = vrcp.pop %v5519
        %v5743 = vmul.f32 1.0, %v5742
        %v5744 = vrcp.pop %v5520
        %v5745 = vmul.f32 1.0, %v5744
        %v5746 = vrcp.pop %v5521
        %v5747 = vmul.f32 1.0, %v5746
        %v5748 = vrcp.pop %v5522
        %v5749 = vmul.f32 1.0, %v5748
        %v5750 = vrcp.pop %v5523
        %v5751 = vmul.f32 1.0, %v5750
        %v5752 = vrcp.pop %v5524
        %v5753 = vmul.f32 1.0, %v5752
        %v5754 = vrcp.pop %v5525
        %v5755 = vmul.f32 1.0, %v5754
        %v5756 = vrcp.pop %v5526
        %v5757 = vmul.f32 1.0, %v5756
        %v5758 = vrcp.pop %v5527
        %v5759 = vmul.f32 1.0, %v5758
        %v5760 = vrcp.pop %v5528
        %v5761 = vmul.f32 1.0, %v5760
        %v5762 = vrcp.pop %v5529
        %v5763 = vmul.f32 1.0, %v5762
        %v5764 = vrcp.pop %v5530
        %v5765 = vmul.f32 1.0, %v5764
        %v5766 = vrcp.pop %v5531
        %v5767 = vmul.f32 1.0, %v5766
        %v5768 = vrcp.pop %v5532
        %v5769 = vmul.f32 1.0, %v5768
        %v5770 = vrcp.pop %v5533
        %v5771 = vmul.f32 1.0, %v5770
        %v5772 = vrcp.pop %v5534
        %v5773 = vmul.f32 1.0, %v5772
        %v5774 = vrcp.pop %v5535
        %v5775 = vmul.f32 1.0, %v5774
        %v5776 = vrcp.pop %v5536
        %v5777 = vmul.f32 1.0, %v5776
        %v5778 = vrcp.pop %v5537
        %v5779 = vmul.f32 1.0, %v5778
        %v5780 = vrcp.pop %v5538
        %v5781 = vmul.f32 1.0, %v5780
        %v5782 = vrcp.pop %v5539
        %v5783 = vmul.f32 1.0, %v5782
        %v5784 = vrcp.pop %v5540
        %v5785 = vmul.f32 1.0, %v5784
        %v5786 = vrcp.pop %v5541
        %v5787 = vmul.f32 1.0, %v5786
        %v5788 = vrcp.pop %v5542
        %v5789 = vmul.f32 1.0, %v5788
        %v5790 = vrcp.pop %v5543
        %v5791 = vmul.f32 1.0, %v5790
        %v5792 = vrcp.pop %v5544
        %v5793 = vmul.f32 1.0, %v5792
        %v5794 = vrcp.pop %v5545
        %v5795 = vmul.f32 1.0, %v5794
        %v5796 = vrcp.pop %v5546
        %v5797 = vmul.f32 1.0, %v5796
        %v5798 = vrcp.pop %v5547
        %v5799 = vmul.f32 1.0, %v5798
        %v5800 = vrcp.pop %v5548
        %v5801 = vmul.f32 1.0, %v5800
        %v5802 = vrcp.pop %v5549
        %v5803 = vmul.f32 1.0, %v5802
        %v5804 = vrcp.pop %v5550
        %v5805 = vmul.f32 1.0, %v5804
        %v5806 = vrcp.pop %v5551
        %v5807 = vmul.f32 1.0, %v5806
        %5808 = vst [vmem:[%s190] sm:$0xff] %v5553
        %5809 = vst [vmem:[%s190 + $0x8] sm:$0xff] %v5555
        %5810 = vst [vmem:[%s190 + $0x10] sm:$0xff] %v5557
        %5811 = vst [vmem:[%s190 + $0x18] sm:$0xff] %v5559
        %5812 = vst [vmem:[%s190 + $0x20] sm:$0xff] %v5561
        %5813 = vst [vmem:[%s190 + $0x28] sm:$0xff] %v5563
        %5814 = vst [vmem:[%s190 + $0x30] sm:$0xff] %v5565
        %5815 = vst [vmem:[%s190 + $0x38] sm:$0xff] %v5567
        %5816 = vst [vmem:[%s190 + $0x40] sm:$0xff] %v5569
        %5817 = vst [vmem:[%s190 + $0x48] sm:$0xff] %v5571
        %5818 = vst [vmem:[%s190 + $0x50] sm:$0xff] %v5573
        %5819 = vst [vmem:[%s190 + $0x58] sm:$0xff] %v5575
        %5820 = vst [vmem:[%s190 + $0x60] sm:$0xff] %v5577
        %5821 = vst [vmem:[%s190 + $0x68] sm:$0xff] %v5579
        %5822 = vst [vmem:[%s190 + $0x70] sm:$0xff] %v5581
        %5823 = vst [vmem:[%s190 + $0x78] sm:$0xff] %v5583
        %5824 = vst [vmem:[%s190 + $0x80] sm:$0xff] %v5585
        %5825 = vst [vmem:[%s190 + $0x88] sm:$0xff] %v5587
        %5826 = vst [vmem:[%s190 + $0x90] sm:$0xff] %v5589
        %5827 = vst [vmem:[%s190 + $0x98] sm:$0xff] %v5591
        %5828 = vst [vmem:[%s190 + $0xa0] sm:$0xff] %v5593
        %5829 = vst [vmem:[%s190 + $0xa8] sm:$0xff] %v5595
        %5830 = vst [vmem:[%s190 + $0xb0] sm:$0xff] %v5597
        %5831 = vst [vmem:[%s190 + $0xb8] sm:$0xff] %v5599
        %5832 = vst [vmem:[%s190 + $0xc0] sm:$0xff] %v5601
        %5833 = vst [vmem:[%s190 + $0xc8] sm:$0xff] %v5603
        %5834 = vst [vmem:[%s190 + $0xd0] sm:$0xff] %v5605
        %5835 = vst [vmem:[%s190 + $0xd8] sm:$0xff] %v5607
        %5836 = vst [vmem:[%s190 + $0xe0] sm:$0xff] %v5609
        %5837 = vst [vmem:[%s190 + $0xe8] sm:$0xff] %v5611
        %5838 = vst [vmem:[%s190 + $0xf0] sm:$0xff] %v5613
        %5839 = vst [vmem:[%s190 + $0xf8] sm:$0xff] %v5615
        %5840 = vst [vmem:[%s190 + $0x100] sm:$0xff] %v5617
        %5841 = vst [vmem:[%s190 + $0x108] sm:$0xff] %v5619
        %5842 = vst [vmem:[%s190 + $0x110] sm:$0xff] %v5621
        %5843 = vst [vmem:[%s190 + $0x118] sm:$0xff] %v5623
        %5844 = vst [vmem:[%s190 + $0x120] sm:$0xff] %v5625
        %5845 = vst [vmem:[%s190 + $0x128] sm:$0xff] %v5627
        %5846 = vst [vmem:[%s190 + $0x130] sm:$0xff] %v5629
        %5847 = vst [vmem:[%s190 + $0x138] sm:$0xff] %v5631
        %5848 = vst [vmem:[%s190 + $0x140] sm:$0xff] %v5633
        %5849 = vst [vmem:[%s190 + $0x148] sm:$0xff] %v5635
        %5850 = vst [vmem:[%s190 + $0x150] sm:$0xff] %v5637
        %5851 = vst [vmem:[%s190 + $0x158] sm:$0xff] %v5639
        %5852 = vst [vmem:[%s190 + $0x160] sm:$0xff] %v5641
        %5853 = vst [vmem:[%s190 + $0x168] sm:$0xff] %v5643
        %5854 = vst [vmem:[%s190 + $0x170] sm:$0xff] %v5645
        %5855 = vst [vmem:[%s190 + $0x178] sm:$0xff] %v5647
        %5856 = vst [vmem:[%s190 + $0x180] sm:$0xff] %v5649
        %5857 = vst [vmem:[%s190 + $0x188] sm:$0xff] %v5651
        %5858 = vst [vmem:[%s190 + $0x190] sm:$0xff] %v5653
        %5859 = vst [vmem:[%s190 + $0x198] sm:$0xff] %v5655
        %5860 = vst [vmem:[%s190 + $0x1a0] sm:$0xff] %v5657
        %5861 = vst [vmem:[%s190 + $0x1a8] sm:$0xff] %v5659
        %5862 = vst [vmem:[%s190 + $0x1b0] sm:$0xff] %v5661
        %5863 = vst [vmem:[%s190 + $0x1b8] sm:$0xff] %v5663
        %5864 = vst [vmem:[%s190 + $0x1c0] sm:$0xff] %v5665
        %5865 = vst [vmem:[%s190 + $0x1c8] sm:$0xff] %v5667
        %5866 = vst [vmem:[%s190 + $0x1d0] sm:$0xff] %v5669
        %5867 = vst [vmem:[%s190 + $0x1d8] sm:$0xff] %v5671
        %5868 = vst [vmem:[%s190 + $0x1e0] sm:$0xff] %v5673
        %5869 = vst [vmem:[%s190 + $0x1e8] sm:$0xff] %v5675
        %5870 = vst [vmem:[%s190 + $0x1f0] sm:$0xff] %v5677
        %5871 = vst [vmem:[%s190 + $0x1f8] sm:$0xff] %v5679
        %5872 = vst [vmem:[%s190 + $0x200] sm:$0xff] %v5681
        %5873 = vst [vmem:[%s190 + $0x208] sm:$0xff] %v5683
        %5874 = vst [vmem:[%s190 + $0x210] sm:$0xff] %v5685
        %5875 = vst [vmem:[%s190 + $0x218] sm:$0xff] %v5687
        %5876 = vst [vmem:[%s190 + $0x220] sm:$0xff] %v5689
        %5877 = vst [vmem:[%s190 + $0x228] sm:$0xff] %v5691
        %5878 = vst [vmem:[%s190 + $0x230] sm:$0xff] %v5693
        %5879 = vst [vmem:[%s190 + $0x238] sm:$0xff] %v5695
        %5880 = vst [vmem:[%s190 + $0x240] sm:$0xff] %v5697
        %5881 = vst [vmem:[%s190 + $0x248] sm:$0xff] %v5699
        %5882 = vst [vmem:[%s190 + $0x250] sm:$0xff] %v5701
        %5883 = vst [vmem:[%s190 + $0x258] sm:$0xff] %v5703
        %5884 = vst [vmem:[%s190 + $0x260] sm:$0xff] %v5705
        %5885 = vst [vmem:[%s190 + $0x268] sm:$0xff] %v5707
        %5886 = vst [vmem:[%s190 + $0x270] sm:$0xff] %v5709
        %5887 = vst [vmem:[%s190 + $0x278] sm:$0xff] %v5711
        %5888 = vst [vmem:[%s190 + $0x280] sm:$0xff] %v5713
        %5889 = vst [vmem:[%s190 + $0x288] sm:$0xff] %v5715
        %5890 = vst [vmem:[%s190 + $0x290] sm:$0xff] %v5717
        %5891 = vst [vmem:[%s190 + $0x298] sm:$0xff] %v5719
        %5892 = vst [vmem:[%s190 + $0x2a0] sm:$0xff] %v5721
        %5893 = vst [vmem:[%s190 + $0x2a8] sm:$0xff] %v5723
        %5894 = vst [vmem:[%s190 + $0x2b0] sm:$0xff] %v5725
        %5895 = vst [vmem:[%s190 + $0x2b8] sm:$0xff] %v5727
        %5896 = vst [vmem:[%s190 + $0x2c0] sm:$0xff] %v5729
        %5897 = vst [vmem:[%s190 + $0x2c8] sm:$0xff] %v5731
        %5898 = vst [vmem:[%s190 + $0x2d0] sm:$0xff] %v5733
        %5899 = vst [vmem:[%s190 + $0x2d8] sm:$0xff] %v5735
        %5900 = vst [vmem:[%s190 + $0x2e0] sm:$0xff] %v5737
        %5901 = vst [vmem:[%s190 + $0x2e8] sm:$0xff] %v5739
        %5902 = vst [vmem:[%s190 + $0x2f0] sm:$0xff] %v5741
        %5903 = vst [vmem:[%s190 + $0x2f8] sm:$0xff] %v5743
        %5904 = vst [vmem:[%s190 + $0x300] sm:$0xff] %v5745
        %5905 = vst [vmem:[%s190 + $0x308] sm:$0xff] %v5747
        %5906 = vst [vmem:[%s190 + $0x310] sm:$0xff] %v5749
        %5907 = vst [vmem:[%s190 + $0x318] sm:$0xff] %v5751
        %5908 = vst [vmem:[%s190 + $0x320] sm:$0xff] %v5753
        %5909 = vst [vmem:[%s190 + $0x328] sm:$0xff] %v5755
        %5910 = vst [vmem:[%s190 + $0x330] sm:$0xff] %v5757
        %5911 = vst [vmem:[%s190 + $0x338] sm:$0xff] %v5759
        %5912 = vst [vmem:[%s190 + $0x340] sm:$0xff] %v5761
        %5913 = vst [vmem:[%s190 + $0x348] sm:$0xff] %v5763
        %5914 = vst [vmem:[%s190 + $0x350] sm:$0xff] %v5765
        %5915 = vst [vmem:[%s190 + $0x358] sm:$0xff] %v5767
        %5916 = vst [vmem:[%s190 + $0x360] sm:$0xff] %v5769
        %5917 = vst [vmem:[%s190 + $0x368] sm:$0xff] %v5771
        %5918 = vst [vmem:[%s190 + $0x370] sm:$0xff] %v5773
        %5919 = vst [vmem:[%s190 + $0x378] sm:$0xff] %v5775
        %5920 = vst [vmem:[%s190 + $0x380] sm:$0xff] %v5777
        %5921 = vst [vmem:[%s190 + $0x388] sm:$0xff] %v5779
        %5922 = vst [vmem:[%s190 + $0x390] sm:$0xff] %v5781
        %5923 = vst [vmem:[%s190 + $0x398] sm:$0xff] %v5783
        %5924 = vst [vmem:[%s190 + $0x3a0] sm:$0xff] %v5785
        %5925 = vst [vmem:[%s190 + $0x3a8] sm:$0xff] %v5787
        %5926 = vst [vmem:[%s190 + $0x3b0] sm:$0xff] %v5789
        %5927 = vst [vmem:[%s190 + $0x3b8] sm:$0xff] %v5791
        %5928 = vst [vmem:[%s190 + $0x3c0] sm:$0xff] %v5793
        %5929 = vst [vmem:[%s190 + $0x3c8] sm:$0xff] %v5795
        %5930 = vst [vmem:[%s190 + $0x3d0] sm:$0xff] %v5797
        %5931 = vst [vmem:[%s190 + $0x3d8] sm:$0xff] %v5799
        %5932 = vst [vmem:[%s190 + $0x3e0] sm:$0xff] %v5801
        %5933 = vst [vmem:[%s190 + $0x3e8] sm:$0xff] %v5803
        %5934 = vst [vmem:[%s190 + $0x3f0] sm:$0xff] %v5805
        %5935 = vst [vmem:[%s190 + $0x3f8] sm:$0xff] %v5807
        %s5936 = sand.u32 %s89, 1
        %s5937 = scalar_lea.sflag [#allocation4], %s5936
        %s5938 = sand.u32 %s89, 1
        %s5939 = smul.addr %s5938, 1024
        %s5940 = scalar_lea.vmem [#allocation7], %s5939
        // Predicated region
        $region37: #{tpu_custom_call.1} parent=27 // pred_check
          %p5941 = pneg %p99
        $region38: #{tpu_custom_call.1} parent=27 // pred_check_branch
          %5943 = sbr.rel (%p5941) target = $region40
        $region39: #{tpu_custom_call.1} parent=27 // pred_region
          %s5944 = smul.u32 32, %s24
          %s5945 = smul.u32 4, %s25
          %s5947 = ssub.s32 16384, 16384
          %5948 = vsyncadd %s5937, %s5947
          %s5949 = smul.addr %s5944, 4
          %s5950 = sadd.s32 %s5945, %s5949
          %s5951 = smul.addr %s5950, 128
          %s5952 = scalar_lea.hbm %s2, %s5951
          %s5953 = sshll.u32 %s5940, 4
          %s5954 = int_to_ptr.vmem [resolvable:$true] %s5953
          %5959 = dma.vmem_to_hbm [thread:$0]  %s5954, 16384, %s5952, %s5937, 512, 512, 32
        $region40: #{tpu_custom_call.1} parent=27 // pred_fallthru
          _
      $region28: #{tpu_custom_call.1} parent=5 // pred_fallthru
        _
      %p5960 = scmp.le.s32.totalorder 2, %s15
      // Predicated region
      $region41: #{tpu_custom_call.1} parent=5 // pred_check
        %p5961 = pneg %p5960
      $region42: #{tpu_custom_call.1} parent=5 // pred_check_branch
        %5963 = sbr.rel (%p5961) target = $region44
      $region43: #{tpu_custom_call.1} parent=5 // pred_region
        %s5964 = ssub.s32 %s15, 2
        // Predicated region
        $region45: #{tpu_custom_call.1} parent=43 // pred_check
          %p5965 = pneg %p105
        $region46: #{tpu_custom_call.1} parent=43 // pred_check_branch
          %5967 = sbr.rel (%p5965) target = $region48
        $region47: #{tpu_custom_call.1} parent=43 // pred_region
          %s5968 = sand.u32 %s90, 1
          %s5969 = scalar_lea.sflag [#allocation4], %s5968
          %s5970 = sand.u32 %s90, 1
          %s5971 = smul.addr %s5970, 1024
          %s5972 = scalar_lea.vmem [#allocation7], %s5971
          %5973 = dma.done %s5969, 16384
        $region48: #{tpu_custom_call.1} parent=43 // pred_fallthru
          _
      $region44: #{tpu_custom_call.1} parent=5 // pred_fallthru
        _
    $region6: #{tpu_custom_call.1} parent=1 // loop_footer
      %s19 = sadd.s32 1, %s15
    $region7: #{tpu_custom_call.1} parent=1 // loop_footer_branch
      %14 = sbr.rel target = $region3
    $region8: #{tpu_custom_call.1} parent=1 // loop_exit
      _
    %5974 = vsyncpa [#allocation3], 1
    %s5975 = scalar_lea.sflag [#allocation3], 1
    %5976 = vsyncpa %s5975, 1
    %5977 = vsyncpa [#allocation6], 1
    %5978 = vsyncpa [#allocation4], 1
    %s5979 = scalar_lea.sflag [#allocation4], 1
    %5980 = vsyncpa %s5979, 1

</llo_original>
